<compile_context>
chip_gen: v5e
topology: v5e:2x2
jax: 0.10.0
libtpu: 0.0.40
codegen_flags: <defaults>
</compile_context>

<pallas_src>
import numpy as np
import jax
import jax.numpy as jnp
from jax import lax
from jax.experimental import pallas as pl
from jax.experimental.pallas import tpu as pltpu

# ----------------------------- configuration --------------------------------
N_BATCH = 4               # demo batch
B_BLOCK = 2               # images per grid step (lane-batched)
H_IN = W_IN = 12          # raw input spatial size (before bilinear resize)
IMG = 16                  # img_size (down-scaled from the default 256)
CIN = 3                   # in_channels
C1, C2 = 16, 32           # fixed by the module
COUT = 32                 # out_channels (down-scaled from the default 128)
K1, K2, K3 = 7, 5, 3
P1, P2, P3 = K1 // 2, K2 // 2, K3 // 2
NEG_SLOPE = 0.01
BN_EPS = 1e-5
BF16 = jnp.bfloat16

H1 = W1 = IMG             # after resize / conv1
H2 = W2 = H1 // 2         # after pool1 / conv2
H3 = W3 = H2 // 2         # after pool2 / conv3
H4 = W4 = H3 // 2         # after pool3 (then avg-pooled to 1x1)

WP1 = W1 + 2 * P1         # padded width for conv1   (22)
WP2 = W2 + 2 * P2         # padded width for conv2   (12)
WP3 = W3 + 2 * P3         # padded width for conv3   (6)
ROWS1 = H1 * WP1          # 352
ROWS2 = H2 * WP2          # 96
ROWS3 = H3 * WP3          # 24
# one extra padded row at the bottom so every tap slice stays in-bounds
PADROWS1 = (H1 + 2 * P1 + 1) * WP1   # 506
PADROWS2 = (H2 + 2 * P2 + 1) * WP2   # 156
PADROWS3 = (H3 + 2 * P3 + 1) * WP3   # 42

CPAD1 = 8                 # conv1 input channels padded to 8
LM1 = ROWS1 - WP1 - 1     # 329  (valid pool-anchor range, per image)
LM2 = ROWS2 - WP2 - 1     # 83
LM3 = ROWS3 - WP3 - 1     # 17

# lane-batched lengths (B_BLOCK image segments, each PADROWS apart)
LOUT1 = (B_BLOCK - 1) * PADROWS1 + ROWS1     # conv1 output columns
LOUT2 = (B_BLOCK - 1) * PADROWS2 + ROWS2
LOUT3 = (B_BLOCK - 1) * PADROWS3 + ROWS3
LMG3 = (B_BLOCK - 1) * PADROWS3 + LM3        # pool3 anchor columns


def _leaky(v):
    return jnp.where(v >= 0.0, v, NEG_SLOPE * v)


# ----------------------------- Pallas kernel ---------------------------------
def _conv_block(src, w_ref, s_ref, b_ref, k, wp, lout):
    """'same' conv + folded BN + LeakyReLU on the lane-batched (C, B*padrows) slab.

    src:      (cpad, B*padrows)   f32 or bf16 register value
    w_ref:    (Cout, k*k*cpad)    bf16, all taps on the contraction axis
    returns:  (Cout, lout)        f32 (columns b*padrows + [0, rows) are valid)
    """
    patch = jnp.concatenate(
        [src[:, kh * wp + kw: kh * wp + kw + lout]
         for kh in range(k) for kw in range(k)], axis=0).astype(BF16)
    acc = jnp.dot(w_ref[...], patch, preferred_element_type=jnp.float32)
    return _leaky(acc * s_ref[...] + b_ref[...])      # per-channel scale/bias (f32)


def _pool_max(act, wp):
    """Elementwise max over the 4 taps of a 2x2 window anchored at every column."""
    lmg = act.shape[1] - wp - 1
    return jnp.maximum(
        jnp.maximum(act[:, 0:lmg], act[:, 1:1 + lmg]),
        jnp.maximum(act[:, wp:wp + lmg], act[:, wp + 1:wp + 1 + lmg]))


def _pool_scatter(pooled, g_ref, padrows_in, lm):
    """Per-image 0/1 scatter matmul: select 2x2 anchors AND scatter into the next
    conv's zero-padded layout.  Applied per image so K stays lm (no B^2 growth)."""
    pieces = []
    for b in range(B_BLOCK):
        seg = pooled[:, b * padrows_in: b * padrows_in + lm].astype(BF16)
        pieces.append(jnp.dot(seg, g_ref[...], preferred_element_type=jnp.float32))
    return jnp.concatenate(pieces, axis=1).astype(BF16)   # (C, B*padrows_out) bf16


def _rp_encoder_kernel(x_ref, rs_ref,
                       w1_ref, s1_ref, b1_ref, g1_ref,
                       w2_ref, s2_ref, b2_ref, g2_ref,
                       w3_ref, s3_ref, b3_ref, g3_ref,
                       o_ref):
    f32 = jnp.float32

    # ---- bilinear resize + NCHW->(C, padded flattened rows) repack + zero pad:
    #      one matmul per image with the precomputed resize-scatter matrix, images
    #      concatenated along the lane axis.
    src1 = jnp.concatenate(
        [jnp.dot(x_ref[0, b], rs_ref[...], preferred_element_type=f32)
         for b in range(B_BLOCK)], axis=1)                              # (8, B*PADROWS1) f32

    # ---- block 1: conv7x7 + BN + LeakyReLU, then maxpool + scatter
    act1 = _conv_block(src1, w1_ref, s1_ref, b1_ref, K1, WP1, LOUT1)    # (C1, LOUT1)
    src2 = _pool_scatter(_pool_max(act1, WP1), g1_ref, PADROWS1, LM1)   # (C1, B*PADROWS2)

    # ---- block 2: conv5x5 ...
    act2 = _conv_block(src2, w2_ref, s2_ref, b2_ref, K2, WP2, LOUT2)    # (C2, LOUT2)
    src3 = _pool_scatter(_pool_max(act2, WP2), g2_ref, PADROWS2, LM2)   # (C2, B*PADROWS3)

    # ---- block 3: conv3x3 ...
    act3 = _conv_block(src3, w3_ref, s3_ref, b3_ref, K3, WP3, LOUT3)    # (COUT, LOUT3)

    # ---- maxpool 2x2 + AdaptiveAvgPool2d((1,1)) + Flatten:
    #      transposed-dot with per-image anchor/average weights -> lane-dense (B, COUT)
    m3 = _pool_max(act3, WP3)                                           # (COUT, LMG3)
    feat = lax.dot_general(g3_ref[...], m3,
                           dimension_numbers=(((1,), (1,)), ((), ())),
                           preferred_element_type=f32)                  # (B_BLOCK, COUT)
    o_ref[0] = feat


# ----------------------------- wrapper ---------------------------------------
def pallas_rp_encoder(x4d, kparams, consts):
    nb = x4d.shape[0]
    rs, g1, g2, g3g = consts
    w1t, s1, b1, w2t, s2, b2, w3t, s3, b3 = kparams

    def full(a):
        idx = (0,) * a.ndim
        return pl.BlockSpec(a.shape, lambda i: idx)

    out = pl.pallas_call(
        _rp_encoder_kernel,
        out_shape=jax.ShapeDtypeStruct((nb, B_BLOCK, COUT), jnp.float32),
        grid=(nb,),
        in_specs=[
            pl.BlockSpec((1, B_BLOCK, CPAD1, H_IN * W_IN), lambda i: (i, 0, 0, 0)),
            full(rs),
            full(w1t), full(s1), full(b1), full(g1),
            full(w2t), full(s2), full(b2), full(g2),
            full(w3t), full(s3), full(b3), full(g3g),
        ],
        out_specs=pl.BlockSpec((1, B_BLOCK, COUT), lambda i: (i, 0, 0)),
        compiler_params=pltpu.CompilerParams(dimension_semantics=("parallel",)),
    )(x4d, rs, w1t, s1, b1, g1, w2t, s2, b2, g2, w3t, s3, b3, g3g)
    return out.reshape(nb * B_BLOCK, COUT)


def rp_encoder_forward(x_nchw, kparams, consts):
    n = x_nchw.shape[0]
    n_pad = (-n) % B_BLOCK
    # host-side: pad batch to a multiple of B_BLOCK, pad channels 3->8, cast to bf16
    x8 = jnp.pad(x_nchw, ((0, n_pad), (0, CPAD1 - CIN), (0, 0), (0, 0))).astype(BF16)
    x4d = x8.reshape((n + n_pad) // B_BLOCK, B_BLOCK, CPAD1, H_IN * W_IN)
    out = pallas_rp_encoder(x4d, kparams, consts)
    return out[:n]


# ------------------- host-side precomputed constant matrices -----------------
def bilinear_matrix(out_size, in_size):
    """Interpolation matrix matching F.interpolate(mode='bilinear', align_corners=False)."""
    a = np.zeros((out_size, in_size), dtype=np.float32)
    scale = in_size / out_size
    for i in range(out_size):
        src = max((i + 0.5) * scale - 0.5, 0.0)
        i0 = int(np.floor(src))
        frac = src - i0
        a[i, min(i0, in_size - 1)] += 1.0 - frac
        a[i, min(i0 + 1, in_size - 1)] += frac
    return a


def build_constants():
    ah = bilinear_matrix(IMG, H_IN)            # (IMG, Hin)
    aw = bilinear_matrix(IMG, W_IN)            # (IMG, Win)

    # resize + repack + zero-pad matrix: (Hin*Win, PADROWS1)
    rs = np.zeros((H_IN * W_IN, PADROWS1), np.float32)
    for h in range(IMG):
        for w in range(IMG):
            s = (h + P1) * WP1 + P1 + w
            rs[:, s] = np.outer(ah[h], aw[w]).reshape(-1)

    def pool_scatter(h_out, w_out, wp_in, lm, wp_out, p_out, padrows_out):
        g = np.zeros((lm, padrows_out), np.float32)
        for oh in range(h_out):
            for ow in range(w_out):
                g[2 * oh * wp_in + 2 * ow, (oh + p_out) * wp_out + p_out + ow] = 1.0
        return g

    g1 = pool_scatter(H2, W2, WP1, LM1, WP2, P2, PADROWS2)   # (329, 156)
    g2 = pool_scatter(H3, W3, WP2, LM2, WP3, P3, PADROWS3)   # (83, 42)

    # per-image maxpool anchors + 1/(H4*W4) average, for the lane-batched slab
    g3g = np.zeros((B_BLOCK, LMG3), np.float32)
    for b in range(B_BLOCK):
        for oh in range(H4):
            for ow in range(W4):
                g3g[b, b * PADROWS3 + 2 * oh * WP3 + 2 * ow] = 1.0 / (H4 * W4)

    rs = jnp.asarray(rs, dtype=BF16)           # bf16 MXU operands (0/1 and interp
    g1 = jnp.asarray(g1, dtype=BF16)           # weights round harmlessly)
    g2 = jnp.asarray(g2, dtype=BF16)
    g3g = jnp.asarray(g3g, dtype=jnp.float32)  # tiny final dot kept in f32
    return rs, g1, g2, g3g


# ----------------------------- parameters ------------------------------------
def init_params(key):
    ks = jax.random.split(key, 12)

    def conv_bn(kw_, kb_, kg_, kbt_, k, cin, cout):
        w = 0.1 * jax.random.normal(kw_, (k, k, cin, cout), jnp.float32)      # HWIO
        conv_b = 0.1 * jax.random.normal(kb_, (cout,), jnp.float32)
        gamma = 1.0 + 0.1 * jax.random.normal(kg_, (cout,), jnp.float32)
        beta = 0.1 * jax.random.normal(kbt_, (cout,), jnp.float32)
        run_mean = jnp.zeros((cout,), jnp.float32)   # BatchNorm2d init
        run_var = jnp.ones((cout,), jnp.float32)
        scale = gamma / jnp.sqrt(run_var + BN_EPS)
        bias = beta + (conv_b - run_mean) * scale    # fold conv bias + BN (eval mode)
        return w, scale.reshape(1, cout), bias.reshape(1, cout)

    w1, s1, b1 = conv_bn(ks[0], ks[1], ks[2], ks[3], K1, CIN, C1)
    w2, s2, b2 = conv_bn(ks[4], ks[5], ks[6], ks[7], K2, C1, C2)
    w3, s3, b3 = conv_bn(ks[8], ks[9], ks[10], ks[11], K3, C2, COUT)
    return (w1, s1, b1, w2, s2, b2, w3, s3, b3)


def prepare_kernel_params(params):
    """Weights -> bf16 (Cout, k*k*Cin_padded) with all taps on the contraction axis;
    scale/bias -> f32 column vectors."""
    w1, s1, b1, w2, s2, b2, w3, s3, b3 = params

    def wt(w, cpad):
        k, _, cin, cout = w.shape
        wp_ = jnp.pad(w, ((0, 0), (0, 0), (0, cpad - cin), (0, 0)))       # (k,k,cpad,cout)
        return jnp.transpose(wp_, (3, 0, 1, 2)).reshape(cout, k * k * cpad).astype(BF16)

    return (wt(w1, CPAD1), s1.reshape(-1, 1), b1.reshape(-1, 1),
            wt(w2, C1),    s2.reshape(-1, 1), b2.reshape(-1, 1),
            wt(w3, C2),    s3.reshape(-1, 1), b3.reshape(-1, 1))


# ----------------------------- reference --------------------------------------
def reference_forward(x_nchw, params, ah, aw):
    """Pure-JAX (XLA, f32 HIGHEST) reference of the same forward pass."""
    w1, s1, b1, w2, s2, b2, w3, s3, b3 = params
    xr = jnp.einsum('Hh,nchw,Ww->ncHW', ah, x_nchw, aw,
                    precision=lax.Precision.HIGHEST)
    y = jnp.transpose(xr, (0, 2, 3, 1))                     # NHWC
    for (w, s, b) in ((w1, s1, b1), (w2, s2, b2), (w3, s3, b3)):
        y = lax.conv_general_dilated(y, w, (1, 1), 'SAME',
                                     dimension_numbers=('NHWC', 'HWIO', 'NHWC'),
                                     precision=lax.Precision.HIGHEST)
        y = _leaky(y * s + b)
        y = lax.reduce_window(y, -jnp.inf, lax.max,
                              (1, 2, 2, 1), (1, 2, 2, 1), 'VALID')
    return jnp.mean(y, axis=(1, 2))


# ----------------------------- main ------------------------------------------
if __name__ == "__main__":
    key = jax.random.PRNGKey(0)
    kx, kp = jax.random.split(key)
    x = jax.random.normal(kx, (N_BATCH, CIN, H_IN, W_IN), jnp.float32)   # NCHW input
    params = init_params(kp)

    kparams = prepare_kernel_params(params)      # prepped once, outside jit
    consts = build_constants()

    out = jax.jit(rp_encoder_forward)(x, kparams, consts)
    out = jax.block_until_ready(out)
    assert out.shape == (N_BATCH, COUT), out.shape

    ah = jnp.asarray(bilinear_matrix(IMG, H_IN))
    aw = jnp.asarray(bilinear_matrix(IMG, W_IN))
    ref = reference_forward(x, params, ah, aw)
    np.testing.assert_allclose(np.asarray(out), np.asarray(ref), rtol=5e-2, atol=5e-2)
    print("KERNEL_OK")
</pallas_src>

<mosaic_0001>
module attributes {stable_mosaic.version = 11 : i64} {
  func.func @_rp_encoder_kernel(%arg0: i32, %arg1: memref<1x2x8x144xbf16, #tpu.memory_space<vmem>>, %arg2: memref<144x506xbf16, #tpu.memory_space<vmem>>, %arg3: memref<16x392xbf16, #tpu.memory_space<vmem>>, %arg4: memref<16x1xf32, #tpu.memory_space<vmem>>, %arg5: memref<16x1xf32, #tpu.memory_space<vmem>>, %arg6: memref<329x156xbf16, #tpu.memory_space<vmem>>, %arg7: memref<32x400xbf16, #tpu.memory_space<vmem>>, %arg8: memref<32x1xf32, #tpu.memory_space<vmem>>, %arg9: memref<32x1xf32, #tpu.memory_space<vmem>>, %arg10: memref<83x42xbf16, #tpu.memory_space<vmem>>, %arg11: memref<32x288xbf16, #tpu.memory_space<vmem>>, %arg12: memref<32x1xf32, #tpu.memory_space<vmem>>, %arg13: memref<32x1xf32, #tpu.memory_space<vmem>>, %arg14: memref<2x59xf32, #tpu.memory_space<vmem>>, %arg15: memref<1x2x32xf32, #tpu.memory_space<vmem>>) attributes {dimension_semantics = [#tpu.dimension_semantics<parallel>], iteration_bounds = array<i64: 2>, scalar_prefetch = 0 : i64, scratch_operands = 0 : i64, tpu.core_type = #tpu.core_type<tc>, window_params = [{transform_indices = @transform_0, window_bounds = array<i64: 1, 2, 8, 144>}, {pipeline_mode = #tpu.pipeline_mode<synchronous>, transform_indices = @transform_1, window_bounds = array<i64: 144, 506>}, {pipeline_mode = #tpu.pipeline_mode<synchronous>, transform_indices = @transform_2, window_bounds = array<i64: 16, 392>}, {pipeline_mode = #tpu.pipeline_mode<synchronous>, transform_indices = @transform_3, window_bounds = array<i64: 16, 1>}, {pipeline_mode = #tpu.pipeline_mode<synchronous>, transform_indices = @transform_4, window_bounds = array<i64: 16, 1>}, {pipeline_mode = #tpu.pipeline_mode<synchronous>, transform_indices = @transform_5, window_bounds = array<i64: 329, 156>}, {pipeline_mode = #tpu.pipeline_mode<synchronous>, transform_indices = @transform_6, window_bounds = array<i64: 32, 400>}, {pipeline_mode = #tpu.pipeline_mode<synchronous>, transform_indices = @transform_7, window_bounds = array<i64: 32, 1>}, {pipeline_mode = #tpu.pipeline_mode<synchronous>, transform_indices = @transform_8, window_bounds = array<i64: 32, 1>}, {pipeline_mode = #tpu.pipeline_mode<synchronous>, transform_indices = @transform_9, window_bounds = array<i64: 83, 42>}, {pipeline_mode = #tpu.pipeline_mode<synchronous>, transform_indices = @transform_10, window_bounds = array<i64: 32, 288>}, {pipeline_mode = #tpu.pipeline_mode<synchronous>, transform_indices = @transform_11, window_bounds = array<i64: 32, 1>}, {pipeline_mode = #tpu.pipeline_mode<synchronous>, transform_indices = @transform_12, window_bounds = array<i64: 32, 1>}, {pipeline_mode = #tpu.pipeline_mode<synchronous>, transform_indices = @transform_13, window_bounds = array<i64: 2, 59>}, {transform_indices = @transform_14, window_bounds = array<i64: 1, 2, 32>}]} {
    %c0 = arith.constant 0 : index
    %c0_0 = arith.constant 0 : index
    %c0_1 = arith.constant 0 : index
    %c0_2 = arith.constant 0 : index
    %0 = vector.load %arg1[%c0, %c0_0, %c0_1, %c0_2] : memref<1x2x8x144xbf16, #tpu.memory_space<vmem>>, vector<1x1x8x144xbf16>
    %1 = vector.shape_cast %0 : vector<1x1x8x144xbf16> to vector<8x144xbf16>
    %c0_3 = arith.constant 0 : index
    %c0_4 = arith.constant 0 : index
    %2 = vector.load %arg2[%c0_3, %c0_4] : memref<144x506xbf16, #tpu.memory_space<vmem>>, vector<144x506xbf16>
    %cst = arith.constant dense<0.000000e+00> : vector<8x506xf32>
    %3 = tpu.matmul %1, %2, %cst {dimension_numbers = #tpu.dot_dimension_numbers<[1], [0], [0], [1], [0, 0, 1, 1], [], []>} : vector<8x144xbf16>, vector<144x506xbf16>, vector<8x506xf32> -> vector<8x506xf32>
    %c0_5 = arith.constant 0 : index
    %c1 = arith.constant 1 : index
    %c0_6 = arith.constant 0 : index
    %c0_7 = arith.constant 0 : index
    %4 = vector.load %arg1[%c0_5, %c1, %c0_6, %c0_7] : memref<1x2x8x144xbf16, #tpu.memory_space<vmem>>, vector<1x1x8x144xbf16>
    %5 = vector.shape_cast %4 : vector<1x1x8x144xbf16> to vector<8x144xbf16>
    %c0_8 = arith.constant 0 : index
    %c0_9 = arith.constant 0 : index
    %6 = vector.load %arg2[%c0_8, %c0_9] : memref<144x506xbf16, #tpu.memory_space<vmem>>, vector<144x506xbf16>
    %cst_10 = arith.constant dense<0.000000e+00> : vector<8x506xf32>
    %7 = tpu.matmul %5, %6, %cst_10 {dimension_numbers = #tpu.dot_dimension_numbers<[1], [0], [0], [1], [0, 0, 1, 1], [], []>} : vector<8x144xbf16>, vector<144x506xbf16>, vector<8x506xf32> -> vector<8x506xf32>
    %8 = tpu.concatenate %3, %7 in 1 : vector<8x506xf32>, vector<8x506xf32> -> vector<8x1012xf32>
    %9 = vector.extract_strided_slice %8 {offsets = [0, 0], sizes = [8, 858], strides = [1, 1]} : vector<8x1012xf32> to vector<8x858xf32>
    %10 = vector.extract_strided_slice %8 {offsets = [0, 1], sizes = [8, 858], strides = [1, 1]} : vector<8x1012xf32> to vector<8x858xf32>
    %11 = vector.extract_strided_slice %8 {offsets = [0, 2], sizes = [8, 858], strides = [1, 1]} : vector<8x1012xf32> to vector<8x858xf32>
    %12 = vector.extract_strided_slice %8 {offsets = [0, 3], sizes = [8, 858], strides = [1, 1]} : vector<8x1012xf32> to vector<8x858xf32>
    %13 = vector.extract_strided_slice %8 {offsets = [0, 4], sizes = [8, 858], strides = [1, 1]} : vector<8x1012xf32> to vector<8x858xf32>
    %14 = vector.extract_strided_slice %8 {offsets = [0, 5], sizes = [8, 858], strides = [1, 1]} : vector<8x1012xf32> to vector<8x858xf32>
    %15 = vector.extract_strided_slice %8 {offsets = [0, 6], sizes = [8, 858], strides = [1, 1]} : vector<8x1012xf32> to vector<8x858xf32>
    %16 = vector.extract_strided_slice %8 {offsets = [0, 22], sizes = [8, 858], strides = [1, 1]} : vector<8x1012xf32> to vector<8x858xf32>
    %17 = vector.extract_strided_slice %8 {offsets = [0, 23], sizes = [8, 858], strides = [1, 1]} : vector<8x1012xf32> to vector<8x858xf32>
    %18 = vector.extract_strided_slice %8 {offsets = [0, 24], sizes = [8, 858], strides = [1, 1]} : vector<8x1012xf32> to vector<8x858xf32>
    %19 = vector.extract_strided_slice %8 {offsets = [0, 25], sizes = [8, 858], strides = [1, 1]} : vector<8x1012xf32> to vector<8x858xf32>
    %20 = vector.extract_strided_slice %8 {offsets = [0, 26], sizes = [8, 858], strides = [1, 1]} : vector<8x1012xf32> to vector<8x858xf32>
    %21 = vector.extract_strided_slice %8 {offsets = [0, 27], sizes = [8, 858], strides = [1, 1]} : vector<8x1012xf32> to vector<8x858xf32>
    %22 = vector.extract_strided_slice %8 {offsets = [0, 28], sizes = [8, 858], strides = [1, 1]} : vector<8x1012xf32> to vector<8x858xf32>
    %23 = vector.extract_strided_slice %8 {offsets = [0, 44], sizes = [8, 858], strides = [1, 1]} : vector<8x1012xf32> to vector<8x858xf32>
    %24 = vector.extract_strided_slice %8 {offsets = [0, 45], sizes = [8, 858], strides = [1, 1]} : vector<8x1012xf32> to vector<8x858xf32>
    %25 = vector.extract_strided_slice %8 {offsets = [0, 46], sizes = [8, 858], strides = [1, 1]} : vector<8x1012xf32> to vector<8x858xf32>
    %26 = vector.extract_strided_slice %8 {offsets = [0, 47], sizes = [8, 858], strides = [1, 1]} : vector<8x1012xf32> to vector<8x858xf32>
    %27 = vector.extract_strided_slice %8 {offsets = [0, 48], sizes = [8, 858], strides = [1, 1]} : vector<8x1012xf32> to vector<8x858xf32>
    %28 = vector.extract_strided_slice %8 {offsets = [0, 49], sizes = [8, 858], strides = [1, 1]} : vector<8x1012xf32> to vector<8x858xf32>
    %29 = vector.extract_strided_slice %8 {offsets = [0, 50], sizes = [8, 858], strides = [1, 1]} : vector<8x1012xf32> to vector<8x858xf32>
    %30 = vector.extract_strided_slice %8 {offsets = [0, 66], sizes = [8, 858], strides = [1, 1]} : vector<8x1012xf32> to vector<8x858xf32>
    %31 = vector.extract_strided_slice %8 {offsets = [0, 67], sizes = [8, 858], strides = [1, 1]} : vector<8x1012xf32> to vector<8x858xf32>
    %32 = vector.extract_strided_slice %8 {offsets = [0, 68], sizes = [8, 858], strides = [1, 1]} : vector<8x1012xf32> to vector<8x858xf32>
    %33 = vector.extract_strided_slice %8 {offsets = [0, 69], sizes = [8, 858], strides = [1, 1]} : vector<8x1012xf32> to vector<8x858xf32>
    %34 = vector.extract_strided_slice %8 {offsets = [0, 70], sizes = [8, 858], strides = [1, 1]} : vector<8x1012xf32> to vector<8x858xf32>
    %35 = vector.extract_strided_slice %8 {offsets = [0, 71], sizes = [8, 858], strides = [1, 1]} : vector<8x1012xf32> to vector<8x858xf32>
    %36 = vector.extract_strided_slice %8 {offsets = [0, 72], sizes = [8, 858], strides = [1, 1]} : vector<8x1012xf32> to vector<8x858xf32>
    %37 = vector.extract_strided_slice %8 {offsets = [0, 88], sizes = [8, 858], strides = [1, 1]} : vector<8x1012xf32> to vector<8x858xf32>
    %38 = vector.extract_strided_slice %8 {offsets = [0, 89], sizes = [8, 858], strides = [1, 1]} : vector<8x1012xf32> to vector<8x858xf32>
    %39 = vector.extract_strided_slice %8 {offsets = [0, 90], sizes = [8, 858], strides = [1, 1]} : vector<8x1012xf32> to vector<8x858xf32>
    %40 = vector.extract_strided_slice %8 {offsets = [0, 91], sizes = [8, 858], strides = [1, 1]} : vector<8x1012xf32> to vector<8x858xf32>
    %41 = vector.extract_strided_slice %8 {offsets = [0, 92], sizes = [8, 858], strides = [1, 1]} : vector<8x1012xf32> to vector<8x858xf32>
    %42 = vector.extract_strided_slice %8 {offsets = [0, 93], sizes = [8, 858], strides = [1, 1]} : vector<8x1012xf32> to vector<8x858xf32>
    %43 = vector.extract_strided_slice %8 {offsets = [0, 94], sizes = [8, 858], strides = [1, 1]} : vector<8x1012xf32> to vector<8x858xf32>
    %44 = vector.extract_strided_slice %8 {offsets = [0, 110], sizes = [8, 858], strides = [1, 1]} : vector<8x1012xf32> to vector<8x858xf32>
    %45 = vector.extract_strided_slice %8 {offsets = [0, 111], sizes = [8, 858], strides = [1, 1]} : vector<8x1012xf32> to vector<8x858xf32>
    %46 = vector.extract_strided_slice %8 {offsets = [0, 112], sizes = [8, 858], strides = [1, 1]} : vector<8x1012xf32> to vector<8x858xf32>
    %47 = vector.extract_strided_slice %8 {offsets = [0, 113], sizes = [8, 858], strides = [1, 1]} : vector<8x1012xf32> to vector<8x858xf32>
    %48 = vector.extract_strided_slice %8 {offsets = [0, 114], sizes = [8, 858], strides = [1, 1]} : vector<8x1012xf32> to vector<8x858xf32>
    %49 = vector.extract_strided_slice %8 {offsets = [0, 115], sizes = [8, 858], strides = [1, 1]} : vector<8x1012xf32> to vector<8x858xf32>
    %50 = vector.extract_strided_slice %8 {offsets = [0, 116], sizes = [8, 858], strides = [1, 1]} : vector<8x1012xf32> to vector<8x858xf32>
    %51 = vector.extract_strided_slice %8 {offsets = [0, 132], sizes = [8, 858], strides = [1, 1]} : vector<8x1012xf32> to vector<8x858xf32>
    %52 = vector.extract_strided_slice %8 {offsets = [0, 133], sizes = [8, 858], strides = [1, 1]} : vector<8x1012xf32> to vector<8x858xf32>
    %53 = vector.extract_strided_slice %8 {offsets = [0, 134], sizes = [8, 858], strides = [1, 1]} : vector<8x1012xf32> to vector<8x858xf32>
    %54 = vector.extract_strided_slice %8 {offsets = [0, 135], sizes = [8, 858], strides = [1, 1]} : vector<8x1012xf32> to vector<8x858xf32>
    %55 = vector.extract_strided_slice %8 {offsets = [0, 136], sizes = [8, 858], strides = [1, 1]} : vector<8x1012xf32> to vector<8x858xf32>
    %56 = vector.extract_strided_slice %8 {offsets = [0, 137], sizes = [8, 858], strides = [1, 1]} : vector<8x1012xf32> to vector<8x858xf32>
    %57 = vector.extract_strided_slice %8 {offsets = [0, 138], sizes = [8, 858], strides = [1, 1]} : vector<8x1012xf32> to vector<8x858xf32>
    %58 = tpu.concatenate %9, %10, %11, %12, %13, %14, %15, %16, %17, %18, %19, %20, %21, %22, %23, %24 in 0 : vector<8x858xf32>, vector<8x858xf32>, vector<8x858xf32>, vector<8x858xf32>, vector<8x858xf32>, vector<8x858xf32>, vector<8x858xf32>, vector<8x858xf32>, vector<8x858xf32>, vector<8x858xf32>, vector<8x858xf32>, vector<8x858xf32>, vector<8x858xf32>, vector<8x858xf32>, vector<8x858xf32>, vector<8x858xf32> -> vector<128x858xf32>
    %59 = tpu.concatenate %25, %26, %27, %28, %29, %30, %31, %32, %33, %34, %35, %36, %37, %38, %39, %40 in 0 : vector<8x858xf32>, vector<8x858xf32>, vector<8x858xf32>, vector<8x858xf32>, vector<8x858xf32>, vector<8x858xf32>, vector<8x858xf32>, vector<8x858xf32>, vector<8x858xf32>, vector<8x858xf32>, vector<8x858xf32>, vector<8x858xf32>, vector<8x858xf32>, vector<8x858xf32>, vector<8x858xf32>, vector<8x858xf32> -> vector<128x858xf32>
    %60 = tpu.concatenate %41, %42, %43, %44, %45, %46, %47, %48, %49, %50, %51, %52, %53, %54, %55, %56 in 0 : vector<8x858xf32>, vector<8x858xf32>, vector<8x858xf32>, vector<8x858xf32>, vector<8x858xf32>, vector<8x858xf32>, vector<8x858xf32>, vector<8x858xf32>, vector<8x858xf32>, vector<8x858xf32>, vector<8x858xf32>, vector<8x858xf32>, vector<8x858xf32>, vector<8x858xf32>, vector<8x858xf32>, vector<8x858xf32> -> vector<128x858xf32>
    %61 = tpu.concatenate %58, %59, %60, %57 in 0 : vector<128x858xf32>, vector<128x858xf32>, vector<128x858xf32>, vector<8x858xf32> -> vector<392x858xf32>
    %62 = arith.truncf %61 : vector<392x858xf32> to vector<392x858xbf16>
    %c0_11 = arith.constant 0 : index
    %c0_12 = arith.constant 0 : index
    %63 = vector.load %arg3[%c0_11, %c0_12] : memref<16x392xbf16, #tpu.memory_space<vmem>>, vector<16x392xbf16>
    %cst_13 = arith.constant dense<0.000000e+00> : vector<16x858xf32>
    %64 = tpu.matmul %63, %62, %cst_13 {dimension_numbers = #tpu.dot_dimension_numbers<[1], [0], [0], [1], [0, 0, 1, 1], [], []>} : vector<16x392xbf16>, vector<392x858xbf16>, vector<16x858xf32> -> vector<16x858xf32>
    %c0_14 = arith.constant 0 : index
    %c0_15 = arith.constant 0 : index
    %65 = vector.load %arg4[%c0_14, %c0_15] : memref<16x1xf32, #tpu.memory_space<vmem>>, vector<16x1xf32>
    %66 = vector.broadcast %65 : vector<16x1xf32> to vector<16x858xf32>
    %67 = arith.mulf %64, %66 : vector<16x858xf32>
    %c0_16 = arith.constant 0 : index
    %c0_17 = arith.constant 0 : index
    %68 = vector.load %arg5[%c0_16, %c0_17] : memref<16x1xf32, #tpu.memory_space<vmem>>, vector<16x1xf32>
    %69 = vector.broadcast %68 : vector<16x1xf32> to vector<16x858xf32>
    %70 = arith.addf %67, %69 : vector<16x858xf32>
    %cst_18 = arith.constant 0.000000e+00 : f32
    %71 = vector.broadcast %cst_18 : f32 to vector<16x858xf32>
    %72 = arith.cmpf oge, %70, %71 : vector<16x858xf32>
    %cst_19 = arith.constant 0.00999999977 : f32
    %73 = vector.broadcast %cst_19 : f32 to vector<16x858xf32>
    %74 = arith.mulf %73, %70 : vector<16x858xf32>
    %75 = arith.select %72, %70, %74 : vector<16x858xi1>, vector<16x858xf32>
    %76 = vector.extract_strided_slice %75 {offsets = [0, 0], sizes = [16, 835], strides = [1, 1]} : vector<16x858xf32> to vector<16x835xf32>
    %77 = vector.extract_strided_slice %75 {offsets = [0, 1], sizes = [16, 835], strides = [1, 1]} : vector<16x858xf32> to vector<16x835xf32>
    %78 = arith.maximumf %76, %77 : vector<16x835xf32>
    %79 = vector.extract_strided_slice %75 {offsets = [0, 22], sizes = [16, 835], strides = [1, 1]} : vector<16x858xf32> to vector<16x835xf32>
    %80 = vector.extract_strided_slice %75 {offsets = [0, 23], sizes = [16, 835], strides = [1, 1]} : vector<16x858xf32> to vector<16x835xf32>
    %81 = arith.maximumf %79, %80 : vector<16x835xf32>
    %82 = arith.maximumf %78, %81 : vector<16x835xf32>
    %83 = vector.extract_strided_slice %82 {offsets = [0, 0], sizes = [16, 329], strides = [1, 1]} : vector<16x835xf32> to vector<16x329xf32>
    %84 = arith.truncf %83 : vector<16x329xf32> to vector<16x329xbf16>
    %c0_20 = arith.constant 0 : index
    %c0_21 = arith.constant 0 : index
    %85 = vector.load %arg6[%c0_20, %c0_21] : memref<329x156xbf16, #tpu.memory_space<vmem>>, vector<329x156xbf16>
    %cst_22 = arith.constant dense<0.000000e+00> : vector<16x156xf32>
    %86 = tpu.matmul %84, %85, %cst_22 {dimension_numbers = #tpu.dot_dimension_numbers<[1], [0], [0], [1], [0, 0, 1, 1], [], []>} : vector<16x329xbf16>, vector<329x156xbf16>, vector<16x156xf32> -> vector<16x156xf32>
    %87 = vector.extract_strided_slice %82 {offsets = [0, 506], sizes = [16, 329], strides = [1, 1]} : vector<16x835xf32> to vector<16x329xf32>
    %88 = arith.truncf %87 : vector<16x329xf32> to vector<16x329xbf16>
    %c0_23 = arith.constant 0 : index
    %c0_24 = arith.constant 0 : index
    %89 = vector.load %arg6[%c0_23, %c0_24] : memref<329x156xbf16, #tpu.memory_space<vmem>>, vector<329x156xbf16>
    %cst_25 = arith.constant dense<0.000000e+00> : vector<16x156xf32>
    %90 = tpu.matmul %88, %89, %cst_25 {dimension_numbers = #tpu.dot_dimension_numbers<[1], [0], [0], [1], [0, 0, 1, 1], [], []>} : vector<16x329xbf16>, vector<329x156xbf16>, vector<16x156xf32> -> vector<16x156xf32>
    %91 = tpu.concatenate %86, %90 in 1 : vector<16x156xf32>, vector<16x156xf32> -> vector<16x312xf32>
    %92 = arith.truncf %91 : vector<16x312xf32> to vector<16x312xbf16>
    %93 = vector.extract_strided_slice %92 {offsets = [0, 0], sizes = [16, 252], strides = [1, 1]} : vector<16x312xbf16> to vector<16x252xbf16>
    %94 = vector.extract_strided_slice %92 {offsets = [0, 1], sizes = [16, 252], strides = [1, 1]} : vector<16x312xbf16> to vector<16x252xbf16>
    %95 = vector.extract_strided_slice %92 {offsets = [0, 2], sizes = [16, 252], strides = [1, 1]} : vector<16x312xbf16> to vector<16x252xbf16>
    %96 = vector.extract_strided_slice %92 {offsets = [0, 3], sizes = [16, 252], strides = [1, 1]} : vector<16x312xbf16> to vector<16x252xbf16>
    %97 = vector.extract_strided_slice %92 {offsets = [0, 4], sizes = [16, 252], strides = [1, 1]} : vector<16x312xbf16> to vector<16x252xbf16>
    %98 = vector.extract_strided_slice %92 {offsets = [0, 12], sizes = [16, 252], strides = [1, 1]} : vector<16x312xbf16> to vector<16x252xbf16>
    %99 = vector.extract_strided_slice %92 {offsets = [0, 13], sizes = [16, 252], strides = [1, 1]} : vector<16x312xbf16> to vector<16x252xbf16>
    %100 = vector.extract_strided_slice %92 {offsets = [0, 14], sizes = [16, 252], strides = [1, 1]} : vector<16x312xbf16> to vector<16x252xbf16>
    %101 = vector.extract_strided_slice %92 {offsets = [0, 15], sizes = [16, 252], strides = [1, 1]} : vector<16x312xbf16> to vector<16x252xbf16>
    %102 = vector.extract_strided_slice %92 {offsets = [0, 16], sizes = [16, 252], strides = [1, 1]} : vector<16x312xbf16> to vector<16x252xbf16>
    %103 = vector.extract_strided_slice %92 {offsets = [0, 24], sizes = [16, 252], strides = [1, 1]} : vector<16x312xbf16> to vector<16x252xbf16>
    %104 = vector.extract_strided_slice %92 {offsets = [0, 25], sizes = [16, 252], strides = [1, 1]} : vector<16x312xbf16> to vector<16x252xbf16>
    %105 = vector.extract_strided_slice %92 {offsets = [0, 26], sizes = [16, 252], strides = [1, 1]} : vector<16x312xbf16> to vector<16x252xbf16>
    %106 = vector.extract_strided_slice %92 {offsets = [0, 27], sizes = [16, 252], strides = [1, 1]} : vector<16x312xbf16> to vector<16x252xbf16>
    %107 = vector.extract_strided_slice %92 {offsets = [0, 28], sizes = [16, 252], strides = [1, 1]} : vector<16x312xbf16> to vector<16x252xbf16>
    %108 = vector.extract_strided_slice %92 {offsets = [0, 36], sizes = [16, 252], strides = [1, 1]} : vector<16x312xbf16> to vector<16x252xbf16>
    %109 = vector.extract_strided_slice %92 {offsets = [0, 37], sizes = [16, 252], strides = [1, 1]} : vector<16x312xbf16> to vector<16x252xbf16>
    %110 = vector.extract_strided_slice %92 {offsets = [0, 38], sizes = [16, 252], strides = [1, 1]} : vector<16x312xbf16> to vector<16x252xbf16>
    %111 = vector.extract_strided_slice %92 {offsets = [0, 39], sizes = [16, 252], strides = [1, 1]} : vector<16x312xbf16> to vector<16x252xbf16>
    %112 = vector.extract_strided_slice %92 {offsets = [0, 40], sizes = [16, 252], strides = [1, 1]} : vector<16x312xbf16> to vector<16x252xbf16>
    %113 = vector.extract_strided_slice %92 {offsets = [0, 48], sizes = [16, 252], strides = [1, 1]} : vector<16x312xbf16> to vector<16x252xbf16>
    %114 = vector.extract_strided_slice %92 {offsets = [0, 49], sizes = [16, 252], strides = [1, 1]} : vector<16x312xbf16> to vector<16x252xbf16>
    %115 = vector.extract_strided_slice %92 {offsets = [0, 50], sizes = [16, 252], strides = [1, 1]} : vector<16x312xbf16> to vector<16x252xbf16>
    %116 = vector.extract_strided_slice %92 {offsets = [0, 51], sizes = [16, 252], strides = [1, 1]} : vector<16x312xbf16> to vector<16x252xbf16>
    %117 = vector.extract_strided_slice %92 {offsets = [0, 52], sizes = [16, 252], strides = [1, 1]} : vector<16x312xbf16> to vector<16x252xbf16>
    %118 = tpu.concatenate %93, %94, %95, %96, %97, %98, %99, %100, %101, %102, %103, %104, %105, %106, %107, %108 in 0 : vector<16x252xbf16>, vector<16x252xbf16>, vector<16x252xbf16>, vector<16x252xbf16>, vector<16x252xbf16>, vector<16x252xbf16>, vector<16x252xbf16>, vector<16x252xbf16>, vector<16x252xbf16>, vector<16x252xbf16>, vector<16x252xbf16>, vector<16x252xbf16>, vector<16x252xbf16>, vector<16x252xbf16>, vector<16x252xbf16>, vector<16x252xbf16> -> vector<256x252xbf16>
    %119 = tpu.concatenate %109, %110, %111, %112, %113, %114, %115, %116, %117 in 0 : vector<16x252xbf16>, vector<16x252xbf16>, vector<16x252xbf16>, vector<16x252xbf16>, vector<16x252xbf16>, vector<16x252xbf16>, vector<16x252xbf16>, vector<16x252xbf16>, vector<16x252xbf16> -> vector<144x252xbf16>
    %120 = tpu.concatenate %118, %119 in 0 : vector<256x252xbf16>, vector<144x252xbf16> -> vector<400x252xbf16>
    %c0_26 = arith.constant 0 : index
    %c0_27 = arith.constant 0 : index
    %121 = vector.load %arg7[%c0_26, %c0_27] : memref<32x400xbf16, #tpu.memory_space<vmem>>, vector<32x400xbf16>
    %cst_28 = arith.constant dense<0.000000e+00> : vector<32x252xf32>
    %122 = tpu.matmul %121, %120, %cst_28 {dimension_numbers = #tpu.dot_dimension_numbers<[1], [0], [0], [1], [0, 0, 1, 1], [], []>} : vector<32x400xbf16>, vector<400x252xbf16>, vector<32x252xf32> -> vector<32x252xf32>
    %c0_29 = arith.constant 0 : index
    %c0_30 = arith.constant 0 : index
    %123 = vector.load %arg8[%c0_29, %c0_30] : memref<32x1xf32, #tpu.memory_space<vmem>>, vector<32x1xf32>
    %124 = vector.broadcast %123 : vector<32x1xf32> to vector<32x252xf32>
    %125 = arith.mulf %122, %124 : vector<32x252xf32>
    %c0_31 = arith.constant 0 : index
    %c0_32 = arith.constant 0 : index
    %126 = vector.load %arg9[%c0_31, %c0_32] : memref<32x1xf32, #tpu.memory_space<vmem>>, vector<32x1xf32>
    %127 = vector.broadcast %126 : vector<32x1xf32> to vector<32x252xf32>
    %128 = arith.addf %125, %127 : vector<32x252xf32>
    %cst_33 = arith.constant 0.000000e+00 : f32
    %129 = vector.broadcast %cst_33 : f32 to vector<32x252xf32>
    %130 = arith.cmpf oge, %128, %129 : vector<32x252xf32>
    %cst_34 = arith.constant 0.00999999977 : f32
    %131 = vector.broadcast %cst_34 : f32 to vector<32x252xf32>
    %132 = arith.mulf %131, %128 : vector<32x252xf32>
    %133 = arith.select %130, %128, %132 : vector<32x252xi1>, vector<32x252xf32>
    %134 = vector.extract_strided_slice %133 {offsets = [0, 0], sizes = [32, 239], strides = [1, 1]} : vector<32x252xf32> to vector<32x239xf32>
    %135 = vector.extract_strided_slice %133 {offsets = [0, 1], sizes = [32, 239], strides = [1, 1]} : vector<32x252xf32> to vector<32x239xf32>
    %136 = arith.maximumf %134, %135 : vector<32x239xf32>
    %137 = vector.extract_strided_slice %133 {offsets = [0, 12], sizes = [32, 239], strides = [1, 1]} : vector<32x252xf32> to vector<32x239xf32>
    %138 = vector.extract_strided_slice %133 {offsets = [0, 13], sizes = [32, 239], strides = [1, 1]} : vector<32x252xf32> to vector<32x239xf32>
    %139 = arith.maximumf %137, %138 : vector<32x239xf32>
    %140 = arith.maximumf %136, %139 : vector<32x239xf32>
    %141 = vector.extract_strided_slice %140 {offsets = [0, 0], sizes = [32, 83], strides = [1, 1]} : vector<32x239xf32> to vector<32x83xf32>
    %142 = arith.truncf %141 : vector<32x83xf32> to vector<32x83xbf16>
    %c0_35 = arith.constant 0 : index
    %c0_36 = arith.constant 0 : index
    %143 = vector.load %arg10[%c0_35, %c0_36] : memref<83x42xbf16, #tpu.memory_space<vmem>>, vector<83x42xbf16>
    %cst_37 = arith.constant dense<0.000000e+00> : vector<32x42xf32>
    %144 = tpu.matmul %142, %143, %cst_37 {dimension_numbers = #tpu.dot_dimension_numbers<[1], [0], [0], [1], [0, 0, 1, 1], [], []>} : vector<32x83xbf16>, vector<83x42xbf16>, vector<32x42xf32> -> vector<32x42xf32>
    %145 = vector.extract_strided_slice %140 {offsets = [0, 156], sizes = [32, 83], strides = [1, 1]} : vector<32x239xf32> to vector<32x83xf32>
    %146 = arith.truncf %145 : vector<32x83xf32> to vector<32x83xbf16>
    %c0_38 = arith.constant 0 : index
    %c0_39 = arith.constant 0 : index
    %147 = vector.load %arg10[%c0_38, %c0_39] : memref<83x42xbf16, #tpu.memory_space<vmem>>, vector<83x42xbf16>
    %cst_40 = arith.constant dense<0.000000e+00> : vector<32x42xf32>
    %148 = tpu.matmul %146, %147, %cst_40 {dimension_numbers = #tpu.dot_dimension_numbers<[1], [0], [0], [1], [0, 0, 1, 1], [], []>} : vector<32x83xbf16>, vector<83x42xbf16>, vector<32x42xf32> -> vector<32x42xf32>
    %149 = tpu.concatenate %144, %148 in 1 : vector<32x42xf32>, vector<32x42xf32> -> vector<32x84xf32>
    %150 = arith.truncf %149 : vector<32x84xf32> to vector<32x84xbf16>
    %151 = vector.extract_strided_slice %150 {offsets = [0, 0], sizes = [32, 66], strides = [1, 1]} : vector<32x84xbf16> to vector<32x66xbf16>
    %152 = vector.extract_strided_slice %150 {offsets = [0, 1], sizes = [32, 66], strides = [1, 1]} : vector<32x84xbf16> to vector<32x66xbf16>
    %153 = vector.extract_strided_slice %150 {offsets = [0, 2], sizes = [32, 66], strides = [1, 1]} : vector<32x84xbf16> to vector<32x66xbf16>
    %154 = vector.extract_strided_slice %150 {offsets = [0, 6], sizes = [32, 66], strides = [1, 1]} : vector<32x84xbf16> to vector<32x66xbf16>
    %155 = vector.extract_strided_slice %150 {offsets = [0, 7], sizes = [32, 66], strides = [1, 1]} : vector<32x84xbf16> to vector<32x66xbf16>
    %156 = vector.extract_strided_slice %150 {offsets = [0, 8], sizes = [32, 66], strides = [1, 1]} : vector<32x84xbf16> to vector<32x66xbf16>
    %157 = vector.extract_strided_slice %150 {offsets = [0, 12], sizes = [32, 66], strides = [1, 1]} : vector<32x84xbf16> to vector<32x66xbf16>
    %158 = vector.extract_strided_slice %150 {offsets = [0, 13], sizes = [32, 66], strides = [1, 1]} : vector<32x84xbf16> to vector<32x66xbf16>
    %159 = vector.extract_strided_slice %150 {offsets = [0, 14], sizes = [32, 66], strides = [1, 1]} : vector<32x84xbf16> to vector<32x66xbf16>
    %160 = tpu.concatenate %151, %152, %153, %154, %155, %156, %157, %158, %159 in 0 : vector<32x66xbf16>, vector<32x66xbf16>, vector<32x66xbf16>, vector<32x66xbf16>, vector<32x66xbf16>, vector<32x66xbf16>, vector<32x66xbf16>, vector<32x66xbf16>, vector<32x66xbf16> -> vector<288x66xbf16>
    %c0_41 = arith.constant 0 : index
    %c0_42 = arith.constant 0 : index
    %161 = vector.load %arg11[%c0_41, %c0_42] : memref<32x288xbf16, #tpu.memory_space<vmem>>, vector<32x288xbf16>
    %cst_43 = arith.constant dense<0.000000e+00> : vector<32x66xf32>
    %162 = tpu.matmul %161, %160, %cst_43 {dimension_numbers = #tpu.dot_dimension_numbers<[1], [0], [0], [1], [0, 0, 1, 1], [], []>} : vector<32x288xbf16>, vector<288x66xbf16>, vector<32x66xf32> -> vector<32x66xf32>
    %c0_44 = arith.constant 0 : index
    %c0_45 = arith.constant 0 : index
    %163 = vector.load %arg12[%c0_44, %c0_45] : memref<32x1xf32, #tpu.memory_space<vmem>>, vector<32x1xf32>
    %164 = vector.broadcast %163 : vector<32x1xf32> to vector<32x66xf32>
    %165 = arith.mulf %162, %164 : vector<32x66xf32>
    %c0_46 = arith.constant 0 : index
    %c0_47 = arith.constant 0 : index
    %166 = vector.load %arg13[%c0_46, %c0_47] : memref<32x1xf32, #tpu.memory_space<vmem>>, vector<32x1xf32>
    %167 = vector.broadcast %166 : vector<32x1xf32> to vector<32x66xf32>
    %168 = arith.addf %165, %167 : vector<32x66xf32>
    %cst_48 = arith.constant 0.000000e+00 : f32
    %169 = vector.broadcast %cst_48 : f32 to vector<32x66xf32>
    %170 = arith.cmpf oge, %168, %169 : vector<32x66xf32>
    %cst_49 = arith.constant 0.00999999977 : f32
    %171 = vector.broadcast %cst_49 : f32 to vector<32x66xf32>
    %172 = arith.mulf %171, %168 : vector<32x66xf32>
    %173 = arith.select %170, %168, %172 : vector<32x66xi1>, vector<32x66xf32>
    %174 = vector.extract_strided_slice %173 {offsets = [0, 0], sizes = [32, 59], strides = [1, 1]} : vector<32x66xf32> to vector<32x59xf32>
    %175 = vector.extract_strided_slice %173 {offsets = [0, 1], sizes = [32, 59], strides = [1, 1]} : vector<32x66xf32> to vector<32x59xf32>
    %176 = arith.maximumf %174, %175 : vector<32x59xf32>
    %177 = vector.extract_strided_slice %173 {offsets = [0, 6], sizes = [32, 59], strides = [1, 1]} : vector<32x66xf32> to vector<32x59xf32>
    %178 = vector.extract_strided_slice %173 {offsets = [0, 7], sizes = [32, 59], strides = [1, 1]} : vector<32x66xf32> to vector<32x59xf32>
    %179 = arith.maximumf %177, %178 : vector<32x59xf32>
    %180 = arith.maximumf %176, %179 : vector<32x59xf32>
    %c0_50 = arith.constant 0 : index
    %c0_51 = arith.constant 0 : index
    %181 = vector.load %arg14[%c0_50, %c0_51] : memref<2x59xf32, #tpu.memory_space<vmem>>, vector<2x59xf32>
    %cst_52 = arith.constant dense<0.000000e+00> : vector<2x32xf32>
    %182 = tpu.matmul %181, %180, %cst_52 {dimension_numbers = #tpu.dot_dimension_numbers<[1], [1], [0], [0], [0, 0, 1, 0], [], []>} : vector<2x59xf32>, vector<32x59xf32>, vector<2x32xf32> -> vector<2x32xf32>
    %c0_53 = arith.constant 0 : index
    %c0_54 = arith.constant 0 : index
    %c0_55 = arith.constant 0 : index
    %183 = vector.load %arg15[%c0_53, %c0_54, %c0_55] : memref<1x2x32xf32, #tpu.memory_space<vmem>>, vector<1x2x32xf32>
    %184 = vector.shape_cast %183 : vector<1x2x32xf32> to vector<2x32xf32>
    %185 = vector.shape_cast %182 : vector<2x32xf32> to vector<1x2x32xf32>
    tpu.vector_store %arg15[%c0_53, %c0_54, %c0_55], %185 {strides = array<i32>} : memref<1x2x32xf32, #tpu.memory_space<vmem>>, vector<1x2x32xf32>,
    return
  }
  func.func @transform_0(%arg0: i32) -> (i32, i32, i32, i32) {
    %c0_i32 = arith.constant 0 : i32
    %c0_i32_0 = arith.constant 0 : i32
    %c0_i32_1 = arith.constant 0 : i32
    %c0_i32_2 = arith.constant 0 : i32
    return %arg0, %c0_i32, %c0_i32_0, %c0_i32_1 : i32, i32, i32, i32
  }
  func.func @transform_1(%arg0: i32) -> (i32, i32) {
    %c0_i32 = arith.constant 0 : i32
    %c0_i32_0 = arith.constant 0 : i32
    %c0_i32_1 = arith.constant 0 : i32
    return %c0_i32, %c0_i32_0 : i32, i32
  }
  func.func @transform_2(%arg0: i32) -> (i32, i32) {
    %c0_i32 = arith.constant 0 : i32
    %c0_i32_0 = arith.constant 0 : i32
    %c0_i32_1 = arith.constant 0 : i32
    return %c0_i32, %c0_i32_0 : i32, i32
  }
  func.func @transform_3(%arg0: i32) -> (i32, i32) {
    %c0_i32 = arith.constant 0 : i32
    %c0_i32_0 = arith.constant 0 : i32
    %c0_i32_1 = arith.constant 0 : i32
    return %c0_i32, %c0_i32_0 : i32, i32
  }
  func.func @transform_4(%arg0: i32) -> (i32, i32) {
    %c0_i32 = arith.constant 0 : i32
    %c0_i32_0 = arith.constant 0 : i32
    %c0_i32_1 = arith.constant 0 : i32
    return %c0_i32, %c0_i32_0 : i32, i32
  }
  func.func @transform_5(%arg0: i32) -> (i32, i32) {
    %c0_i32 = arith.constant 0 : i32
    %c0_i32_0 = arith.constant 0 : i32
    %c0_i32_1 = arith.constant 0 : i32
    return %c0_i32, %c0_i32_0 : i32, i32
  }
  func.func @transform_6(%arg0: i32) -> (i32, i32) {
    %c0_i32 = arith.constant 0 : i32
    %c0_i32_0 = arith.constant 0 : i32
    %c0_i32_1 = arith.constant 0 : i32
    return %c0_i32, %c0_i32_0 : i32, i32
  }
  func.func @transform_7(%arg0: i32) -> (i32, i32) {
    %c0_i32 = arith.constant 0 : i32
    %c0_i32_0 = arith.constant 0 : i32
    %c0_i32_1 = arith.constant 0 : i32
    return %c0_i32, %c0_i32_0 : i32, i32
  }
  func.func @transform_8(%arg0: i32) -> (i32, i32) {
    %c0_i32 = arith.constant 0 : i32
    %c0_i32_0 = arith.constant 0 : i32
    %c0_i32_1 = arith.constant 0 : i32
    return %c0_i32, %c0_i32_0 : i32, i32
  }
  func.func @transform_9(%arg0: i32) -> (i32, i32) {
    %c0_i32 = arith.constant 0 : i32
    %c0_i32_0 = arith.constant 0 : i32
    %c0_i32_1 = arith.constant 0 : i32
    return %c0_i32, %c0_i32_0 : i32, i32
  }
  func.func @transform_10(%arg0: i32) -> (i32, i32) {
    %c0_i32 = arith.constant 0 : i32
    %c0_i32_0 = arith.constant 0 : i32
    %c0_i32_1 = arith.constant 0 : i32
    return %c0_i32, %c0_i32_0 : i32, i32
  }
  func.func @transform_11(%arg0: i32) -> (i32, i32) {
    %c0_i32 = arith.constant 0 : i32
    %c0_i32_0 = arith.constant 0 : i32
    %c0_i32_1 = arith.constant 0 : i32
    return %c0_i32, %c0_i32_0 : i32, i32
  }
  func.func @transform_12(%arg0: i32) -> (i32, i32) {
    %c0_i32 = arith.constant 0 : i32
    %c0_i32_0 = arith.constant 0 : i32
    %c0_i32_1 = arith.constant 0 : i32
    return %c0_i32, %c0_i32_0 : i32, i32
  }
  func.func @transform_13(%arg0: i32) -> (i32, i32) {
    %c0_i32 = arith.constant 0 : i32
    %c0_i32_0 = arith.constant 0 : i32
    %c0_i32_1 = arith.constant 0 : i32
    return %c0_i32, %c0_i32_0 : i32, i32
  }
  func.func @transform_14(%arg0: i32) -> (i32, i32, i32) {
    %c0_i32 = arith.constant 0 : i32
    %c0_i32_0 = arith.constant 0 : i32
    %c0_i32_1 = arith.constant 0 : i32
    return %arg0, %c0_i32, %c0_i32_0 : i32, i32, i32
  }
}

</mosaic_0001>

<llo_original>
// kernel: rp_encoder_forward.1
$region0: #{rp_encoder_forward.1}
  #allocation0 [shape = 'u32[]', space=smem, size = 0x4, offset = 0x4, fixed_abs, tag = 'smem constant byte address 0x4 - core index']
  #allocation1 [shape = 'u32[72,128]{1,0:T(1,128)}', space=vmem, size = 0x9000, scoped, tag = 'internal scratch']
  %s0 = inlined_call_operand.vmem [shape: bf16[2,2,8,144], index: 0, kind: input, shape index: {}]
  %s1 = inlined_call_operand.vmem [shape: bf16[144,506], index: 1, kind: input, shape index: {}]
  %s2 = inlined_call_operand.vmem [shape: bf16[16,392], index: 2, kind: input, shape index: {}]
  %s3 = inlined_call_operand.vmem [shape: f32[16,1], index: 3, kind: input, shape index: {}]
  %s4 = inlined_call_operand.vmem [shape: f32[16,1], index: 4, kind: input, shape index: {}]
  %s5 = inlined_call_operand.vmem [shape: bf16[329,156], index: 5, kind: input, shape index: {}]
  %s6 = inlined_call_operand.vmem [shape: bf16[32,400], index: 6, kind: input, shape index: {}]
  %s7 = inlined_call_operand.vmem [shape: f32[32,1], index: 7, kind: input, shape index: {}]
  %s8 = inlined_call_operand.vmem [shape: f32[32,1], index: 8, kind: input, shape index: {}]
  %s9 = inlined_call_operand.vmem [shape: bf16[83,42], index: 9, kind: input, shape index: {}]
  %s10 = inlined_call_operand.vmem [shape: bf16[32,288], index: 10, kind: input, shape index: {}]
  %s11 = inlined_call_operand.vmem [shape: f32[32,1], index: 11, kind: input, shape index: {}]
  %s12 = inlined_call_operand.vmem [shape: f32[32,1], index: 12, kind: input, shape index: {}]
  %s13 = inlined_call_operand.vmem [shape: f32[2,59], index: 13, kind: input, shape index: {}]
  %s14 = inlined_call_operand.hbm [shape: f32[2,2,32], index: 14, kind: output, shape index: {}]
  %s15 = sld [smem:[#allocation0]]
  $region89: #{rp_encoder_forward.1} parent=0
    _
  %s17 = ssub.s32 1, %s15
  %s18 = scalar_select 0, %s17, %s15
  $region1: #{rp_encoder_forward.1} parent=0
    #allocation2 [shape = 'u8[2048]{0}', space=vmem, size = 0x800, scoped, tag = 'output window, operand 0']
    #allocation3 [shape = 's32[2]{0}', space=sflag, size = 0x8, scoped, tag = 'scoped memory for rp_encoder_forward.1']
    %19 = vsyncpa [#allocation3], 0
    %s20 = scalar_lea.sflag [#allocation3], 1
    %21 = vsyncpa %s20, 0
    loop: start=0, step=1, limit=4
    $region2: #{rp_encoder_forward.1} parent=1 // loop_pre_header
      _
    $region3: #{rp_encoder_forward.1} parent=1 // loop_header
      %s23 = sphi 0, %s27
      %p24 = scmp.ge.s32.totalorder %s23, 4
      %s33 = sphi 0, %s35
      %s36 = sphi 0, %s33
      %s37 = sphi 0, %s36
      %s53 = sphi 0, %s37
      %s57 = sphi 0, %s57
      %s59 = sphi 0, %s57
      %s60 = sphi 0, %s59
      %s74 = sphi 0, %s60
      %s78 = sphi 0, %s78
      %s80 = sphi 0, %s78
      %s81 = sphi 0, %s80
      %s95 = sphi 0, %s81
      %s99 = sphi 0, %s99
      %s101 = sphi 0, %s99
      %s102 = sphi 0, %s101
      %s116 = sphi 0, %s102
      %s120 = sphi 0, %s120
      %s122 = sphi 0, %s120
      %s123 = sphi 0, %s122
      %s137 = sphi 0, %s123
      %s141 = sphi 0, %s141
      %s143 = sphi 0, %s141
      %s144 = sphi 0, %s143
      %s158 = sphi 0, %s144
      %s162 = sphi 0, %s162
      %s164 = sphi 0, %s162
      %s165 = sphi 0, %s164
      %s179 = sphi 0, %s165
      %s183 = sphi 0, %s183
      %s185 = sphi 0, %s183
      %s186 = sphi 0, %s185
      %s200 = sphi 0, %s186
      %s204 = sphi 0, %s204
      %s206 = sphi 0, %s204
      %s207 = sphi 0, %s206
      %s221 = sphi 0, %s207
      %s225 = sphi 0, %s225
      %s227 = sphi 0, %s225
      %s228 = sphi 0, %s227
      %s242 = sphi 0, %s228
      %s246 = sphi 0, %s246
      %s248 = sphi 0, %s246
      %s249 = sphi 0, %s248
      %s263 = sphi 0, %s249
      %s267 = sphi 0, %s267
      %s269 = sphi 0, %s267
      %s270 = sphi 0, %s269
      %s284 = sphi 0, %s270
      %s288 = sphi 0, %s288
      %s290 = sphi 0, %s288
      %s291 = sphi 0, %s290
      %s305 = sphi 0, %s291
      %s309 = sphi 0, %s309
      %s311 = sphi 0, %s309
      %s312 = sphi 0, %s311
      %s326 = sphi 0, %s312
      %s332 = sphi 0, %s334
      %s335 = sphi 0, %s332
      %s336 = sphi 0, %s335
      %s352 = sphi 0, %s336
    $region4: #{rp_encoder_forward.1} parent=1 // loop_header_branch
      %26 = sbr.rel (%p24) target = $region8
    $region5: #{rp_encoder_forward.1} parent=1 // loop_body
      %s28 = ssub.s32 %s23, 1
      %s29 = ssub.s32 %s23, 2
      %s30 = sadd.s32 %s23, 1
      %s31 = ssub.s32 %s23, %s30
      %p32 = scmp.eq.s32.totalorder %s31, 0
      %s34 = sadd.s32 %s33, 1
      %s35 = scalar_select %p32, %s33, %s34
      %p38 = pneg %p32
      %p39 = scmp.eq.s32.totalorder %s23, 1
      %p40 = por %p38, %p39
      %p41 = scmp.ne.s32.totalorder %s33, %s36
      %p42 = scmp.eq.s32.totalorder %s23, 0
      %p43 = por %p41, %p42
      %p44 = scmp.ne.s32.totalorder %s33, %s36
      %p45 = scmp.eq.s32.totalorder %s28, 1
      %p46 = por %p44, %p45
      %p47 = scmp.ne.s32.totalorder %s36, %s37
      %p48 = scmp.eq.s32.totalorder %s28, 0
      %p49 = por %p47, %p48
      %p50 = scmp.ne.s32.totalorder %s36, %s37
      %p51 = scmp.eq.s32.totalorder %s29, 1
      %p52 = por %p50, %p51
      %p54 = scmp.ne.s32.totalorder %s37, %s53
      %p55 = scmp.eq.s32.totalorder %s29, 0
      %p56 = por %p54, %p55
      %s58 = sadd.s32 %s57, 1
      %p61 = scmp.eq.s32.totalorder %s23, 1
      %p62 = scmp.ne.s32.totalorder %s57, %s59
      %p63 = scmp.eq.s32.totalorder %s23, 0
      %p64 = por %p62, %p63
      %p65 = scmp.ne.s32.totalorder %s57, %s59
      %p66 = scmp.eq.s32.totalorder %s28, 1
      %p67 = por %p65, %p66
      %p68 = scmp.ne.s32.totalorder %s59, %s60
      %p69 = scmp.eq.s32.totalorder %s28, 0
      %p70 = por %p68, %p69
      %p71 = scmp.ne.s32.totalorder %s59, %s60
      %p72 = scmp.eq.s32.totalorder %s29, 1
      %p73 = por %p71, %p72
      %p75 = scmp.ne.s32.totalorder %s60, %s74
      %p76 = scmp.eq.s32.totalorder %s29, 0
      %p77 = por %p75, %p76
      %s79 = sadd.s32 %s78, 1
      %p82 = scmp.eq.s32.totalorder %s23, 1
      %p83 = scmp.ne.s32.totalorder %s78, %s80
      %p84 = scmp.eq.s32.totalorder %s23, 0
      %p85 = por %p83, %p84
      %p86 = scmp.ne.s32.totalorder %s78, %s80
      %p87 = scmp.eq.s32.totalorder %s28, 1
      %p88 = por %p86, %p87
      %p89 = scmp.ne.s32.totalorder %s80, %s81
      %p90 = scmp.eq.s32.totalorder %s28, 0
      %p91 = por %p89, %p90
      %p92 = scmp.ne.s32.totalorder %s80, %s81
      %p93 = scmp.eq.s32.totalorder %s29, 1
      %p94 = por %p92, %p93
      %p96 = scmp.ne.s32.totalorder %s81, %s95
      %p97 = scmp.eq.s32.totalorder %s29, 0
      %p98 = por %p96, %p97
      %s100 = sadd.s32 %s99, 1
      %p103 = scmp.eq.s32.totalorder %s23, 1
      %p104 = scmp.ne.s32.totalorder %s99, %s101
      %p105 = scmp.eq.s32.totalorder %s23, 0
      %p106 = por %p104, %p105
      %p107 = scmp.ne.s32.totalorder %s99, %s101
      %p108 = scmp.eq.s32.totalorder %s28, 1
      %p109 = por %p107, %p108
      %p110 = scmp.ne.s32.totalorder %s101, %s102
      %p111 = scmp.eq.s32.totalorder %s28, 0
      %p112 = por %p110, %p111
      %p113 = scmp.ne.s32.totalorder %s101, %s102
      %p114 = scmp.eq.s32.totalorder %s29, 1
      %p115 = por %p113, %p114
      %p117 = scmp.ne.s32.totalorder %s102, %s116
      %p118 = scmp.eq.s32.totalorder %s29, 0
      %p119 = por %p117, %p118
      %s121 = sadd.s32 %s120, 1
      %p124 = scmp.eq.s32.totalorder %s23, 1
      %p125 = scmp.ne.s32.totalorder %s120, %s122
      %p126 = scmp.eq.s32.totalorder %s23, 0
      %p127 = por %p125, %p126
      %p128 = scmp.ne.s32.totalorder %s120, %s122
      %p129 = scmp.eq.s32.totalorder %s28, 1
      %p130 = por %p128, %p129
      %p131 = scmp.ne.s32.totalorder %s122, %s123
      %p132 = scmp.eq.s32.totalorder %s28, 0
      %p133 = por %p131, %p132
      %p134 = scmp.ne.s32.totalorder %s122, %s123
      %p135 = scmp.eq.s32.totalorder %s29, 1
      %p136 = por %p134, %p135
      %p138 = scmp.ne.s32.totalorder %s123, %s137
      %p139 = scmp.eq.s32.totalorder %s29, 0
      %p140 = por %p138, %p139
      %s142 = sadd.s32 %s141, 1
      %p145 = scmp.eq.s32.totalorder %s23, 1
      %p146 = scmp.ne.s32.totalorder %s141, %s143
      %p147 = scmp.eq.s32.totalorder %s23, 0
      %p148 = por %p146, %p147
      %p149 = scmp.ne.s32.totalorder %s141, %s143
      %p150 = scmp.eq.s32.totalorder %s28, 1
      %p151 = por %p149, %p150
      %p152 = scmp.ne.s32.totalorder %s143, %s144
      %p153 = scmp.eq.s32.totalorder %s28, 0
      %p154 = por %p152, %p153
      %p155 = scmp.ne.s32.totalorder %s143, %s144
      %p156 = scmp.eq.s32.totalorder %s29, 1
      %p157 = por %p155, %p156
      %p159 = scmp.ne.s32.totalorder %s144, %s158
      %p160 = scmp.eq.s32.totalorder %s29, 0
      %p161 = por %p159, %p160
      %s163 = sadd.s32 %s162, 1
      %p166 = scmp.eq.s32.totalorder %s23, 1
      %p167 = scmp.ne.s32.totalorder %s162, %s164
      %p168 = scmp.eq.s32.totalorder %s23, 0
      %p169 = por %p167, %p168
      %p170 = scmp.ne.s32.totalorder %s162, %s164
      %p171 = scmp.eq.s32.totalorder %s28, 1
      %p172 = por %p170, %p171
      %p173 = scmp.ne.s32.totalorder %s164, %s165
      %p174 = scmp.eq.s32.totalorder %s28, 0
      %p175 = por %p173, %p174
      %p176 = scmp.ne.s32.totalorder %s164, %s165
      %p177 = scmp.eq.s32.totalorder %s29, 1
      %p178 = por %p176, %p177
      %p180 = scmp.ne.s32.totalorder %s165, %s179
      %p181 = scmp.eq.s32.totalorder %s29, 0
      %p182 = por %p180, %p181
      %s184 = sadd.s32 %s183, 1
      %p187 = scmp.eq.s32.totalorder %s23, 1
      %p188 = scmp.ne.s32.totalorder %s183, %s185
      %p189 = scmp.eq.s32.totalorder %s23, 0
      %p190 = por %p188, %p189
      %p191 = scmp.ne.s32.totalorder %s183, %s185
      %p192 = scmp.eq.s32.totalorder %s28, 1
      %p193 = por %p191, %p192
      %p194 = scmp.ne.s32.totalorder %s185, %s186
      %p195 = scmp.eq.s32.totalorder %s28, 0
      %p196 = por %p194, %p195
      %p197 = scmp.ne.s32.totalorder %s185, %s186
      %p198 = scmp.eq.s32.totalorder %s29, 1
      %p199 = por %p197, %p198
      %p201 = scmp.ne.s32.totalorder %s186, %s200
      %p202 = scmp.eq.s32.totalorder %s29, 0
      %p203 = por %p201, %p202
      %s205 = sadd.s32 %s204, 1
      %p208 = scmp.eq.s32.totalorder %s23, 1
      %p209 = scmp.ne.s32.totalorder %s204, %s206
      %p210 = scmp.eq.s32.totalorder %s23, 0
      %p211 = por %p209, %p210
      %p212 = scmp.ne.s32.totalorder %s204, %s206
      %p213 = scmp.eq.s32.totalorder %s28, 1
      %p214 = por %p212, %p213
      %p215 = scmp.ne.s32.totalorder %s206, %s207
      %p216 = scmp.eq.s32.totalorder %s28, 0
      %p217 = por %p215, %p216
      %p218 = scmp.ne.s32.totalorder %s206, %s207
      %p219 = scmp.eq.s32.totalorder %s29, 1
      %p220 = por %p218, %p219
      %p222 = scmp.ne.s32.totalorder %s207, %s221
      %p223 = scmp.eq.s32.totalorder %s29, 0
      %p224 = por %p222, %p223
      %s226 = sadd.s32 %s225, 1
      %p229 = scmp.eq.s32.totalorder %s23, 1
      %p230 = scmp.ne.s32.totalorder %s225, %s227
      %p231 = scmp.eq.s32.totalorder %s23, 0
      %p232 = por %p230, %p231
      %p233 = scmp.ne.s32.totalorder %s225, %s227
      %p234 = scmp.eq.s32.totalorder %s28, 1
      %p235 = por %p233, %p234
      %p236 = scmp.ne.s32.totalorder %s227, %s228
      %p237 = scmp.eq.s32.totalorder %s28, 0
      %p238 = por %p236, %p237
      %p239 = scmp.ne.s32.totalorder %s227, %s228
      %p240 = scmp.eq.s32.totalorder %s29, 1
      %p241 = por %p239, %p240
      %p243 = scmp.ne.s32.totalorder %s228, %s242
      %p244 = scmp.eq.s32.totalorder %s29, 0
      %p245 = por %p243, %p244
      %s247 = sadd.s32 %s246, 1
      %p250 = scmp.eq.s32.totalorder %s23, 1
      %p251 = scmp.ne.s32.totalorder %s246, %s248
      %p252 = scmp.eq.s32.totalorder %s23, 0
      %p253 = por %p251, %p252
      %p254 = scmp.ne.s32.totalorder %s246, %s248
      %p255 = scmp.eq.s32.totalorder %s28, 1
      %p256 = por %p254, %p255
      %p257 = scmp.ne.s32.totalorder %s248, %s249
      %p258 = scmp.eq.s32.totalorder %s28, 0
      %p259 = por %p257, %p258
      %p260 = scmp.ne.s32.totalorder %s248, %s249
      %p261 = scmp.eq.s32.totalorder %s29, 1
      %p262 = por %p260, %p261
      %p264 = scmp.ne.s32.totalorder %s249, %s263
      %p265 = scmp.eq.s32.totalorder %s29, 0
      %p266 = por %p264, %p265
      %s268 = sadd.s32 %s267, 1
      %p271 = scmp.eq.s32.totalorder %s23, 1
      %p272 = scmp.ne.s32.totalorder %s267, %s269
      %p273 = scmp.eq.s32.totalorder %s23, 0
      %p274 = por %p272, %p273
      %p275 = scmp.ne.s32.totalorder %s267, %s269
      %p276 = scmp.eq.s32.totalorder %s28, 1
      %p277 = por %p275, %p276
      %p278 = scmp.ne.s32.totalorder %s269, %s270
      %p279 = scmp.eq.s32.totalorder %s28, 0
      %p280 = por %p278, %p279
      %p281 = scmp.ne.s32.totalorder %s269, %s270
      %p282 = scmp.eq.s32.totalorder %s29, 1
      %p283 = por %p281, %p282
      %p285 = scmp.ne.s32.totalorder %s270, %s284
      %p286 = scmp.eq.s32.totalorder %s29, 0
      %p287 = por %p285, %p286
      %s289 = sadd.s32 %s288, 1
      %p292 = scmp.eq.s32.totalorder %s23, 1
      %p293 = scmp.ne.s32.totalorder %s288, %s290
      %p294 = scmp.eq.s32.totalorder %s23, 0
      %p295 = por %p293, %p294
      %p296 = scmp.ne.s32.totalorder %s288, %s290
      %p297 = scmp.eq.s32.totalorder %s28, 1
      %p298 = por %p296, %p297
      %p299 = scmp.ne.s32.totalorder %s290, %s291
      %p300 = scmp.eq.s32.totalorder %s28, 0
      %p301 = por %p299, %p300
      %p302 = scmp.ne.s32.totalorder %s290, %s291
      %p303 = scmp.eq.s32.totalorder %s29, 1
      %p304 = por %p302, %p303
      %p306 = scmp.ne.s32.totalorder %s291, %s305
      %p307 = scmp.eq.s32.totalorder %s29, 0
      %p308 = por %p306, %p307
      %s310 = sadd.s32 %s309, 1
      %p313 = scmp.eq.s32.totalorder %s23, 1
      %p314 = scmp.ne.s32.totalorder %s309, %s311
      %p315 = scmp.eq.s32.totalorder %s23, 0
      %p316 = por %p314, %p315
      %p317 = scmp.ne.s32.totalorder %s309, %s311
      %p318 = scmp.eq.s32.totalorder %s28, 1
      %p319 = por %p317, %p318
      %p320 = scmp.ne.s32.totalorder %s311, %s312
      %p321 = scmp.eq.s32.totalorder %s28, 0
      %p322 = por %p320, %p321
      %p323 = scmp.ne.s32.totalorder %s311, %s312
      %p324 = scmp.eq.s32.totalorder %s29, 1
      %p325 = por %p323, %p324
      %p327 = scmp.ne.s32.totalorder %s312, %s326
      %p328 = scmp.eq.s32.totalorder %s29, 0
      %p329 = por %p327, %p328
      %s330 = ssub.s32 %s23, %s30
      %p331 = scmp.eq.s32.totalorder %s330, 0
      %s333 = sadd.s32 %s332, 1
      %s334 = scalar_select %p331, %s332, %s333
      %p337 = pneg %p331
      %p338 = scmp.eq.s32.totalorder %s23, 1
      %p339 = por %p337, %p338
      %p340 = scmp.ne.s32.totalorder %s332, %s335
      %p341 = scmp.eq.s32.totalorder %s23, 0
      %p342 = por %p340, %p341
      %p343 = scmp.ne.s32.totalorder %s332, %s335
      %p344 = scmp.eq.s32.totalorder %s28, 1
      %p345 = por %p343, %p344
      %p346 = scmp.ne.s32.totalorder %s335, %s336
      %p347 = scmp.eq.s32.totalorder %s28, 0
      %p348 = por %p346, %p347
      %p349 = scmp.ne.s32.totalorder %s335, %s336
      %p350 = scmp.eq.s32.totalorder %s29, 1
      %p351 = por %p349, %p350
      %p353 = scmp.ne.s32.totalorder %s336, %s352
      %p354 = scmp.eq.s32.totalorder %s29, 0
      %p355 = por %p353, %p354
      %p356 = scmp.le.s32.totalorder 1, %s23
      %p357 = scmp.lt.s32.totalorder %s23, 3
      %p358 = pnand %p356, %p357
      %p359 = pneg %p358
      // Predicated region
      $region9: #{rp_encoder_forward.1} parent=5 // pred_check
        _
      $region10: #{rp_encoder_forward.1} parent=5 // pred_check_branch
        %361 = sbr.rel (%p358) target = $region12
      $region11: #{rp_encoder_forward.1} parent=5 // pred_region
        %s362 = ssub.s32 %s23, 1
        // Predicated region
        $region13: #{rp_encoder_forward.1} parent=11 // pred_check
          %p363 = pneg %p70
        $region14: #{rp_encoder_forward.1} parent=11 // pred_check_branch
          %365 = sbr.rel (%p363) target = $region16
        $region15: #{rp_encoder_forward.1} parent=11 // pred_region
          _
        $region16: #{rp_encoder_forward.1} parent=11 // pred_fallthru
          _
        // Predicated region
        $region17: #{rp_encoder_forward.1} parent=11 // pred_check
          %p366 = pneg %p91
        $region18: #{rp_encoder_forward.1} parent=11 // pred_check_branch
          %368 = sbr.rel (%p366) target = $region20
        $region19: #{rp_encoder_forward.1} parent=11 // pred_region
          _
        $region20: #{rp_encoder_forward.1} parent=11 // pred_fallthru
          _
        // Predicated region
        $region21: #{rp_encoder_forward.1} parent=11 // pred_check
          %p369 = pneg %p112
        $region22: #{rp_encoder_forward.1} parent=11 // pred_check_branch
          %371 = sbr.rel (%p369) target = $region24
        $region23: #{rp_encoder_forward.1} parent=11 // pred_region
          _
        $region24: #{rp_encoder_forward.1} parent=11 // pred_fallthru
          _
        // Predicated region
        $region25: #{rp_encoder_forward.1} parent=11 // pred_check
          %p372 = pneg %p133
        $region26: #{rp_encoder_forward.1} parent=11 // pred_check_branch
          %374 = sbr.rel (%p372) target = $region28
        $region27: #{rp_encoder_forward.1} parent=11 // pred_region
          _
        $region28: #{rp_encoder_forward.1} parent=11 // pred_fallthru
          _
        // Predicated region
        $region29: #{rp_encoder_forward.1} parent=11 // pred_check
          %p375 = pneg %p154
        $region30: #{rp_encoder_forward.1} parent=11 // pred_check_branch
          %377 = sbr.rel (%p375) target = $region32
        $region31: #{rp_encoder_forward.1} parent=11 // pred_region
          _
        $region32: #{rp_encoder_forward.1} parent=11 // pred_fallthru
          _
        // Predicated region
        $region33: #{rp_encoder_forward.1} parent=11 // pred_check
          %p378 = pneg %p175
        $region34: #{rp_encoder_forward.1} parent=11 // pred_check_branch
          %380 = sbr.rel (%p378) target = $region36
        $region35: #{rp_encoder_forward.1} parent=11 // pred_region
          _
        $region36: #{rp_encoder_forward.1} parent=11 // pred_fallthru
          _
        // Predicated region
        $region37: #{rp_encoder_forward.1} parent=11 // pred_check
          %p381 = pneg %p196
        $region38: #{rp_encoder_forward.1} parent=11 // pred_check_branch
          %383 = sbr.rel (%p381) target = $region40
        $region39: #{rp_encoder_forward.1} parent=11 // pred_region
          _
        $region40: #{rp_encoder_forward.1} parent=11 // pred_fallthru
          _
        // Predicated region
        $region41: #{rp_encoder_forward.1} parent=11 // pred_check
          %p384 = pneg %p217
        $region42: #{rp_encoder_forward.1} parent=11 // pred_check_branch
          %386 = sbr.rel (%p384) target = $region44
        $region43: #{rp_encoder_forward.1} parent=11 // pred_region
          _
        $region44: #{rp_encoder_forward.1} parent=11 // pred_fallthru
          _
        // Predicated region
        $region45: #{rp_encoder_forward.1} parent=11 // pred_check
          %p387 = pneg %p238
        $region46: #{rp_encoder_forward.1} parent=11 // pred_check_branch
          %389 = sbr.rel (%p387) target = $region48
        $region47: #{rp_encoder_forward.1} parent=11 // pred_region
          _
        $region48: #{rp_encoder_forward.1} parent=11 // pred_fallthru
          _
        // Predicated region
        $region49: #{rp_encoder_forward.1} parent=11 // pred_check
          %p390 = pneg %p259
        $region50: #{rp_encoder_forward.1} parent=11 // pred_check_branch
          %392 = sbr.rel (%p390) target = $region52
        $region51: #{rp_encoder_forward.1} parent=11 // pred_region
          _
        $region52: #{rp_encoder_forward.1} parent=11 // pred_fallthru
          _
        // Predicated region
        $region53: #{rp_encoder_forward.1} parent=11 // pred_check
          %p393 = pneg %p280
        $region54: #{rp_encoder_forward.1} parent=11 // pred_check_branch
          %395 = sbr.rel (%p393) target = $region56
        $region55: #{rp_encoder_forward.1} parent=11 // pred_region
          _
        $region56: #{rp_encoder_forward.1} parent=11 // pred_fallthru
          _
        // Predicated region
        $region57: #{rp_encoder_forward.1} parent=11 // pred_check
          %p396 = pneg %p301
        $region58: #{rp_encoder_forward.1} parent=11 // pred_check_branch
          %398 = sbr.rel (%p396) target = $region60
        $region59: #{rp_encoder_forward.1} parent=11 // pred_region
          _
        $region60: #{rp_encoder_forward.1} parent=11 // pred_fallthru
          _
        // Predicated region
        $region61: #{rp_encoder_forward.1} parent=11 // pred_check
          %p399 = pneg %p322
        $region62: #{rp_encoder_forward.1} parent=11 // pred_check_branch
          %401 = sbr.rel (%p399) target = $region64
        $region63: #{rp_encoder_forward.1} parent=11 // pred_region
          _
        $region64: #{rp_encoder_forward.1} parent=11 // pred_fallthru
          _
      $region12: #{rp_encoder_forward.1} parent=5 // pred_fallthru
        _
      %p402 = scmp.lt.s32.totalorder %s23, 2
      // Predicated region
      $region65: #{rp_encoder_forward.1} parent=5 // pred_check
        %p403 = pneg %p402
      $region66: #{rp_encoder_forward.1} parent=5 // pred_check_branch
        %405 = sbr.rel (%p403) target = $region68
      $region67: #{rp_encoder_forward.1} parent=5 // pred_region
        // Predicated region
        $region69: #{rp_encoder_forward.1} parent=67 // pred_check
          %p406 = pneg %p43
        $region70: #{rp_encoder_forward.1} parent=67 // pred_check_branch
          %408 = sbr.rel (%p406) target = $region72
        $region71: #{rp_encoder_forward.1} parent=67 // pred_region
          %p409 = scmp.lt.s32.totalorder %s23, 1
          %s410 = scalar_select %p409, %s23, 1
          %s411 = smul.addr %s410, 4
          %s412 = smul.addr %s411, 4
          %s413 = scalar_lea.vmem %s0, %s412
        $region72: #{rp_encoder_forward.1} parent=67 // pred_fallthru
          _
      $region68: #{rp_encoder_forward.1} parent=5 // pred_fallthru
        _
      %p414 = scmp.le.s32.totalorder 1, %s23
      %p415 = scmp.lt.s32.totalorder %s23, 3
      %p416 = pnand %p414, %p415
      %p417 = pneg %p416
      // Predicated region
      $region73: #{rp_encoder_forward.1} parent=5 // pred_check
        _
      $region74: #{rp_encoder_forward.1} parent=5 // pred_check_branch
        %419 = sbr.rel (%p416) target = $region76
      $region75: #{rp_encoder_forward.1} parent=5 // pred_region
        %s420 = ssub.s32 %s23, 1
        %p421 = scmp.lt.s32.totalorder %s28, 1
        %s422 = scalar_select %p421, %s28, 1
        %s423 = smul.addr %s422, 4
        %s424 = smul.addr %s423, 4
        %s425 = scalar_lea.vmem %s0, %s424
        %p426 = pneg %p49
        %p427 = pneg %p46
        %p428 = pneg %p70
        %p429 = pneg %p67
        %p430 = pneg %p91
        %p431 = pneg %p88
        %p432 = pneg %p112
        %p433 = pneg %p109
        %p434 = pneg %p133
        %p435 = pneg %p130
        %p436 = pneg %p154
        %p437 = pneg %p151
        %p438 = pneg %p175
        %p439 = pneg %p172
        %p440 = pneg %p196
        %p441 = pneg %p193
        %p442 = pneg %p217
        %p443 = pneg %p214
        %p444 = pneg %p238
        %p445 = pneg %p235
        %p446 = pneg %p259
        %p447 = pneg %p256
        %p448 = pneg %p280
        %p449 = pneg %p277
        %p450 = pneg %p301
        %p451 = pneg %p298
        %p452 = pneg %p322
        %p453 = pneg %p319
        %p454 = pneg %p348
        %p455 = pneg %p345
        %s456 = sand.u32 %s335, 1
        %s457 = scalar_lea.sflag [#allocation3], %s456
        %s458 = sand.u32 %s335, 1
        %s459 = smul.addr %s458, 2
        %s460 = scalar_lea.vmem [#allocation2], %s459
        %p461 = scmp.lt.s32.totalorder %s28, 1
        %s462 = scalar_select %p461, %s28, 1
        %s463 = smul.addr %s462, 4
        %s464 = smul.addr %s463, 4
        %s465 = scalar_lea.vmem %s0, %s464
        %v467 = vld [vmem:[%s465] sm:$0xff]
        %v468 = vld [vmem:[%s1] sm:$0xff]
        %v469 = vld [vmem:[%s1 + $0x8] sm:$0xff]
        %v470 = vld [vmem:[%s1 + $0x10] sm:$0xff]
        %v471 = vld [vmem:[%s1 + $0x18] sm:$0xff]
        %v472 = vld [vmem:[%s1 + $0x20] sm:$0xff]
        %v473 = vld [vmem:[%s1 + $0x28] sm:$0xff]
        %v474 = vld [vmem:[%s1 + $0x30] sm:$0xff]
        %v475 = vld [vmem:[%s1 + $0x38] sm:$0xff]
        %v476 = vld [vmem:[%s1 + $0x40] sm:$0xff]
        %v477 = vld [vmem:[%s1 + $0x48] sm:$0xff]
        %v478 = vld [vmem:[%s1 + $0x50] sm:$0xff]
        %v479 = vld [vmem:[%s1 + $0x58] sm:$0xff]
        %v480 = vld [vmem:[%s1 + $0x60] sm:$0xff]
        %v481 = vld [vmem:[%s1 + $0x68] sm:$0xff]
        %v482 = vld [vmem:[%s1 + $0x70] sm:$0xff]
        %v483 = vld [vmem:[%s1 + $0x78] sm:$0xff]
        %v484 = vld [vmem:[%s1 + $0x80] sm:$0xff]
        %v485 = vld [vmem:[%s1 + $0x88] sm:$0xff]
        %v486 = vld [vmem:[%s1 + $0x90] sm:$0xff]
        %v487 = vld [vmem:[%s1 + $0x98] sm:$0xff]
        %v488 = vld [vmem:[%s1 + $0xa0] sm:$0xff]
        %v489 = vld [vmem:[%s1 + $0xa8] sm:$0xff]
        %v490 = vld [vmem:[%s1 + $0xb0] sm:$0xff]
        %v491 = vld [vmem:[%s1 + $0xb8] sm:$0xff]
        %v492 = vld [vmem:[%s1 + $0xc0] sm:$0xff]
        %v493 = vld [vmem:[%s1 + $0xc8] sm:$0xff]
        %v494 = vld [vmem:[%s1 + $0xd0] sm:$0xff]
        %v495 = vld [vmem:[%s1 + $0xd8] sm:$0xff]
        %v496 = vld [vmem:[%s1 + $0xe0] sm:$0xff]
        %v497 = vld [vmem:[%s1 + $0xe8] sm:$0xff]
        %v498 = vld [vmem:[%s1 + $0xf0] sm:$0xff]
        %v499 = vld [vmem:[%s1 + $0xf8] sm:$0xff]
        %v500 = vld [vmem:[%s1 + $0x100] sm:$0xff]
        %v501 = vld [vmem:[%s1 + $0x108] sm:$0xff]
        %v502 = vld [vmem:[%s1 + $0x110] sm:$0xff]
        %v503 = vld [vmem:[%s1 + $0x118] sm:$0xff]
        %v505 = vunpack.c.l.b16 %v467
        %v506 = vunpack.c.h.b16 %v467
        %v507 = vpack.c.b16 %v505, %v505
        %v508 = vpack.c.b16 %v506, %v506
        %v546 = vunpack.c.l.b16 %v468
        %v547 = vunpack.c.h.b16 %v468
        %v548 = vunpack.c.l.b16 %v469
        %v549 = vunpack.c.h.b16 %v469
        %v550 = vunpack.c.l.b16 %v470
        %v551 = vunpack.c.h.b16 %v470
        %v552 = vunpack.c.l.b16 %v471
        %v553 = vunpack.c.h.b16 %v471
        %v554 = vunpack.c.l.b16 %v472
        %v555 = vunpack.c.h.b16 %v472
        %v556 = vunpack.c.l.b16 %v473
        %v557 = vunpack.c.h.b16 %v473
        %v558 = vunpack.c.l.b16 %v474
        %v559 = vunpack.c.h.b16 %v474
        %v560 = vunpack.c.l.b16 %v475
        %v561 = vunpack.c.h.b16 %v475
        %v562 = vunpack.c.l.b16 %v476
        %v563 = vunpack.c.h.b16 %v476
        %v564 = vunpack.c.l.b16 %v477
        %v565 = vunpack.c.h.b16 %v477
        %v566 = vunpack.c.l.b16 %v478
        %v567 = vunpack.c.h.b16 %v478
        %v568 = vunpack.c.l.b16 %v479
        %v569 = vunpack.c.h.b16 %v479
        %v570 = vunpack.c.l.b16 %v480
        %v571 = vunpack.c.h.b16 %v480
        %v572 = vunpack.c.l.b16 %v481
        %v573 = vunpack.c.h.b16 %v481
        %v574 = vunpack.c.l.b16 %v482
        %v575 = vunpack.c.h.b16 %v482
        %v576 = vunpack.c.l.b16 %v483
        %v577 = vunpack.c.h.b16 %v483
        %v578 = vunpack.c.l.b16 %v484
        %v579 = vunpack.c.h.b16 %v484
        %v580 = vunpack.c.l.b16 %v485
        %v581 = vunpack.c.h.b16 %v485
        %v582 = vunpack.c.l.b16 %v486
        %v583 = vunpack.c.h.b16 %v486
        %v584 = vunpack.c.l.b16 %v487
        %v585 = vunpack.c.h.b16 %v487
        %v586 = vunpack.c.l.b16 %v488
        %v587 = vunpack.c.h.b16 %v488
        %v588 = vunpack.c.l.b16 %v489
        %v589 = vunpack.c.h.b16 %v489
        %v590 = vunpack.c.l.b16 %v490
        %v591 = vunpack.c.h.b16 %v490
        %v592 = vunpack.c.l.b16 %v491
        %v593 = vunpack.c.h.b16 %v491
        %v594 = vunpack.c.l.b16 %v492
        %v595 = vunpack.c.h.b16 %v492
        %v596 = vunpack.c.l.b16 %v493
        %v597 = vunpack.c.h.b16 %v493
        %v598 = vunpack.c.l.b16 %v494
        %v599 = vunpack.c.h.b16 %v494
        %v600 = vunpack.c.l.b16 %v495
        %v601 = vunpack.c.h.b16 %v495
        %v602 = vunpack.c.l.b16 %v496
        %v603 = vunpack.c.h.b16 %v496
        %v604 = vunpack.c.l.b16 %v497
        %v605 = vunpack.c.h.b16 %v497
        %v606 = vunpack.c.l.b16 %v498
        %v607 = vunpack.c.h.b16 %v498
        %v608 = vunpack.c.l.b16 %v499
        %v609 = vunpack.c.h.b16 %v499
        %v610 = vunpack.c.l.b16 %v500
        %v611 = vunpack.c.h.b16 %v500
        %v612 = vunpack.c.l.b16 %v501
        %v613 = vunpack.c.h.b16 %v501
        %v614 = vunpack.c.l.b16 %v502
        %v615 = vunpack.c.h.b16 %v502
        %v616 = vunpack.c.l.b16 %v503
        %v617 = vunpack.c.h.b16 %v503
        %v618 = vpack.c.b16 %v550, %v546
        %v619 = vpack.c.b16 %v551, %v547
        %v620 = vpack.c.b16 %v552, %v548
        %v621 = vpack.c.b16 %v553, %v549
        %v622 = vpack.c.b16 %v558, %v554
        %v623 = vpack.c.b16 %v559, %v555
        %v624 = vpack.c.b16 %v560, %v556
        %v625 = vpack.c.b16 %v561, %v557
        %v626 = vpack.c.b16 %v566, %v562
        %v627 = vpack.c.b16 %v567, %v563
        %v628 = vpack.c.b16 %v568, %v564
        %v629 = vpack.c.b16 %v569, %v565
        %v630 = vpack.c.b16 %v574, %v570
        %v631 = vpack.c.b16 %v575, %v571
        %v632 = vpack.c.b16 %v576, %v572
        %v633 = vpack.c.b16 %v577, %v573
        %v634 = vpack.c.b16 %v582, %v578
        %v635 = vpack.c.b16 %v583, %v579
        %v636 = vpack.c.b16 %v584, %v580
        %v637 = vpack.c.b16 %v585, %v581
        %v638 = vpack.c.b16 %v590, %v586
        %v639 = vpack.c.b16 %v591, %v587
        %v640 = vpack.c.b16 %v592, %v588
        %v641 = vpack.c.b16 %v593, %v589
        %v642 = vpack.c.b16 %v598, %v594
        %v643 = vpack.c.b16 %v599, %v595
        %v644 = vpack.c.b16 %v600, %v596
        %v645 = vpack.c.b16 %v601, %v597
        %v646 = vpack.c.b16 %v606, %v602
        %v647 = vpack.c.b16 %v607, %v603
        %v648 = vpack.c.b16 %v608, %v604
        %v649 = vpack.c.b16 %v609, %v605
        %v650 = vpack.c.b16 %v614, %v610
        %v651 = vpack.c.b16 %v615, %v611
        %v652 = vpack.c.b16 %v616, %v612
        %v653 = vpack.c.b16 %v617, %v613
        %vm690 = vcmask 130048
        %v692 = vsel %vm690, %v508, 0
        %694 = vmatpush.bf16.msra.mxu0 %v646
        %695 = vmatpush.bf16.msra.mxu0 %v642
        %696 = vmatpush.bf16.msra.mxu0 %v638
        %697 = vmatpush.bf16.msra.mxu0 %v634
        %698 = vmatpush.bf16.msra.mxu0 %v630
        %699 = vmatpush.bf16.msra.mxu0 %v626
        %700 = vmatpush.bf16.msra.mxu0 %v622
        %701 = vmatpush.bf16.msra.mxu0 %v618
        %702 = vmatmul.bf16.gmra.mxu0 %v507
        %v703 = vpop.f32.mrf.mxu0
        %v704 = vadd.f32 0.0, %v703
        %v705 = vpop.f32.mrf.mxu0
        %706 = vdwg.mxu0
        %707 = vmatpush.bf16.msra.mxu0 0
        %708 = vmatpush.bf16.msra.mxu0 0
        %709 = vmatpush.bf16.msra.mxu0 0
        %710 = vmatpush.bf16.msra.mxu0 0
        %711 = vmatpush.bf16.msra.mxu0 0
        %712 = vmatpush.bf16.msra.mxu0 0
        %713 = vmatpush.bf16.msra.mxu0 0
        %714 = vmatpush.bf16.msra.mxu0 %v650
        %715 = vmatmul.bf16.gmra.mxu0 %v692
        %v716 = vpop.f32.mrf.mxu0
        %v717 = vadd.f32 %v704, %v716
        %v718 = vpop.f32.mrf.mxu0
        %719 = vdwg.mxu0
        %720 = vmatpush.bf16.msra.mxu0 %v647
        %721 = vmatpush.bf16.msra.mxu0 %v643
        %722 = vmatpush.bf16.msra.mxu0 %v639
        %723 = vmatpush.bf16.msra.mxu0 %v635
        %724 = vmatpush.bf16.msra.mxu0 %v631
        %725 = vmatpush.bf16.msra.mxu0 %v627
        %726 = vmatpush.bf16.msra.mxu0 %v623
        %727 = vmatpush.bf16.msra.mxu0 %v619
        %728 = vmatmul.bf16.gmra.mxu0 %v507
        %v729 = vpop.f32.mrf.mxu0
        %v730 = vadd.f32 0.0, %v729
        %v731 = vpop.f32.mrf.mxu0
        %732 = vdwg.mxu0
        %733 = vmatpush.bf16.msra.mxu0 0
        %734 = vmatpush.bf16.msra.mxu0 0
        %735 = vmatpush.bf16.msra.mxu0 0
        %736 = vmatpush.bf16.msra.mxu0 0
        %737 = vmatpush.bf16.msra.mxu0 0
        %738 = vmatpush.bf16.msra.mxu0 0
        %739 = vmatpush.bf16.msra.mxu0 0
        %740 = vmatpush.bf16.msra.mxu0 %v651
        %741 = vmatmul.bf16.gmra.mxu0 %v692
        %v742 = vpop.f32.mrf.mxu0
        %v743 = vadd.f32 %v730, %v742
        %v744 = vpop.f32.mrf.mxu0
        %745 = vdwg.mxu0
        %746 = vmatpush.bf16.msra.mxu0 %v648
        %747 = vmatpush.bf16.msra.mxu0 %v644
        %748 = vmatpush.bf16.msra.mxu0 %v640
        %749 = vmatpush.bf16.msra.mxu0 %v636
        %750 = vmatpush.bf16.msra.mxu0 %v632
        %751 = vmatpush.bf16.msra.mxu0 %v628
        %752 = vmatpush.bf16.msra.mxu0 %v624
        %753 = vmatpush.bf16.msra.mxu0 %v620
        %754 = vmatmul.bf16.gmra.mxu0 %v507
        %v755 = vpop.f32.mrf.mxu0
        %v756 = vadd.f32 0.0, %v755
        %v757 = vpop.f32.mrf.mxu0
        %758 = vdwg.mxu0
        %759 = vmatpush.bf16.msra.mxu0 0
        %760 = vmatpush.bf16.msra.mxu0 0
        %761 = vmatpush.bf16.msra.mxu0 0
        %762 = vmatpush.bf16.msra.mxu0 0
        %763 = vmatpush.bf16.msra.mxu0 0
        %764 = vmatpush.bf16.msra.mxu0 0
        %765 = vmatpush.bf16.msra.mxu0 0
        %766 = vmatpush.bf16.msra.mxu0 %v652
        %767 = vmatmul.bf16.gmra.mxu0 %v692
        %v768 = vpop.f32.mrf.mxu0
        %v769 = vadd.f32 %v756, %v768
        %v770 = vpop.f32.mrf.mxu0
        %771 = vdwg.mxu0
        %772 = vmatpush.bf16.msra.mxu0 %v649
        %773 = vmatpush.bf16.msra.mxu0 %v645
        %774 = vmatpush.bf16.msra.mxu0 %v641
        %775 = vmatpush.bf16.msra.mxu0 %v637
        %776 = vmatpush.bf16.msra.mxu0 %v633
        %777 = vmatpush.bf16.msra.mxu0 %v629
        %778 = vmatpush.bf16.msra.mxu0 %v625
        %779 = vmatpush.bf16.msra.mxu0 %v621
        %780 = vmatmul.bf16.gmra.mxu0 %v507
        %v781 = vpop.f32.mrf.mxu0
        %v782 = vadd.f32 0.0, %v781
        %v783 = vpop.f32.mrf.mxu0
        %784 = vdwg.mxu0
        %785 = vmatpush.bf16.msra.mxu0 0
        %786 = vmatpush.bf16.msra.mxu0 0
        %787 = vmatpush.bf16.msra.mxu0 0
        %788 = vmatpush.bf16.msra.mxu0 0
        %789 = vmatpush.bf16.msra.mxu0 0
        %790 = vmatpush.bf16.msra.mxu0 0
        %791 = vmatpush.bf16.msra.mxu0 0
        %792 = vmatpush.bf16.msra.mxu0 %v653
        %793 = vmatmul.bf16.gmra.mxu0 %v692
        %v794 = vpop.f32.mrf.mxu0
        %v795 = vadd.f32 %v782, %v794
        %v796 = vpop.f32.mrf.mxu0
        %797 = vdwg.mxu0
        %s798 = scalar_lea.vmem %s465, 8
        %v799 = vld [vmem:[%s798] sm:$0xff]
        %v801 = vunpack.c.l.b16 %v799
        %v802 = vunpack.c.h.b16 %v799
        %v803 = vpack.c.b16 %v801, %v801
        %v804 = vpack.c.b16 %v802, %v802
        %v807 = vsel %vm690, %v804, 0
        %809 = vmatpush.bf16.msra.mxu0 %v646
        %810 = vmatpush.bf16.msra.mxu0 %v642
        %811 = vmatpush.bf16.msra.mxu0 %v638
        %812 = vmatpush.bf16.msra.mxu0 %v634
        %813 = vmatpush.bf16.msra.mxu0 %v630
        %814 = vmatpush.bf16.msra.mxu0 %v626
        %815 = vmatpush.bf16.msra.mxu0 %v622
        %816 = vmatpush.bf16.msra.mxu0 %v618
        %817 = vmatmul.bf16.gmra.mxu0 %v803
        %v818 = vpop.f32.mrf.mxu0
        %v819 = vadd.f32 0.0, %v818
        %v820 = vpop.f32.mrf.mxu0
        %821 = vdwg.mxu0
        %822 = vmatpush.bf16.msra.mxu0 0
        %823 = vmatpush.bf16.msra.mxu0 0
        %824 = vmatpush.bf16.msra.mxu0 0
        %825 = vmatpush.bf16.msra.mxu0 0
        %826 = vmatpush.bf16.msra.mxu0 0
        %827 = vmatpush.bf16.msra.mxu0 0
        %828 = vmatpush.bf16.msra.mxu0 0
        %829 = vmatpush.bf16.msra.mxu0 %v650
        %830 = vmatmul.bf16.gmra.mxu0 %v807
        %v831 = vpop.f32.mrf.mxu0
        %v832 = vadd.f32 %v819, %v831
        %v833 = vpop.f32.mrf.mxu0
        %834 = vdwg.mxu0
        %835 = vmatpush.bf16.msra.mxu0 %v647
        %836 = vmatpush.bf16.msra.mxu0 %v643
        %837 = vmatpush.bf16.msra.mxu0 %v639
        %838 = vmatpush.bf16.msra.mxu0 %v635
        %839 = vmatpush.bf16.msra.mxu0 %v631
        %840 = vmatpush.bf16.msra.mxu0 %v627
        %841 = vmatpush.bf16.msra.mxu0 %v623
        %842 = vmatpush.bf16.msra.mxu0 %v619
        %843 = vmatmul.bf16.gmra.mxu0 %v803
        %v844 = vpop.f32.mrf.mxu0
        %v845 = vadd.f32 0.0, %v844
        %v846 = vpop.f32.mrf.mxu0
        %847 = vdwg.mxu0
        %848 = vmatpush.bf16.msra.mxu0 0
        %849 = vmatpush.bf16.msra.mxu0 0
        %850 = vmatpush.bf16.msra.mxu0 0
        %851 = vmatpush.bf16.msra.mxu0 0
        %852 = vmatpush.bf16.msra.mxu0 0
        %853 = vmatpush.bf16.msra.mxu0 0
        %854 = vmatpush.bf16.msra.mxu0 0
        %855 = vmatpush.bf16.msra.mxu0 %v651
        %856 = vmatmul.bf16.gmra.mxu0 %v807
        %v857 = vpop.f32.mrf.mxu0
        %v858 = vadd.f32 %v845, %v857
        %v859 = vpop.f32.mrf.mxu0
        %860 = vdwg.mxu0
        %861 = vmatpush.bf16.msra.mxu0 %v648
        %862 = vmatpush.bf16.msra.mxu0 %v644
        %863 = vmatpush.bf16.msra.mxu0 %v640
        %864 = vmatpush.bf16.msra.mxu0 %v636
        %865 = vmatpush.bf16.msra.mxu0 %v632
        %866 = vmatpush.bf16.msra.mxu0 %v628
        %867 = vmatpush.bf16.msra.mxu0 %v624
        %868 = vmatpush.bf16.msra.mxu0 %v620
        %869 = vmatmul.bf16.gmra.mxu0 %v803
        %v870 = vpop.f32.mrf.mxu0
        %v871 = vadd.f32 0.0, %v870
        %v872 = vpop.f32.mrf.mxu0
        %873 = vdwg.mxu0
        %874 = vmatpush.bf16.msra.mxu0 0
        %875 = vmatpush.bf16.msra.mxu0 0
        %876 = vmatpush.bf16.msra.mxu0 0
        %877 = vmatpush.bf16.msra.mxu0 0
        %878 = vmatpush.bf16.msra.mxu0 0
        %879 = vmatpush.bf16.msra.mxu0 0
        %880 = vmatpush.bf16.msra.mxu0 0
        %881 = vmatpush.bf16.msra.mxu0 %v652
        %882 = vmatmul.bf16.gmra.mxu0 %v807
        %v883 = vpop.f32.mrf.mxu0
        %v884 = vadd.f32 %v871, %v883
        %v885 = vpop.f32.mrf.mxu0
        %886 = vdwg.mxu0
        %887 = vmatpush.bf16.msra.mxu0 %v649
        %888 = vmatpush.bf16.msra.mxu0 %v645
        %889 = vmatpush.bf16.msra.mxu0 %v641
        %890 = vmatpush.bf16.msra.mxu0 %v637
        %891 = vmatpush.bf16.msra.mxu0 %v633
        %892 = vmatpush.bf16.msra.mxu0 %v629
        %893 = vmatpush.bf16.msra.mxu0 %v625
        %894 = vmatpush.bf16.msra.mxu0 %v621
        %895 = vmatmul.bf16.gmra.mxu0 %v803
        %v896 = vpop.f32.mrf.mxu0
        %v897 = vadd.f32 0.0, %v896
        %v898 = vpop.f32.mrf.mxu0
        %899 = vdwg.mxu0
        %900 = vmatpush.bf16.msra.mxu0 0
        %901 = vmatpush.bf16.msra.mxu0 0
        %902 = vmatpush.bf16.msra.mxu0 0
        %903 = vmatpush.bf16.msra.mxu0 0
        %904 = vmatpush.bf16.msra.mxu0 0
        %905 = vmatpush.bf16.msra.mxu0 0
        %906 = vmatpush.bf16.msra.mxu0 0
        %907 = vmatpush.bf16.msra.mxu0 %v653
        %908 = vmatmul.bf16.gmra.mxu0 %v807
        %v909 = vpop.f32.mrf.mxu0
        %v910 = vadd.f32 %v897, %v909
        %v911 = vpop.f32.mrf.mxu0
        %912 = vdwg.mxu0
        %917 = vrot.lane.b32.xlu0 %v832, 122
        %v918 = vpop.permute.xlu0 %917
        %919 = vrot.lane.b32.xlu0 %v858, 122
        %v920 = vpop.permute.xlu0 %919
        %921 = vrot.lane.b32.xlu0 %v884, 122
        %v922 = vpop.permute.xlu0 %921
        %923 = vrot.lane.b32.xlu0 %v910, 122
        %v924 = vpop.permute.xlu0 %923
        %vm925 = vcmask 998400
        %v926 = vsel %vm925, %v918, %v920
        %v927 = vsel %vm925, %v920, %v922
        %v928 = vsel %vm925, %v922, %v924
        %v933 = vsel %vm925, %v795, %v918
        %938 = vrot.lane.b32.xlu0 %v717, 127
        %v939 = vpop.permute.xlu0 %938
        %940 = vrot.lane.b32.xlu0 %v743, 127
        %v941 = vpop.permute.xlu0 %940
        %942 = vrot.lane.b32.xlu0 %v769, 127
        %v943 = vpop.permute.xlu0 %942
        %944 = vrot.lane.b32.xlu0 %v933, 127
        %v945 = vpop.permute.xlu0 %944
        %946 = vrot.lane.b32.xlu0 %v926, 127
        %v947 = vpop.permute.xlu0 %946
        %948 = vrot.lane.b32.xlu0 %v927, 127
        %v949 = vpop.permute.xlu0 %948
        %950 = vrot.lane.b32.xlu0 %v928, 127
        %v951 = vpop.permute.xlu0 %950
        %vm952 = vcmask 1039360
        %v953 = vsel %vm952, %v939, %v941
        %v954 = vsel %vm952, %v941, %v943
        %v955 = vsel %vm952, %v943, %v945
        %v956 = vsel %vm952, %v945, %v947
        %v957 = vsel %vm952, %v947, %v949
        %v958 = vsel %vm952, %v949, %v951
        %966 = vrot.lane.b32.xlu0 %v717, 126
        %v967 = vpop.permute.xlu0 %966
        %968 = vrot.lane.b32.xlu0 %v743, 126
        %v969 = vpop.permute.xlu0 %968
        %970 = vrot.lane.b32.xlu0 %v769, 126
        %v971 = vpop.permute.xlu0 %970
        %972 = vrot.lane.b32.xlu0 %v933, 126
        %v973 = vpop.permute.xlu0 %972
        %974 = vrot.lane.b32.xlu0 %v926, 126
        %v975 = vpop.permute.xlu0 %974
        %976 = vrot.lane.b32.xlu0 %v927, 126
        %v977 = vpop.permute.xlu0 %976
        %978 = vrot.lane.b32.xlu0 %v928, 126
        %v979 = vpop.permute.xlu0 %978
        %vm980 = vcmask 1031168
        %v981 = vsel %vm980, %v967, %v969
        %v982 = vsel %vm980, %v969, %v971
        %v983 = vsel %vm980, %v971, %v973
        %v984 = vsel %vm980, %v973, %v975
        %v985 = vsel %vm980, %v975, %v977
        %v986 = vsel %vm980, %v977, %v979
        %994 = vrot.lane.b32.xlu0 %v717, 125
        %v995 = vpop.permute.xlu0 %994
        %996 = vrot.lane.b32.xlu0 %v743, 125
        %v997 = vpop.permute.xlu0 %996
        %998 = vrot.lane.b32.xlu0 %v769, 125
        %v999 = vpop.permute.xlu0 %998
        %1000 = vrot.lane.b32.xlu0 %v933, 125
        %v1001 = vpop.permute.xlu0 %1000
        %1002 = vrot.lane.b32.xlu0 %v926, 125
        %v1003 = vpop.permute.xlu0 %1002
        %1004 = vrot.lane.b32.xlu0 %v927, 125
        %v1005 = vpop.permute.xlu0 %1004
        %1006 = vrot.lane.b32.xlu0 %v928, 125
        %v1007 = vpop.permute.xlu0 %1006
        %vm1008 = vcmask 1022976
        %v1009 = vsel %vm1008, %v995, %v997
        %v1010 = vsel %vm1008, %v997, %v999
        %v1011 = vsel %vm1008, %v999, %v1001
        %v1012 = vsel %vm1008, %v1001, %v1003
        %v1013 = vsel %vm1008, %v1003, %v1005
        %v1014 = vsel %vm1008, %v1005, %v1007
        %1022 = vrot.lane.b32.xlu0 %v717, 124
        %v1023 = vpop.permute.xlu0 %1022
        %1024 = vrot.lane.b32.xlu0 %v743, 124
        %v1025 = vpop.permute.xlu0 %1024
        %1026 = vrot.lane.b32.xlu0 %v769, 124
        %v1027 = vpop.permute.xlu0 %1026
        %1028 = vrot.lane.b32.xlu0 %v933, 124
        %v1029 = vpop.permute.xlu0 %1028
        %1030 = vrot.lane.b32.xlu0 %v926, 124
        %v1031 = vpop.permute.xlu0 %1030
        %1032 = vrot.lane.b32.xlu0 %v927, 124
        %v1033 = vpop.permute.xlu0 %1032
        %1034 = vrot.lane.b32.xlu0 %v928, 124
        %v1035 = vpop.permute.xlu0 %1034
        %vm1036 = vcmask 1014784
        %v1037 = vsel %vm1036, %v1023, %v1025
        %v1038 = vsel %vm1036, %v1025, %v1027
        %v1039 = vsel %vm1036, %v1027, %v1029
        %v1040 = vsel %vm1036, %v1029, %v1031
        %v1041 = vsel %vm1036, %v1031, %v1033
        %v1042 = vsel %vm1036, %v1033, %v1035
        %1050 = vrot.lane.b32.xlu0 %v717, 123
        %v1051 = vpop.permute.xlu0 %1050
        %1052 = vrot.lane.b32.xlu0 %v743, 123
        %v1053 = vpop.permute.xlu0 %1052
        %1054 = vrot.lane.b32.xlu0 %v769, 123
        %v1055 = vpop.permute.xlu0 %1054
        %1056 = vrot.lane.b32.xlu0 %v933, 123
        %v1057 = vpop.permute.xlu0 %1056
        %1058 = vrot.lane.b32.xlu0 %v926, 123
        %v1059 = vpop.permute.xlu0 %1058
        %1060 = vrot.lane.b32.xlu0 %v927, 123
        %v1061 = vpop.permute.xlu0 %1060
        %1062 = vrot.lane.b32.xlu0 %v928, 123
        %v1063 = vpop.permute.xlu0 %1062
        %vm1064 = vcmask 1006592
        %v1065 = vsel %vm1064, %v1051, %v1053
        %v1066 = vsel %vm1064, %v1053, %v1055
        %v1067 = vsel %vm1064, %v1055, %v1057
        %v1068 = vsel %vm1064, %v1057, %v1059
        %v1069 = vsel %vm1064, %v1059, %v1061
        %v1070 = vsel %vm1064, %v1061, %v1063
        %1078 = vrot.lane.b32.xlu0 %v717, 122
        %v1079 = vpop.permute.xlu0 %1078
        %1080 = vrot.lane.b32.xlu0 %v743, 122
        %v1081 = vpop.permute.xlu0 %1080
        %1082 = vrot.lane.b32.xlu0 %v769, 122
        %v1083 = vpop.permute.xlu0 %1082
        %1084 = vrot.lane.b32.xlu0 %v933, 122
        %v1085 = vpop.permute.xlu0 %1084
        %1086 = vrot.lane.b32.xlu0 %v926, 122
        %v1087 = vpop.permute.xlu0 %1086
        %1088 = vrot.lane.b32.xlu0 %v927, 122
        %v1089 = vpop.permute.xlu0 %1088
        %1090 = vrot.lane.b32.xlu0 %v928, 122
        %v1091 = vpop.permute.xlu0 %1090
        %v1092 = vsel %vm925, %v1079, %v1081
        %v1093 = vsel %vm925, %v1081, %v1083
        %v1094 = vsel %vm925, %v1083, %v1085
        %v1095 = vsel %vm925, %v1085, %v1087
        %v1096 = vsel %vm925, %v1087, %v1089
        %v1097 = vsel %vm925, %v1089, %v1091
        %1105 = vrot.lane.b32.xlu0 %v717, 106
        %v1106 = vpop.permute.xlu0 %1105
        %1107 = vrot.lane.b32.xlu0 %v743, 106
        %v1108 = vpop.permute.xlu0 %1107
        %1109 = vrot.lane.b32.xlu0 %v769, 106
        %v1110 = vpop.permute.xlu0 %1109
        %1111 = vrot.lane.b32.xlu0 %v933, 106
        %v1112 = vpop.permute.xlu0 %1111
        %1113 = vrot.lane.b32.xlu0 %v926, 106
        %v1114 = vpop.permute.xlu0 %1113
        %1115 = vrot.lane.b32.xlu0 %v927, 106
        %v1116 = vpop.permute.xlu0 %1115
        %1117 = vrot.lane.b32.xlu0 %v928, 106
        %v1118 = vpop.permute.xlu0 %1117
        %vm1119 = vcmask 867328
        %v1120 = vsel %vm1119, %v1106, %v1108
        %v1121 = vsel %vm1119, %v1108, %v1110
        %v1122 = vsel %vm1119, %v1110, %v1112
        %v1123 = vsel %vm1119, %v1112, %v1114
        %v1124 = vsel %vm1119, %v1114, %v1116
        %v1125 = vsel %vm1119, %v1116, %v1118
        %1133 = vrot.lane.b32.xlu0 %v717, 105
        %v1134 = vpop.permute.xlu0 %1133
        %1135 = vrot.lane.b32.xlu0 %v743, 105
        %v1136 = vpop.permute.xlu0 %1135
        %1137 = vrot.lane.b32.xlu0 %v769, 105
        %v1138 = vpop.permute.xlu0 %1137
        %1139 = vrot.lane.b32.xlu0 %v933, 105
        %v1140 = vpop.permute.xlu0 %1139
        %1141 = vrot.lane.b32.xlu0 %v926, 105
        %v1142 = vpop.permute.xlu0 %1141
        %1143 = vrot.lane.b32.xlu0 %v927, 105
        %v1144 = vpop.permute.xlu0 %1143
        %1145 = vrot.lane.b32.xlu0 %v928, 105
        %v1146 = vpop.permute.xlu0 %1145
        %vm1147 = vcmask 859136
        %v1148 = vsel %vm1147, %v1134, %v1136
        %v1149 = vsel %vm1147, %v1136, %v1138
        %v1150 = vsel %vm1147, %v1138, %v1140
        %v1151 = vsel %vm1147, %v1140, %v1142
        %v1152 = vsel %vm1147, %v1142, %v1144
        %v1153 = vsel %vm1147, %v1144, %v1146
        %1161 = vrot.lane.b32.xlu0 %v717, 104
        %v1162 = vpop.permute.xlu0 %1161
        %1163 = vrot.lane.b32.xlu0 %v743, 104
        %v1164 = vpop.permute.xlu0 %1163
        %1165 = vrot.lane.b32.xlu0 %v769, 104
        %v1166 = vpop.permute.xlu0 %1165
        %1167 = vrot.lane.b32.xlu0 %v933, 104
        %v1168 = vpop.permute.xlu0 %1167
        %1169 = vrot.lane.b32.xlu0 %v926, 104
        %v1170 = vpop.permute.xlu0 %1169
        %1171 = vrot.lane.b32.xlu0 %v927, 104
        %v1172 = vpop.permute.xlu0 %1171
        %1173 = vrot.lane.b32.xlu0 %v928, 104
        %v1174 = vpop.permute.xlu0 %1173
        %vm1175 = vcmask 850944
        %v1176 = vsel %vm1175, %v1162, %v1164
        %v1177 = vsel %vm1175, %v1164, %v1166
        %v1178 = vsel %vm1175, %v1166, %v1168
        %v1179 = vsel %vm1175, %v1168, %v1170
        %v1180 = vsel %vm1175, %v1170, %v1172
        %v1181 = vsel %vm1175, %v1172, %v1174
        %1189 = vrot.lane.b32.xlu0 %v717, 103
        %v1190 = vpop.permute.xlu0 %1189
        %1191 = vrot.lane.b32.xlu0 %v743, 103
        %v1192 = vpop.permute.xlu0 %1191
        %1193 = vrot.lane.b32.xlu0 %v769, 103
        %v1194 = vpop.permute.xlu0 %1193
        %1195 = vrot.lane.b32.xlu0 %v933, 103
        %v1196 = vpop.permute.xlu0 %1195
        %1197 = vrot.lane.b32.xlu0 %v926, 103
        %v1198 = vpop.permute.xlu0 %1197
        %1199 = vrot.lane.b32.xlu0 %v927, 103
        %v1200 = vpop.permute.xlu0 %1199
        %1201 = vrot.lane.b32.xlu0 %v928, 103
        %v1202 = vpop.permute.xlu0 %1201
        %vm1203 = vcmask 842752
        %v1204 = vsel %vm1203, %v1190, %v1192
        %v1205 = vsel %vm1203, %v1192, %v1194
        %v1206 = vsel %vm1203, %v1194, %v1196
        %v1207 = vsel %vm1203, %v1196, %v1198
        %v1208 = vsel %vm1203, %v1198, %v1200
        %v1209 = vsel %vm1203, %v1200, %v1202
        %1217 = vrot.lane.b32.xlu0 %v717, 102
        %v1218 = vpop.permute.xlu0 %1217
        %1219 = vrot.lane.b32.xlu0 %v743, 102
        %v1220 = vpop.permute.xlu0 %1219
        %1221 = vrot.lane.b32.xlu0 %v769, 102
        %v1222 = vpop.permute.xlu0 %1221
        %1223 = vrot.lane.b32.xlu0 %v933, 102
        %v1224 = vpop.permute.xlu0 %1223
        %1225 = vrot.lane.b32.xlu0 %v926, 102
        %v1226 = vpop.permute.xlu0 %1225
        %1227 = vrot.lane.b32.xlu0 %v927, 102
        %v1228 = vpop.permute.xlu0 %1227
        %1229 = vrot.lane.b32.xlu0 %v928, 102
        %v1230 = vpop.permute.xlu0 %1229
        %vm1231 = vcmask 834560
        %v1232 = vsel %vm1231, %v1218, %v1220
        %v1233 = vsel %vm1231, %v1220, %v1222
        %v1234 = vsel %vm1231, %v1222, %v1224
        %v1235 = vsel %vm1231, %v1224, %v1226
        %v1236 = vsel %vm1231, %v1226, %v1228
        %v1237 = vsel %vm1231, %v1228, %v1230
        %1245 = vrot.lane.b32.xlu0 %v717, 101
        %v1246 = vpop.permute.xlu0 %1245
        %1247 = vrot.lane.b32.xlu0 %v743, 101
        %v1248 = vpop.permute.xlu0 %1247
        %1249 = vrot.lane.b32.xlu0 %v769, 101
        %v1250 = vpop.permute.xlu0 %1249
        %1251 = vrot.lane.b32.xlu0 %v933, 101
        %v1252 = vpop.permute.xlu0 %1251
        %1253 = vrot.lane.b32.xlu0 %v926, 101
        %v1254 = vpop.permute.xlu0 %1253
        %1255 = vrot.lane.b32.xlu0 %v927, 101
        %v1256 = vpop.permute.xlu0 %1255
        %1257 = vrot.lane.b32.xlu0 %v928, 101
        %v1258 = vpop.permute.xlu0 %1257
        %vm1259 = vcmask 826368
        %v1260 = vsel %vm1259, %v1246, %v1248
        %v1261 = vsel %vm1259, %v1248, %v1250
        %v1262 = vsel %vm1259, %v1250, %v1252
        %v1263 = vsel %vm1259, %v1252, %v1254
        %v1264 = vsel %vm1259, %v1254, %v1256
        %v1265 = vsel %vm1259, %v1256, %v1258
        %1273 = vrot.lane.b32.xlu0 %v717, 100
        %v1274 = vpop.permute.xlu0 %1273
        %1275 = vrot.lane.b32.xlu0 %v743, 100
        %v1276 = vpop.permute.xlu0 %1275
        %1277 = vrot.lane.b32.xlu0 %v769, 100
        %v1278 = vpop.permute.xlu0 %1277
        %1279 = vrot.lane.b32.xlu0 %v933, 100
        %v1280 = vpop.permute.xlu0 %1279
        %1281 = vrot.lane.b32.xlu0 %v926, 100
        %v1282 = vpop.permute.xlu0 %1281
        %1283 = vrot.lane.b32.xlu0 %v927, 100
        %v1284 = vpop.permute.xlu0 %1283
        %1285 = vrot.lane.b32.xlu0 %v928, 100
        %v1286 = vpop.permute.xlu0 %1285
        %vm1287 = vcmask 818176
        %v1288 = vsel %vm1287, %v1274, %v1276
        %v1289 = vsel %vm1287, %v1276, %v1278
        %v1290 = vsel %vm1287, %v1278, %v1280
        %v1291 = vsel %vm1287, %v1280, %v1282
        %v1292 = vsel %vm1287, %v1282, %v1284
        %v1293 = vsel %vm1287, %v1284, %v1286
        %1301 = vrot.lane.b32.xlu0 %v717, 84
        %v1302 = vpop.permute.xlu0 %1301
        %1303 = vrot.lane.b32.xlu0 %v743, 84
        %v1304 = vpop.permute.xlu0 %1303
        %1305 = vrot.lane.b32.xlu0 %v769, 84
        %v1306 = vpop.permute.xlu0 %1305
        %1307 = vrot.lane.b32.xlu0 %v933, 84
        %v1308 = vpop.permute.xlu0 %1307
        %1309 = vrot.lane.b32.xlu0 %v926, 84
        %v1310 = vpop.permute.xlu0 %1309
        %1311 = vrot.lane.b32.xlu0 %v927, 84
        %v1312 = vpop.permute.xlu0 %1311
        %1313 = vrot.lane.b32.xlu0 %v928, 84
        %v1314 = vpop.permute.xlu0 %1313
        %1315 = vrot.lane.b32.xlu0 %v924, 84
        %v1316 = vpop.permute.xlu0 %1315
        %vm1317 = vcmask 687104
        %v1318 = vsel %vm1317, %v1302, %v1304
        %v1319 = vsel %vm1317, %v1304, %v1306
        %v1320 = vsel %vm1317, %v1306, %v1308
        %v1321 = vsel %vm1317, %v1308, %v1310
        %v1322 = vsel %vm1317, %v1310, %v1312
        %v1323 = vsel %vm1317, %v1312, %v1314
        %v1324 = vsel %vm1317, %v1314, %v1316
        %1332 = vrot.lane.b32.xlu0 %v717, 83
        %v1333 = vpop.permute.xlu0 %1332
        %1334 = vrot.lane.b32.xlu0 %v743, 83
        %v1335 = vpop.permute.xlu0 %1334
        %1336 = vrot.lane.b32.xlu0 %v769, 83
        %v1337 = vpop.permute.xlu0 %1336
        %1338 = vrot.lane.b32.xlu0 %v933, 83
        %v1339 = vpop.permute.xlu0 %1338
        %1340 = vrot.lane.b32.xlu0 %v926, 83
        %v1341 = vpop.permute.xlu0 %1340
        %1342 = vrot.lane.b32.xlu0 %v927, 83
        %v1343 = vpop.permute.xlu0 %1342
        %1344 = vrot.lane.b32.xlu0 %v928, 83
        %v1345 = vpop.permute.xlu0 %1344
        %1346 = vrot.lane.b32.xlu0 %v924, 83
        %v1347 = vpop.permute.xlu0 %1346
        %vm1348 = vcmask 678912
        %v1349 = vsel %vm1348, %v1333, %v1335
        %v1350 = vsel %vm1348, %v1335, %v1337
        %v1351 = vsel %vm1348, %v1337, %v1339
        %v1352 = vsel %vm1348, %v1339, %v1341
        %v1353 = vsel %vm1348, %v1341, %v1343
        %v1354 = vsel %vm1348, %v1343, %v1345
        %v1355 = vsel %vm1348, %v1345, %v1347
        %1363 = vrot.lane.b32.xlu0 %v924, 127
        %v1364 = vpop.permute.xlu0 %1363
        %v1365 = vsel %vm952, %v951, %v1364
        %1366 = vrot.lane.b32.xlu0 %v924, 126
        %v1367 = vpop.permute.xlu0 %1366
        %v1368 = vsel %vm980, %v979, %v1367
        %1369 = vrot.lane.b32.xlu0 %v924, 125
        %v1370 = vpop.permute.xlu0 %1369
        %v1371 = vsel %vm1008, %v1007, %v1370
        %1372 = vrot.lane.b32.xlu0 %v924, 124
        %v1373 = vpop.permute.xlu0 %1372
        %v1374 = vsel %vm1036, %v1035, %v1373
        %1375 = vrot.lane.b32.xlu0 %v717, 108
        %v1376 = vpop.permute.xlu0 %1375
        %1377 = vrot.lane.b32.xlu0 %v743, 108
        %v1378 = vpop.permute.xlu0 %1377
        %1379 = vrot.lane.b32.xlu0 %v769, 108
        %v1380 = vpop.permute.xlu0 %1379
        %1381 = vrot.lane.b32.xlu0 %v933, 108
        %v1382 = vpop.permute.xlu0 %1381
        %1383 = vrot.lane.b32.xlu0 %v926, 108
        %v1384 = vpop.permute.xlu0 %1383
        %1385 = vrot.lane.b32.xlu0 %v927, 108
        %v1386 = vpop.permute.xlu0 %1385
        %1387 = vrot.lane.b32.xlu0 %v928, 108
        %v1388 = vpop.permute.xlu0 %1387
        %1389 = vrot.lane.b32.xlu0 %v924, 108
        %v1390 = vpop.permute.xlu0 %1389
        %vm1391 = vcmask 883712
        %v1392 = vsel %vm1391, %v1376, %v1378
        %v1393 = vsel %vm1391, %v1378, %v1380
        %v1394 = vsel %vm1391, %v1380, %v1382
        %v1395 = vsel %vm1391, %v1382, %v1384
        %v1396 = vsel %vm1391, %v1384, %v1386
        %v1397 = vsel %vm1391, %v1386, %v1388
        %v1398 = vsel %vm1391, %v1388, %v1390
        %1399 = vrot.lane.b32.xlu0 %v717, 107
        %v1400 = vpop.permute.xlu0 %1399
        %1401 = vrot.lane.b32.xlu0 %v743, 107
        %v1402 = vpop.permute.xlu0 %1401
        %1403 = vrot.lane.b32.xlu0 %v769, 107
        %v1404 = vpop.permute.xlu0 %1403
        %1405 = vrot.lane.b32.xlu0 %v933, 107
        %v1406 = vpop.permute.xlu0 %1405
        %1407 = vrot.lane.b32.xlu0 %v926, 107
        %v1408 = vpop.permute.xlu0 %1407
        %1409 = vrot.lane.b32.xlu0 %v927, 107
        %v1410 = vpop.permute.xlu0 %1409
        %1411 = vrot.lane.b32.xlu0 %v928, 107
        %v1412 = vpop.permute.xlu0 %1411
        %1413 = vrot.lane.b32.xlu0 %v924, 107
        %v1414 = vpop.permute.xlu0 %1413
        %vm1415 = vcmask 875520
        %v1416 = vsel %vm1415, %v1400, %v1402
        %v1417 = vsel %vm1415, %v1402, %v1404
        %v1418 = vsel %vm1415, %v1404, %v1406
        %v1419 = vsel %vm1415, %v1406, %v1408
        %v1420 = vsel %vm1415, %v1408, %v1410
        %v1421 = vsel %vm1415, %v1410, %v1412
        %v1422 = vsel %vm1415, %v1412, %v1414
        %1423 = vrot.lane.b32.xlu0 %v924, 106
        %v1424 = vpop.permute.xlu0 %1423
        %v1425 = vsel %vm1119, %v1118, %v1424
        %1426 = vrot.lane.b32.xlu0 %v924, 105
        %v1427 = vpop.permute.xlu0 %1426
        %v1428 = vsel %vm1147, %v1146, %v1427
        %1429 = vrot.lane.b32.xlu0 %v924, 104
        %v1430 = vpop.permute.xlu0 %1429
        %v1431 = vsel %vm1175, %v1174, %v1430
        %1432 = vrot.lane.b32.xlu0 %v924, 103
        %v1433 = vpop.permute.xlu0 %1432
        %v1434 = vsel %vm1203, %v1202, %v1433
        %1435 = vrot.lane.b32.xlu0 %v924, 102
        %v1436 = vpop.permute.xlu0 %1435
        %v1437 = vsel %vm1231, %v1230, %v1436
        %1438 = vrot.lane.b32.xlu0 %v717, 86
        %v1439 = vpop.permute.xlu0 %1438
        %1440 = vrot.lane.b32.xlu0 %v743, 86
        %v1441 = vpop.permute.xlu0 %1440
        %1442 = vrot.lane.b32.xlu0 %v769, 86
        %v1443 = vpop.permute.xlu0 %1442
        %1444 = vrot.lane.b32.xlu0 %v933, 86
        %v1445 = vpop.permute.xlu0 %1444
        %1446 = vrot.lane.b32.xlu0 %v926, 86
        %v1447 = vpop.permute.xlu0 %1446
        %1448 = vrot.lane.b32.xlu0 %v927, 86
        %v1449 = vpop.permute.xlu0 %1448
        %1450 = vrot.lane.b32.xlu0 %v928, 86
        %v1451 = vpop.permute.xlu0 %1450
        %1452 = vrot.lane.b32.xlu0 %v924, 86
        %v1453 = vpop.permute.xlu0 %1452
        %vm1454 = vcmask 703488
        %v1455 = vsel %vm1454, %v1439, %v1441
        %v1456 = vsel %vm1454, %v1441, %v1443
        %v1457 = vsel %vm1454, %v1443, %v1445
        %v1458 = vsel %vm1454, %v1445, %v1447
        %v1459 = vsel %vm1454, %v1447, %v1449
        %v1460 = vsel %vm1454, %v1449, %v1451
        %v1461 = vsel %vm1454, %v1451, %v1453
        %1462 = vrot.lane.b32.xlu0 %v717, 85
        %v1463 = vpop.permute.xlu0 %1462
        %1464 = vrot.lane.b32.xlu0 %v743, 85
        %v1465 = vpop.permute.xlu0 %1464
        %1466 = vrot.lane.b32.xlu0 %v769, 85
        %v1467 = vpop.permute.xlu0 %1466
        %1468 = vrot.lane.b32.xlu0 %v933, 85
        %v1469 = vpop.permute.xlu0 %1468
        %1470 = vrot.lane.b32.xlu0 %v926, 85
        %v1471 = vpop.permute.xlu0 %1470
        %1472 = vrot.lane.b32.xlu0 %v927, 85
        %v1473 = vpop.permute.xlu0 %1472
        %1474 = vrot.lane.b32.xlu0 %v928, 85
        %v1475 = vpop.permute.xlu0 %1474
        %1476 = vrot.lane.b32.xlu0 %v924, 85
        %v1477 = vpop.permute.xlu0 %1476
        %vm1478 = vcmask 695296
        %v1479 = vsel %vm1478, %v1463, %v1465
        %v1480 = vsel %vm1478, %v1465, %v1467
        %v1481 = vsel %vm1478, %v1467, %v1469
        %v1482 = vsel %vm1478, %v1469, %v1471
        %v1483 = vsel %vm1478, %v1471, %v1473
        %v1484 = vsel %vm1478, %v1473, %v1475
        %v1485 = vsel %vm1478, %v1475, %v1477
        %1486 = vrot.lane.b32.xlu0 %v717, 110
        %v1487 = vpop.permute.xlu0 %1486
        %1488 = vrot.lane.b32.xlu0 %v743, 110
        %v1489 = vpop.permute.xlu0 %1488
        %1490 = vrot.lane.b32.xlu0 %v769, 110
        %v1491 = vpop.permute.xlu0 %1490
        %1492 = vrot.lane.b32.xlu0 %v933, 110
        %v1493 = vpop.permute.xlu0 %1492
        %1494 = vrot.lane.b32.xlu0 %v926, 110
        %v1495 = vpop.permute.xlu0 %1494
        %1496 = vrot.lane.b32.xlu0 %v927, 110
        %v1497 = vpop.permute.xlu0 %1496
        %1498 = vrot.lane.b32.xlu0 %v928, 110
        %v1499 = vpop.permute.xlu0 %1498
        %1500 = vrot.lane.b32.xlu0 %v924, 110
        %v1501 = vpop.permute.xlu0 %1500
        %vm1502 = vcmask 900096
        %v1503 = vsel %vm1502, %v1487, %v1489
        %v1504 = vsel %vm1502, %v1489, %v1491
        %v1505 = vsel %vm1502, %v1491, %v1493
        %v1506 = vsel %vm1502, %v1493, %v1495
        %v1507 = vsel %vm1502, %v1495, %v1497
        %v1508 = vsel %vm1502, %v1497, %v1499
        %v1509 = vsel %vm1502, %v1499, %v1501
        %1510 = vrot.lane.b32.xlu0 %v717, 109
        %v1511 = vpop.permute.xlu0 %1510
        %1512 = vrot.lane.b32.xlu0 %v743, 109
        %v1513 = vpop.permute.xlu0 %1512
        %1514 = vrot.lane.b32.xlu0 %v769, 109
        %v1515 = vpop.permute.xlu0 %1514
        %1516 = vrot.lane.b32.xlu0 %v933, 109
        %v1517 = vpop.permute.xlu0 %1516
        %1518 = vrot.lane.b32.xlu0 %v926, 109
        %v1519 = vpop.permute.xlu0 %1518
        %1520 = vrot.lane.b32.xlu0 %v927, 109
        %v1521 = vpop.permute.xlu0 %1520
        %1522 = vrot.lane.b32.xlu0 %v928, 109
        %v1523 = vpop.permute.xlu0 %1522
        %1524 = vrot.lane.b32.xlu0 %v924, 109
        %v1525 = vpop.permute.xlu0 %1524
        %vm1526 = vcmask 891904
        %v1527 = vsel %vm1526, %v1511, %v1513
        %v1528 = vsel %vm1526, %v1513, %v1515
        %v1529 = vsel %vm1526, %v1515, %v1517
        %v1530 = vsel %vm1526, %v1517, %v1519
        %v1531 = vsel %vm1526, %v1519, %v1521
        %v1532 = vsel %vm1526, %v1521, %v1523
        %v1533 = vsel %vm1526, %v1523, %v1525
        %1534 = vrot.lane.b32.xlu0 %v743, 88
        %v1535 = vpop.permute.xlu0 %1534
        %1536 = vrot.lane.b32.xlu0 %v769, 88
        %v1537 = vpop.permute.xlu0 %1536
        %1538 = vrot.lane.b32.xlu0 %v933, 88
        %v1539 = vpop.permute.xlu0 %1538
        %1540 = vrot.lane.b32.xlu0 %v926, 88
        %v1541 = vpop.permute.xlu0 %1540
        %1542 = vrot.lane.b32.xlu0 %v927, 88
        %v1543 = vpop.permute.xlu0 %1542
        %1544 = vrot.lane.b32.xlu0 %v928, 88
        %v1545 = vpop.permute.xlu0 %1544
        %1546 = vrot.lane.b32.xlu0 %v924, 88
        %v1547 = vpop.permute.xlu0 %1546
        %vm1548 = vcmask 719872
        %v1549 = vsel %vm1548, %v1535, %v1537
        %v1550 = vsel %vm1548, %v1537, %v1539
        %v1551 = vsel %vm1548, %v1539, %v1541
        %v1552 = vsel %vm1548, %v1541, %v1543
        %v1553 = vsel %vm1548, %v1543, %v1545
        %v1554 = vsel %vm1548, %v1545, %v1547
        %1555 = vrot.lane.b32.xlu0 %v743, 87
        %v1556 = vpop.permute.xlu0 %1555
        %1557 = vrot.lane.b32.xlu0 %v769, 87
        %v1558 = vpop.permute.xlu0 %1557
        %1559 = vrot.lane.b32.xlu0 %v933, 87
        %v1560 = vpop.permute.xlu0 %1559
        %1561 = vrot.lane.b32.xlu0 %v926, 87
        %v1562 = vpop.permute.xlu0 %1561
        %1563 = vrot.lane.b32.xlu0 %v927, 87
        %v1564 = vpop.permute.xlu0 %1563
        %1565 = vrot.lane.b32.xlu0 %v928, 87
        %v1566 = vpop.permute.xlu0 %1565
        %1567 = vrot.lane.b32.xlu0 %v924, 87
        %v1568 = vpop.permute.xlu0 %1567
        %vm1569 = vcmask 711680
        %v1570 = vsel %vm1569, %v1556, %v1558
        %v1571 = vsel %vm1569, %v1558, %v1560
        %v1572 = vsel %vm1569, %v1560, %v1562
        %v1573 = vsel %vm1569, %v1562, %v1564
        %v1574 = vsel %vm1569, %v1564, %v1566
        %v1575 = vsel %vm1569, %v1566, %v1568
        %1576 = vrot.lane.b32.xlu0 %v717, 82
        %v1577 = vpop.permute.xlu0 %1576
        %1578 = vrot.lane.b32.xlu0 %v743, 82
        %v1579 = vpop.permute.xlu0 %1578
        %1580 = vrot.lane.b32.xlu0 %v769, 82
        %v1581 = vpop.permute.xlu0 %1580
        %1582 = vrot.lane.b32.xlu0 %v933, 82
        %v1583 = vpop.permute.xlu0 %1582
        %1584 = vrot.lane.b32.xlu0 %v926, 82
        %v1585 = vpop.permute.xlu0 %1584
        %1586 = vrot.lane.b32.xlu0 %v927, 82
        %v1587 = vpop.permute.xlu0 %1586
        %1588 = vrot.lane.b32.xlu0 %v928, 82
        %v1589 = vpop.permute.xlu0 %1588
        %1590 = vrot.lane.b32.xlu0 %v924, 82
        %v1591 = vpop.permute.xlu0 %1590
        %1592 = vrot.lane.b32.xlu0 %v953, 82
        %v1593 = vpop.permute.xlu0 %1592
        %1594 = vrot.lane.b32.xlu0 %v954, 82
        %v1595 = vpop.permute.xlu0 %1594
        %1596 = vrot.lane.b32.xlu0 %v955, 82
        %v1597 = vpop.permute.xlu0 %1596
        %1598 = vrot.lane.b32.xlu0 %v956, 82
        %v1599 = vpop.permute.xlu0 %1598
        %1600 = vrot.lane.b32.xlu0 %v957, 82
        %v1601 = vpop.permute.xlu0 %1600
        %1602 = vrot.lane.b32.xlu0 %v958, 82
        %v1603 = vpop.permute.xlu0 %1602
        %1604 = vrot.lane.b32.xlu0 %v1365, 82
        %v1605 = vpop.permute.xlu0 %1604
        %1606 = vrot.lane.b32.xlu0 %v1364, 82
        %v1607 = vpop.permute.xlu0 %1606
        %1608 = vrot.lane.b32.xlu0 %v981, 82
        %v1609 = vpop.permute.xlu0 %1608
        %1610 = vrot.lane.b32.xlu0 %v982, 82
        %v1611 = vpop.permute.xlu0 %1610
        %1612 = vrot.lane.b32.xlu0 %v983, 82
        %v1613 = vpop.permute.xlu0 %1612
        %1614 = vrot.lane.b32.xlu0 %v984, 82
        %v1615 = vpop.permute.xlu0 %1614
        %1616 = vrot.lane.b32.xlu0 %v985, 82
        %v1617 = vpop.permute.xlu0 %1616
        %1618 = vrot.lane.b32.xlu0 %v986, 82
        %v1619 = vpop.permute.xlu0 %1618
        %1620 = vrot.lane.b32.xlu0 %v1368, 82
        %v1621 = vpop.permute.xlu0 %1620
        %1622 = vrot.lane.b32.xlu0 %v1367, 82
        %v1623 = vpop.permute.xlu0 %1622
        %1624 = vrot.lane.b32.xlu0 %v1009, 82
        %v1625 = vpop.permute.xlu0 %1624
        %1626 = vrot.lane.b32.xlu0 %v1010, 82
        %v1627 = vpop.permute.xlu0 %1626
        %1628 = vrot.lane.b32.xlu0 %v1011, 82
        %v1629 = vpop.permute.xlu0 %1628
        %1630 = vrot.lane.b32.xlu0 %v1012, 82
        %v1631 = vpop.permute.xlu0 %1630
        %1632 = vrot.lane.b32.xlu0 %v1013, 82
        %v1633 = vpop.permute.xlu0 %1632
        %1634 = vrot.lane.b32.xlu0 %v1014, 82
        %v1635 = vpop.permute.xlu0 %1634
        %1636 = vrot.lane.b32.xlu0 %v1371, 82
        %v1637 = vpop.permute.xlu0 %1636
        %1638 = vrot.lane.b32.xlu0 %v1370, 82
        %v1639 = vpop.permute.xlu0 %1638
        %1640 = vrot.lane.b32.xlu0 %v1037, 82
        %v1641 = vpop.permute.xlu0 %1640
        %1642 = vrot.lane.b32.xlu0 %v1038, 82
        %v1643 = vpop.permute.xlu0 %1642
        %1644 = vrot.lane.b32.xlu0 %v1039, 82
        %v1645 = vpop.permute.xlu0 %1644
        %1646 = vrot.lane.b32.xlu0 %v1040, 82
        %v1647 = vpop.permute.xlu0 %1646
        %1648 = vrot.lane.b32.xlu0 %v1041, 82
        %v1649 = vpop.permute.xlu0 %1648
        %1650 = vrot.lane.b32.xlu0 %v1042, 82
        %v1651 = vpop.permute.xlu0 %1650
        %1652 = vrot.lane.b32.xlu0 %v1374, 82
        %v1653 = vpop.permute.xlu0 %1652
        %1654 = vrot.lane.b32.xlu0 %v1373, 82
        %v1655 = vpop.permute.xlu0 %1654
        %1656 = vrot.lane.b32.xlu0 %v1392, 82
        %v1657 = vpop.permute.xlu0 %1656
        %1658 = vrot.lane.b32.xlu0 %v1393, 82
        %v1659 = vpop.permute.xlu0 %1658
        %1660 = vrot.lane.b32.xlu0 %v1394, 82
        %v1661 = vpop.permute.xlu0 %1660
        %1662 = vrot.lane.b32.xlu0 %v1395, 82
        %v1663 = vpop.permute.xlu0 %1662
        %1664 = vrot.lane.b32.xlu0 %v1396, 82
        %v1665 = vpop.permute.xlu0 %1664
        %1666 = vrot.lane.b32.xlu0 %v1397, 82
        %v1667 = vpop.permute.xlu0 %1666
        %1668 = vrot.lane.b32.xlu0 %v1398, 82
        %v1669 = vpop.permute.xlu0 %1668
        %1670 = vrot.lane.b32.xlu0 %v1390, 82
        %v1671 = vpop.permute.xlu0 %1670
        %1672 = vrot.lane.b32.xlu0 %v1416, 82
        %v1673 = vpop.permute.xlu0 %1672
        %1674 = vrot.lane.b32.xlu0 %v1417, 82
        %v1675 = vpop.permute.xlu0 %1674
        %1676 = vrot.lane.b32.xlu0 %v1418, 82
        %v1677 = vpop.permute.xlu0 %1676
        %1678 = vrot.lane.b32.xlu0 %v1419, 82
        %v1679 = vpop.permute.xlu0 %1678
        %1680 = vrot.lane.b32.xlu0 %v1420, 82
        %v1681 = vpop.permute.xlu0 %1680
        %1682 = vrot.lane.b32.xlu0 %v1421, 82
        %v1683 = vpop.permute.xlu0 %1682
        %1684 = vrot.lane.b32.xlu0 %v1422, 82
        %v1685 = vpop.permute.xlu0 %1684
        %1686 = vrot.lane.b32.xlu0 %v1414, 82
        %v1687 = vpop.permute.xlu0 %1686
        %1688 = vrot.lane.b32.xlu0 %v1120, 82
        %v1689 = vpop.permute.xlu0 %1688
        %1690 = vrot.lane.b32.xlu0 %v1121, 82
        %v1691 = vpop.permute.xlu0 %1690
        %1692 = vrot.lane.b32.xlu0 %v1122, 82
        %v1693 = vpop.permute.xlu0 %1692
        %1694 = vrot.lane.b32.xlu0 %v1123, 82
        %v1695 = vpop.permute.xlu0 %1694
        %1696 = vrot.lane.b32.xlu0 %v1124, 82
        %v1697 = vpop.permute.xlu0 %1696
        %1698 = vrot.lane.b32.xlu0 %v1125, 82
        %v1699 = vpop.permute.xlu0 %1698
        %1700 = vrot.lane.b32.xlu0 %v1425, 82
        %v1701 = vpop.permute.xlu0 %1700
        %1702 = vrot.lane.b32.xlu0 %v1424, 82
        %v1703 = vpop.permute.xlu0 %1702
        %1704 = vrot.lane.b32.xlu0 %v1148, 82
        %v1705 = vpop.permute.xlu0 %1704
        %1706 = vrot.lane.b32.xlu0 %v1149, 82
        %v1707 = vpop.permute.xlu0 %1706
        %1708 = vrot.lane.b32.xlu0 %v1150, 82
        %v1709 = vpop.permute.xlu0 %1708
        %1710 = vrot.lane.b32.xlu0 %v1151, 82
        %v1711 = vpop.permute.xlu0 %1710
        %1712 = vrot.lane.b32.xlu0 %v1152, 82
        %v1713 = vpop.permute.xlu0 %1712
        %1714 = vrot.lane.b32.xlu0 %v1153, 82
        %v1715 = vpop.permute.xlu0 %1714
        %1716 = vrot.lane.b32.xlu0 %v1428, 82
        %v1717 = vpop.permute.xlu0 %1716
        %1718 = vrot.lane.b32.xlu0 %v1427, 82
        %v1719 = vpop.permute.xlu0 %1718
        %1720 = vrot.lane.b32.xlu0 %v1176, 82
        %v1721 = vpop.permute.xlu0 %1720
        %1722 = vrot.lane.b32.xlu0 %v1177, 82
        %v1723 = vpop.permute.xlu0 %1722
        %1724 = vrot.lane.b32.xlu0 %v1178, 82
        %v1725 = vpop.permute.xlu0 %1724
        %1726 = vrot.lane.b32.xlu0 %v1179, 82
        %v1727 = vpop.permute.xlu0 %1726
        %1728 = vrot.lane.b32.xlu0 %v1180, 82
        %v1729 = vpop.permute.xlu0 %1728
        %1730 = vrot.lane.b32.xlu0 %v1181, 82
        %v1731 = vpop.permute.xlu0 %1730
        %1732 = vrot.lane.b32.xlu0 %v1431, 82
        %v1733 = vpop.permute.xlu0 %1732
        %1734 = vrot.lane.b32.xlu0 %v1430, 82
        %v1735 = vpop.permute.xlu0 %1734
        %1736 = vrot.lane.b32.xlu0 %v1204, 82
        %v1737 = vpop.permute.xlu0 %1736
        %1738 = vrot.lane.b32.xlu0 %v1205, 82
        %v1739 = vpop.permute.xlu0 %1738
        %1740 = vrot.lane.b32.xlu0 %v1206, 82
        %v1741 = vpop.permute.xlu0 %1740
        %1742 = vrot.lane.b32.xlu0 %v1207, 82
        %v1743 = vpop.permute.xlu0 %1742
        %1744 = vrot.lane.b32.xlu0 %v1208, 82
        %v1745 = vpop.permute.xlu0 %1744
        %1746 = vrot.lane.b32.xlu0 %v1209, 82
        %v1747 = vpop.permute.xlu0 %1746
        %1748 = vrot.lane.b32.xlu0 %v1434, 82
        %v1749 = vpop.permute.xlu0 %1748
        %1750 = vrot.lane.b32.xlu0 %v1433, 82
        %v1751 = vpop.permute.xlu0 %1750
        %1752 = vrot.lane.b32.xlu0 %v1232, 82
        %v1753 = vpop.permute.xlu0 %1752
        %1754 = vrot.lane.b32.xlu0 %v1233, 82
        %v1755 = vpop.permute.xlu0 %1754
        %1756 = vrot.lane.b32.xlu0 %v1234, 82
        %v1757 = vpop.permute.xlu0 %1756
        %1758 = vrot.lane.b32.xlu0 %v1235, 82
        %v1759 = vpop.permute.xlu0 %1758
        %1760 = vrot.lane.b32.xlu0 %v1236, 82
        %v1761 = vpop.permute.xlu0 %1760
        %1762 = vrot.lane.b32.xlu0 %v1237, 82
        %v1763 = vpop.permute.xlu0 %1762
        %1764 = vrot.lane.b32.xlu0 %v1437, 82
        %v1765 = vpop.permute.xlu0 %1764
        %1766 = vrot.lane.b32.xlu0 %v1436, 82
        %v1767 = vpop.permute.xlu0 %1766
        %1768 = vrot.lane.b32.xlu0 %v1455, 82
        %v1769 = vpop.permute.xlu0 %1768
        %1770 = vrot.lane.b32.xlu0 %v1456, 82
        %v1771 = vpop.permute.xlu0 %1770
        %1772 = vrot.lane.b32.xlu0 %v1457, 82
        %v1773 = vpop.permute.xlu0 %1772
        %1774 = vrot.lane.b32.xlu0 %v1458, 82
        %v1775 = vpop.permute.xlu0 %1774
        %1776 = vrot.lane.b32.xlu0 %v1459, 82
        %v1777 = vpop.permute.xlu0 %1776
        %1778 = vrot.lane.b32.xlu0 %v1460, 82
        %v1779 = vpop.permute.xlu0 %1778
        %1780 = vrot.lane.b32.xlu0 %v1461, 82
        %v1781 = vpop.permute.xlu0 %1780
        %1782 = vrot.lane.b32.xlu0 %v1453, 82
        %v1783 = vpop.permute.xlu0 %1782
        %1784 = vrot.lane.b32.xlu0 %v1479, 82
        %v1785 = vpop.permute.xlu0 %1784
        %1786 = vrot.lane.b32.xlu0 %v1480, 82
        %v1787 = vpop.permute.xlu0 %1786
        %1788 = vrot.lane.b32.xlu0 %v1481, 82
        %v1789 = vpop.permute.xlu0 %1788
        %1790 = vrot.lane.b32.xlu0 %v1482, 82
        %v1791 = vpop.permute.xlu0 %1790
        %1792 = vrot.lane.b32.xlu0 %v1483, 82
        %v1793 = vpop.permute.xlu0 %1792
        %1794 = vrot.lane.b32.xlu0 %v1484, 82
        %v1795 = vpop.permute.xlu0 %1794
        %1796 = vrot.lane.b32.xlu0 %v1485, 82
        %v1797 = vpop.permute.xlu0 %1796
        %1798 = vrot.lane.b32.xlu0 %v1477, 82
        %v1799 = vpop.permute.xlu0 %1798
        %1800 = vrot.lane.b32.xlu0 %v1318, 82
        %v1801 = vpop.permute.xlu0 %1800
        %1802 = vrot.lane.b32.xlu0 %v1319, 82
        %v1803 = vpop.permute.xlu0 %1802
        %1804 = vrot.lane.b32.xlu0 %v1320, 82
        %v1805 = vpop.permute.xlu0 %1804
        %1806 = vrot.lane.b32.xlu0 %v1321, 82
        %v1807 = vpop.permute.xlu0 %1806
        %1808 = vrot.lane.b32.xlu0 %v1322, 82
        %v1809 = vpop.permute.xlu0 %1808
        %1810 = vrot.lane.b32.xlu0 %v1323, 82
        %v1811 = vpop.permute.xlu0 %1810
        %1812 = vrot.lane.b32.xlu0 %v1324, 82
        %v1813 = vpop.permute.xlu0 %1812
        %1814 = vrot.lane.b32.xlu0 %v1316, 82
        %v1815 = vpop.permute.xlu0 %1814
        %1816 = vrot.lane.b32.xlu0 %v1349, 82
        %v1817 = vpop.permute.xlu0 %1816
        %1818 = vrot.lane.b32.xlu0 %v1350, 82
        %v1819 = vpop.permute.xlu0 %1818
        %1820 = vrot.lane.b32.xlu0 %v1351, 82
        %v1821 = vpop.permute.xlu0 %1820
        %1822 = vrot.lane.b32.xlu0 %v1352, 82
        %v1823 = vpop.permute.xlu0 %1822
        %1824 = vrot.lane.b32.xlu0 %v1353, 82
        %v1825 = vpop.permute.xlu0 %1824
        %1826 = vrot.lane.b32.xlu0 %v1354, 82
        %v1827 = vpop.permute.xlu0 %1826
        %1828 = vrot.lane.b32.xlu0 %v1355, 82
        %v1829 = vpop.permute.xlu0 %1828
        %1830 = vrot.lane.b32.xlu0 %v1347, 82
        %v1831 = vpop.permute.xlu0 %1830
        %vm1832 = vcmask 670720
        %v1833 = vsel %vm1832, %v1577, %v1579
        %v1834 = vsel %vm1832, %v1579, %v1581
        %v1835 = vsel %vm1832, %v1581, %v1583
        %v1836 = vsel %vm1832, %v1583, %v1585
        %v1837 = vsel %vm1832, %v1585, %v1587
        %v1838 = vsel %vm1832, %v1587, %v1589
        %v1839 = vsel %vm1832, %v1589, %v1591
        %v1840 = vsel %vm1832, %v1593, %v1595
        %v1841 = vsel %vm1832, %v1595, %v1597
        %v1842 = vsel %vm1832, %v1597, %v1599
        %v1843 = vsel %vm1832, %v1599, %v1601
        %v1844 = vsel %vm1832, %v1601, %v1603
        %v1845 = vsel %vm1832, %v1603, %v1605
        %v1846 = vsel %vm1832, %v1605, %v1607
        %v1847 = vsel %vm1832, %v1609, %v1611
        %v1848 = vsel %vm1832, %v1611, %v1613
        %v1849 = vsel %vm1832, %v1613, %v1615
        %v1850 = vsel %vm1832, %v1615, %v1617
        %v1851 = vsel %vm1832, %v1617, %v1619
        %v1852 = vsel %vm1832, %v1619, %v1621
        %v1853 = vsel %vm1832, %v1621, %v1623
        %v1854 = vsel %vm1832, %v1625, %v1627
        %v1855 = vsel %vm1832, %v1627, %v1629
        %v1856 = vsel %vm1832, %v1629, %v1631
        %v1857 = vsel %vm1832, %v1631, %v1633
        %v1858 = vsel %vm1832, %v1633, %v1635
        %v1859 = vsel %vm1832, %v1635, %v1637
        %v1860 = vsel %vm1832, %v1637, %v1639
        %v1861 = vsel %vm1832, %v1641, %v1643
        %v1862 = vsel %vm1832, %v1643, %v1645
        %v1863 = vsel %vm1832, %v1645, %v1647
        %v1864 = vsel %vm1832, %v1647, %v1649
        %v1865 = vsel %vm1832, %v1649, %v1651
        %v1866 = vsel %vm1832, %v1651, %v1653
        %v1867 = vsel %vm1832, %v1653, %v1655
        %v1868 = vsel %vm1832, %v1657, %v1659
        %v1869 = vsel %vm1832, %v1659, %v1661
        %v1870 = vsel %vm1832, %v1661, %v1663
        %v1871 = vsel %vm1832, %v1663, %v1665
        %v1872 = vsel %vm1832, %v1665, %v1667
        %v1873 = vsel %vm1832, %v1667, %v1669
        %v1874 = vsel %vm1832, %v1669, %v1671
        %v1875 = vsel %vm1832, %v1673, %v1675
        %v1876 = vsel %vm1832, %v1675, %v1677
        %v1877 = vsel %vm1832, %v1677, %v1679
        %v1878 = vsel %vm1832, %v1679, %v1681
        %v1879 = vsel %vm1832, %v1681, %v1683
        %v1880 = vsel %vm1832, %v1683, %v1685
        %v1881 = vsel %vm1832, %v1685, %v1687
        %v1882 = vsel %vm1832, %v1689, %v1691
        %v1883 = vsel %vm1832, %v1691, %v1693
        %v1884 = vsel %vm1832, %v1693, %v1695
        %v1885 = vsel %vm1832, %v1695, %v1697
        %v1886 = vsel %vm1832, %v1697, %v1699
        %v1887 = vsel %vm1832, %v1699, %v1701
        %v1888 = vsel %vm1832, %v1701, %v1703
        %v1889 = vsel %vm1832, %v1705, %v1707
        %v1890 = vsel %vm1832, %v1707, %v1709
        %v1891 = vsel %vm1832, %v1709, %v1711
        %v1892 = vsel %vm1832, %v1711, %v1713
        %v1893 = vsel %vm1832, %v1713, %v1715
        %v1894 = vsel %vm1832, %v1715, %v1717
        %v1895 = vsel %vm1832, %v1717, %v1719
        %v1896 = vsel %vm1832, %v1721, %v1723
        %v1897 = vsel %vm1832, %v1723, %v1725
        %v1898 = vsel %vm1832, %v1725, %v1727
        %v1899 = vsel %vm1832, %v1727, %v1729
        %v1900 = vsel %vm1832, %v1729, %v1731
        %v1901 = vsel %vm1832, %v1731, %v1733
        %v1902 = vsel %vm1832, %v1733, %v1735
        %v1903 = vsel %vm1832, %v1737, %v1739
        %v1904 = vsel %vm1832, %v1739, %v1741
        %v1905 = vsel %vm1832, %v1741, %v1743
        %v1906 = vsel %vm1832, %v1743, %v1745
        %v1907 = vsel %vm1832, %v1745, %v1747
        %v1908 = vsel %vm1832, %v1747, %v1749
        %v1909 = vsel %vm1832, %v1749, %v1751
        %v1910 = vsel %vm1832, %v1753, %v1755
        %v1911 = vsel %vm1832, %v1755, %v1757
        %v1912 = vsel %vm1832, %v1757, %v1759
        %v1913 = vsel %vm1832, %v1759, %v1761
        %v1914 = vsel %vm1832, %v1761, %v1763
        %v1915 = vsel %vm1832, %v1763, %v1765
        %v1916 = vsel %vm1832, %v1765, %v1767
        %v1917 = vsel %vm1832, %v1769, %v1771
        %v1918 = vsel %vm1832, %v1771, %v1773
        %v1919 = vsel %vm1832, %v1773, %v1775
        %v1920 = vsel %vm1832, %v1775, %v1777
        %v1921 = vsel %vm1832, %v1777, %v1779
        %v1922 = vsel %vm1832, %v1779, %v1781
        %v1923 = vsel %vm1832, %v1781, %v1783
        %v1924 = vsel %vm1832, %v1785, %v1787
        %v1925 = vsel %vm1832, %v1787, %v1789
        %v1926 = vsel %vm1832, %v1789, %v1791
        %v1927 = vsel %vm1832, %v1791, %v1793
        %v1928 = vsel %vm1832, %v1793, %v1795
        %v1929 = vsel %vm1832, %v1795, %v1797
        %v1930 = vsel %vm1832, %v1797, %v1799
        %v1931 = vsel %vm1832, %v1801, %v1803
        %v1932 = vsel %vm1832, %v1803, %v1805
        %v1933 = vsel %vm1832, %v1805, %v1807
        %v1934 = vsel %vm1832, %v1807, %v1809
        %v1935 = vsel %vm1832, %v1809, %v1811
        %v1936 = vsel %vm1832, %v1811, %v1813
        %v1937 = vsel %vm1832, %v1813, %v1815
        %v1938 = vsel %vm1832, %v1817, %v1819
        %v1939 = vsel %vm1832, %v1819, %v1821
        %v1940 = vsel %vm1832, %v1821, %v1823
        %v1941 = vsel %vm1832, %v1823, %v1825
        %v1942 = vsel %vm1832, %v1825, %v1827
        %v1943 = vsel %vm1832, %v1827, %v1829
        %v1944 = vsel %vm1832, %v1829, %v1831
        %2057 = vrot.lane.b32.xlu0 %v717, 36
        %v2058 = vpop.permute.xlu0 %2057
        %2059 = vrot.lane.b32.xlu0 %v743, 36
        %v2060 = vpop.permute.xlu0 %2059
        %2061 = vrot.lane.b32.xlu0 %v769, 36
        %v2062 = vpop.permute.xlu0 %2061
        %2063 = vrot.lane.b32.xlu0 %v933, 36
        %v2064 = vpop.permute.xlu0 %2063
        %2065 = vrot.lane.b32.xlu0 %v926, 36
        %v2066 = vpop.permute.xlu0 %2065
        %2067 = vrot.lane.b32.xlu0 %v927, 36
        %v2068 = vpop.permute.xlu0 %2067
        %2069 = vrot.lane.b32.xlu0 %v928, 36
        %v2070 = vpop.permute.xlu0 %2069
        %2071 = vrot.lane.b32.xlu0 %v924, 36
        %v2072 = vpop.permute.xlu0 %2071
        %2073 = vrot.lane.b32.xlu0 %v953, 36
        %v2074 = vpop.permute.xlu0 %2073
        %2075 = vrot.lane.b32.xlu0 %v954, 36
        %v2076 = vpop.permute.xlu0 %2075
        %2077 = vrot.lane.b32.xlu0 %v955, 36
        %v2078 = vpop.permute.xlu0 %2077
        %2079 = vrot.lane.b32.xlu0 %v956, 36
        %v2080 = vpop.permute.xlu0 %2079
        %2081 = vrot.lane.b32.xlu0 %v957, 36
        %v2082 = vpop.permute.xlu0 %2081
        %2083 = vrot.lane.b32.xlu0 %v958, 36
        %v2084 = vpop.permute.xlu0 %2083
        %2085 = vrot.lane.b32.xlu0 %v1365, 36
        %v2086 = vpop.permute.xlu0 %2085
        %2087 = vrot.lane.b32.xlu0 %v1364, 36
        %v2088 = vpop.permute.xlu0 %2087
        %2089 = vrot.lane.b32.xlu0 %v981, 36
        %v2090 = vpop.permute.xlu0 %2089
        %2091 = vrot.lane.b32.xlu0 %v982, 36
        %v2092 = vpop.permute.xlu0 %2091
        %2093 = vrot.lane.b32.xlu0 %v983, 36
        %v2094 = vpop.permute.xlu0 %2093
        %2095 = vrot.lane.b32.xlu0 %v984, 36
        %v2096 = vpop.permute.xlu0 %2095
        %2097 = vrot.lane.b32.xlu0 %v985, 36
        %v2098 = vpop.permute.xlu0 %2097
        %2099 = vrot.lane.b32.xlu0 %v986, 36
        %v2100 = vpop.permute.xlu0 %2099
        %2101 = vrot.lane.b32.xlu0 %v1368, 36
        %v2102 = vpop.permute.xlu0 %2101
        %2103 = vrot.lane.b32.xlu0 %v1367, 36
        %v2104 = vpop.permute.xlu0 %2103
        %2105 = vrot.lane.b32.xlu0 %v1503, 36
        %v2106 = vpop.permute.xlu0 %2105
        %2107 = vrot.lane.b32.xlu0 %v1504, 36
        %v2108 = vpop.permute.xlu0 %2107
        %2109 = vrot.lane.b32.xlu0 %v1505, 36
        %v2110 = vpop.permute.xlu0 %2109
        %2111 = vrot.lane.b32.xlu0 %v1506, 36
        %v2112 = vpop.permute.xlu0 %2111
        %2113 = vrot.lane.b32.xlu0 %v1507, 36
        %v2114 = vpop.permute.xlu0 %2113
        %2115 = vrot.lane.b32.xlu0 %v1508, 36
        %v2116 = vpop.permute.xlu0 %2115
        %2117 = vrot.lane.b32.xlu0 %v1509, 36
        %v2118 = vpop.permute.xlu0 %2117
        %2119 = vrot.lane.b32.xlu0 %v1501, 36
        %v2120 = vpop.permute.xlu0 %2119
        %2121 = vrot.lane.b32.xlu0 %v1527, 36
        %v2122 = vpop.permute.xlu0 %2121
        %2123 = vrot.lane.b32.xlu0 %v1528, 36
        %v2124 = vpop.permute.xlu0 %2123
        %2125 = vrot.lane.b32.xlu0 %v1529, 36
        %v2126 = vpop.permute.xlu0 %2125
        %2127 = vrot.lane.b32.xlu0 %v1530, 36
        %v2128 = vpop.permute.xlu0 %2127
        %2129 = vrot.lane.b32.xlu0 %v1531, 36
        %v2130 = vpop.permute.xlu0 %2129
        %2131 = vrot.lane.b32.xlu0 %v1532, 36
        %v2132 = vpop.permute.xlu0 %2131
        %2133 = vrot.lane.b32.xlu0 %v1533, 36
        %v2134 = vpop.permute.xlu0 %2133
        %2135 = vrot.lane.b32.xlu0 %v1525, 36
        %v2136 = vpop.permute.xlu0 %2135
        %2137 = vrot.lane.b32.xlu0 %v1392, 36
        %v2138 = vpop.permute.xlu0 %2137
        %2139 = vrot.lane.b32.xlu0 %v1393, 36
        %v2140 = vpop.permute.xlu0 %2139
        %2141 = vrot.lane.b32.xlu0 %v1394, 36
        %v2142 = vpop.permute.xlu0 %2141
        %2143 = vrot.lane.b32.xlu0 %v1395, 36
        %v2144 = vpop.permute.xlu0 %2143
        %2145 = vrot.lane.b32.xlu0 %v1396, 36
        %v2146 = vpop.permute.xlu0 %2145
        %2147 = vrot.lane.b32.xlu0 %v1397, 36
        %v2148 = vpop.permute.xlu0 %2147
        %2149 = vrot.lane.b32.xlu0 %v1398, 36
        %v2150 = vpop.permute.xlu0 %2149
        %2151 = vrot.lane.b32.xlu0 %v1390, 36
        %v2152 = vpop.permute.xlu0 %2151
        %2153 = vrot.lane.b32.xlu0 %v1416, 36
        %v2154 = vpop.permute.xlu0 %2153
        %2155 = vrot.lane.b32.xlu0 %v1417, 36
        %v2156 = vpop.permute.xlu0 %2155
        %2157 = vrot.lane.b32.xlu0 %v1418, 36
        %v2158 = vpop.permute.xlu0 %2157
        %2159 = vrot.lane.b32.xlu0 %v1419, 36
        %v2160 = vpop.permute.xlu0 %2159
        %2161 = vrot.lane.b32.xlu0 %v1420, 36
        %v2162 = vpop.permute.xlu0 %2161
        %2163 = vrot.lane.b32.xlu0 %v1421, 36
        %v2164 = vpop.permute.xlu0 %2163
        %2165 = vrot.lane.b32.xlu0 %v1422, 36
        %v2166 = vpop.permute.xlu0 %2165
        %2167 = vrot.lane.b32.xlu0 %v1414, 36
        %v2168 = vpop.permute.xlu0 %2167
        %2169 = vrot.lane.b32.xlu0 %v1120, 36
        %v2170 = vpop.permute.xlu0 %2169
        %2171 = vrot.lane.b32.xlu0 %v1121, 36
        %v2172 = vpop.permute.xlu0 %2171
        %2173 = vrot.lane.b32.xlu0 %v1122, 36
        %v2174 = vpop.permute.xlu0 %2173
        %2175 = vrot.lane.b32.xlu0 %v1123, 36
        %v2176 = vpop.permute.xlu0 %2175
        %2177 = vrot.lane.b32.xlu0 %v1124, 36
        %v2178 = vpop.permute.xlu0 %2177
        %2179 = vrot.lane.b32.xlu0 %v1125, 36
        %v2180 = vpop.permute.xlu0 %2179
        %2181 = vrot.lane.b32.xlu0 %v1425, 36
        %v2182 = vpop.permute.xlu0 %2181
        %2183 = vrot.lane.b32.xlu0 %v1424, 36
        %v2184 = vpop.permute.xlu0 %2183
        %2185 = vrot.lane.b32.xlu0 %v1148, 36
        %v2186 = vpop.permute.xlu0 %2185
        %2187 = vrot.lane.b32.xlu0 %v1149, 36
        %v2188 = vpop.permute.xlu0 %2187
        %2189 = vrot.lane.b32.xlu0 %v1150, 36
        %v2190 = vpop.permute.xlu0 %2189
        %2191 = vrot.lane.b32.xlu0 %v1151, 36
        %v2192 = vpop.permute.xlu0 %2191
        %2193 = vrot.lane.b32.xlu0 %v1152, 36
        %v2194 = vpop.permute.xlu0 %2193
        %2195 = vrot.lane.b32.xlu0 %v1153, 36
        %v2196 = vpop.permute.xlu0 %2195
        %2197 = vrot.lane.b32.xlu0 %v1428, 36
        %v2198 = vpop.permute.xlu0 %2197
        %2199 = vrot.lane.b32.xlu0 %v1427, 36
        %v2200 = vpop.permute.xlu0 %2199
        %2201 = vrot.lane.b32.xlu0 %v1176, 36
        %v2202 = vpop.permute.xlu0 %2201
        %2203 = vrot.lane.b32.xlu0 %v1177, 36
        %v2204 = vpop.permute.xlu0 %2203
        %2205 = vrot.lane.b32.xlu0 %v1178, 36
        %v2206 = vpop.permute.xlu0 %2205
        %2207 = vrot.lane.b32.xlu0 %v1179, 36
        %v2208 = vpop.permute.xlu0 %2207
        %2209 = vrot.lane.b32.xlu0 %v1180, 36
        %v2210 = vpop.permute.xlu0 %2209
        %2211 = vrot.lane.b32.xlu0 %v1181, 36
        %v2212 = vpop.permute.xlu0 %2211
        %2213 = vrot.lane.b32.xlu0 %v1431, 36
        %v2214 = vpop.permute.xlu0 %2213
        %2215 = vrot.lane.b32.xlu0 %v1430, 36
        %v2216 = vpop.permute.xlu0 %2215
        %2217 = vrot.lane.b32.xlu0 %v1535, 36
        %v2218 = vpop.permute.xlu0 %2217
        %2219 = vrot.lane.b32.xlu0 %v1549, 36
        %v2220 = vpop.permute.xlu0 %2219
        %2221 = vrot.lane.b32.xlu0 %v1550, 36
        %v2222 = vpop.permute.xlu0 %2221
        %2223 = vrot.lane.b32.xlu0 %v1551, 36
        %v2224 = vpop.permute.xlu0 %2223
        %2225 = vrot.lane.b32.xlu0 %v1552, 36
        %v2226 = vpop.permute.xlu0 %2225
        %2227 = vrot.lane.b32.xlu0 %v1553, 36
        %v2228 = vpop.permute.xlu0 %2227
        %2229 = vrot.lane.b32.xlu0 %v1554, 36
        %v2230 = vpop.permute.xlu0 %2229
        %2231 = vrot.lane.b32.xlu0 %v1547, 36
        %v2232 = vpop.permute.xlu0 %2231
        %2233 = vrot.lane.b32.xlu0 %v1556, 36
        %v2234 = vpop.permute.xlu0 %2233
        %2235 = vrot.lane.b32.xlu0 %v1570, 36
        %v2236 = vpop.permute.xlu0 %2235
        %2237 = vrot.lane.b32.xlu0 %v1571, 36
        %v2238 = vpop.permute.xlu0 %2237
        %2239 = vrot.lane.b32.xlu0 %v1572, 36
        %v2240 = vpop.permute.xlu0 %2239
        %2241 = vrot.lane.b32.xlu0 %v1573, 36
        %v2242 = vpop.permute.xlu0 %2241
        %2243 = vrot.lane.b32.xlu0 %v1574, 36
        %v2244 = vpop.permute.xlu0 %2243
        %2245 = vrot.lane.b32.xlu0 %v1575, 36
        %v2246 = vpop.permute.xlu0 %2245
        %2247 = vrot.lane.b32.xlu0 %v1568, 36
        %v2248 = vpop.permute.xlu0 %2247
        %2249 = vrot.lane.b32.xlu0 %v1441, 36
        %v2250 = vpop.permute.xlu0 %2249
        %2251 = vrot.lane.b32.xlu0 %v1456, 36
        %v2252 = vpop.permute.xlu0 %2251
        %2253 = vrot.lane.b32.xlu0 %v1457, 36
        %v2254 = vpop.permute.xlu0 %2253
        %2255 = vrot.lane.b32.xlu0 %v1458, 36
        %v2256 = vpop.permute.xlu0 %2255
        %2257 = vrot.lane.b32.xlu0 %v1459, 36
        %v2258 = vpop.permute.xlu0 %2257
        %2259 = vrot.lane.b32.xlu0 %v1460, 36
        %v2260 = vpop.permute.xlu0 %2259
        %2261 = vrot.lane.b32.xlu0 %v1461, 36
        %v2262 = vpop.permute.xlu0 %2261
        %2263 = vrot.lane.b32.xlu0 %v1453, 36
        %v2264 = vpop.permute.xlu0 %2263
        %2265 = vrot.lane.b32.xlu0 %v1465, 36
        %v2266 = vpop.permute.xlu0 %2265
        %2267 = vrot.lane.b32.xlu0 %v1480, 36
        %v2268 = vpop.permute.xlu0 %2267
        %2269 = vrot.lane.b32.xlu0 %v1481, 36
        %v2270 = vpop.permute.xlu0 %2269
        %2271 = vrot.lane.b32.xlu0 %v1482, 36
        %v2272 = vpop.permute.xlu0 %2271
        %2273 = vrot.lane.b32.xlu0 %v1483, 36
        %v2274 = vpop.permute.xlu0 %2273
        %2275 = vrot.lane.b32.xlu0 %v1484, 36
        %v2276 = vpop.permute.xlu0 %2275
        %2277 = vrot.lane.b32.xlu0 %v1485, 36
        %v2278 = vpop.permute.xlu0 %2277
        %2279 = vrot.lane.b32.xlu0 %v1477, 36
        %v2280 = vpop.permute.xlu0 %2279
        %2281 = vrot.lane.b32.xlu0 %v1304, 36
        %v2282 = vpop.permute.xlu0 %2281
        %2283 = vrot.lane.b32.xlu0 %v1319, 36
        %v2284 = vpop.permute.xlu0 %2283
        %2285 = vrot.lane.b32.xlu0 %v1320, 36
        %v2286 = vpop.permute.xlu0 %2285
        %2287 = vrot.lane.b32.xlu0 %v1321, 36
        %v2288 = vpop.permute.xlu0 %2287
        %2289 = vrot.lane.b32.xlu0 %v1322, 36
        %v2290 = vpop.permute.xlu0 %2289
        %2291 = vrot.lane.b32.xlu0 %v1323, 36
        %v2292 = vpop.permute.xlu0 %2291
        %2293 = vrot.lane.b32.xlu0 %v1324, 36
        %v2294 = vpop.permute.xlu0 %2293
        %2295 = vrot.lane.b32.xlu0 %v1316, 36
        %v2296 = vpop.permute.xlu0 %2295
        %2297 = vrot.lane.b32.xlu0 %v1335, 36
        %v2298 = vpop.permute.xlu0 %2297
        %2299 = vrot.lane.b32.xlu0 %v1350, 36
        %v2300 = vpop.permute.xlu0 %2299
        %2301 = vrot.lane.b32.xlu0 %v1351, 36
        %v2302 = vpop.permute.xlu0 %2301
        %2303 = vrot.lane.b32.xlu0 %v1352, 36
        %v2304 = vpop.permute.xlu0 %2303
        %2305 = vrot.lane.b32.xlu0 %v1353, 36
        %v2306 = vpop.permute.xlu0 %2305
        %2307 = vrot.lane.b32.xlu0 %v1354, 36
        %v2308 = vpop.permute.xlu0 %2307
        %2309 = vrot.lane.b32.xlu0 %v1355, 36
        %v2310 = vpop.permute.xlu0 %2309
        %2311 = vrot.lane.b32.xlu0 %v1347, 36
        %v2312 = vpop.permute.xlu0 %2311
        %vm2313 = vcmask 293888
        %v2314 = vsel %vm2313, %v2058, %v2060
        %v2315 = vsel %vm2313, %v2060, %v2062
        %v2316 = vsel %vm2313, %v2062, %v2064
        %v2317 = vsel %vm2313, %v2064, %v2066
        %v2318 = vsel %vm2313, %v2066, %v2068
        %v2319 = vsel %vm2313, %v2068, %v2070
        %v2320 = vsel %vm2313, %v2070, %v2072
        %v2321 = vsel %vm2313, %v2074, %v2076
        %v2322 = vsel %vm2313, %v2076, %v2078
        %v2323 = vsel %vm2313, %v2078, %v2080
        %v2324 = vsel %vm2313, %v2080, %v2082
        %v2325 = vsel %vm2313, %v2082, %v2084
        %v2326 = vsel %vm2313, %v2084, %v2086
        %v2327 = vsel %vm2313, %v2086, %v2088
        %v2328 = vsel %vm2313, %v2090, %v2092
        %v2329 = vsel %vm2313, %v2092, %v2094
        %v2330 = vsel %vm2313, %v2094, %v2096
        %v2331 = vsel %vm2313, %v2096, %v2098
        %v2332 = vsel %vm2313, %v2098, %v2100
        %v2333 = vsel %vm2313, %v2100, %v2102
        %v2334 = vsel %vm2313, %v2102, %v2104
        %v2335 = vsel %vm2313, %v2106, %v2108
        %v2336 = vsel %vm2313, %v2108, %v2110
        %v2337 = vsel %vm2313, %v2110, %v2112
        %v2338 = vsel %vm2313, %v2112, %v2114
        %v2339 = vsel %vm2313, %v2114, %v2116
        %v2340 = vsel %vm2313, %v2116, %v2118
        %v2341 = vsel %vm2313, %v2118, %v2120
        %v2342 = vsel %vm2313, %v2122, %v2124
        %v2343 = vsel %vm2313, %v2124, %v2126
        %v2344 = vsel %vm2313, %v2126, %v2128
        %v2345 = vsel %vm2313, %v2128, %v2130
        %v2346 = vsel %vm2313, %v2130, %v2132
        %v2347 = vsel %vm2313, %v2132, %v2134
        %v2348 = vsel %vm2313, %v2134, %v2136
        %v2349 = vsel %vm2313, %v2138, %v2140
        %v2350 = vsel %vm2313, %v2140, %v2142
        %v2351 = vsel %vm2313, %v2142, %v2144
        %v2352 = vsel %vm2313, %v2144, %v2146
        %v2353 = vsel %vm2313, %v2146, %v2148
        %v2354 = vsel %vm2313, %v2148, %v2150
        %v2355 = vsel %vm2313, %v2150, %v2152
        %v2356 = vsel %vm2313, %v2154, %v2156
        %v2357 = vsel %vm2313, %v2156, %v2158
        %v2358 = vsel %vm2313, %v2158, %v2160
        %v2359 = vsel %vm2313, %v2160, %v2162
        %v2360 = vsel %vm2313, %v2162, %v2164
        %v2361 = vsel %vm2313, %v2164, %v2166
        %v2362 = vsel %vm2313, %v2166, %v2168
        %v2363 = vsel %vm2313, %v2170, %v2172
        %v2364 = vsel %vm2313, %v2172, %v2174
        %v2365 = vsel %vm2313, %v2174, %v2176
        %v2366 = vsel %vm2313, %v2176, %v2178
        %v2367 = vsel %vm2313, %v2178, %v2180
        %v2368 = vsel %vm2313, %v2180, %v2182
        %v2369 = vsel %vm2313, %v2182, %v2184
        %v2370 = vsel %vm2313, %v2186, %v2188
        %v2371 = vsel %vm2313, %v2188, %v2190
        %v2372 = vsel %vm2313, %v2190, %v2192
        %v2373 = vsel %vm2313, %v2192, %v2194
        %v2374 = vsel %vm2313, %v2194, %v2196
        %v2375 = vsel %vm2313, %v2196, %v2198
        %v2376 = vsel %vm2313, %v2198, %v2200
        %v2377 = vsel %vm2313, %v2202, %v2204
        %v2378 = vsel %vm2313, %v2204, %v2206
        %v2379 = vsel %vm2313, %v2206, %v2208
        %v2380 = vsel %vm2313, %v2208, %v2210
        %v2381 = vsel %vm2313, %v2210, %v2212
        %v2382 = vsel %vm2313, %v2212, %v2214
        %v2383 = vsel %vm2313, %v2214, %v2216
        %v2384 = vsel %vm2313, %v2218, %v2220
        %v2385 = vsel %vm2313, %v2220, %v2222
        %v2386 = vsel %vm2313, %v2222, %v2224
        %v2387 = vsel %vm2313, %v2224, %v2226
        %v2388 = vsel %vm2313, %v2226, %v2228
        %v2389 = vsel %vm2313, %v2228, %v2230
        %v2390 = vsel %vm2313, %v2230, %v2232
        %v2391 = vsel %vm2313, %v2234, %v2236
        %v2392 = vsel %vm2313, %v2236, %v2238
        %v2393 = vsel %vm2313, %v2238, %v2240
        %v2394 = vsel %vm2313, %v2240, %v2242
        %v2395 = vsel %vm2313, %v2242, %v2244
        %v2396 = vsel %vm2313, %v2244, %v2246
        %v2397 = vsel %vm2313, %v2246, %v2248
        %v2398 = vsel %vm2313, %v2250, %v2252
        %v2399 = vsel %vm2313, %v2252, %v2254
        %v2400 = vsel %vm2313, %v2254, %v2256
        %v2401 = vsel %vm2313, %v2256, %v2258
        %v2402 = vsel %vm2313, %v2258, %v2260
        %v2403 = vsel %vm2313, %v2260, %v2262
        %v2404 = vsel %vm2313, %v2262, %v2264
        %v2405 = vsel %vm2313, %v2266, %v2268
        %v2406 = vsel %vm2313, %v2268, %v2270
        %v2407 = vsel %vm2313, %v2270, %v2272
        %v2408 = vsel %vm2313, %v2272, %v2274
        %v2409 = vsel %vm2313, %v2274, %v2276
        %v2410 = vsel %vm2313, %v2276, %v2278
        %v2411 = vsel %vm2313, %v2278, %v2280
        %v2412 = vsel %vm2313, %v2282, %v2284
        %v2413 = vsel %vm2313, %v2284, %v2286
        %v2414 = vsel %vm2313, %v2286, %v2288
        %v2415 = vsel %vm2313, %v2288, %v2290
        %v2416 = vsel %vm2313, %v2290, %v2292
        %v2417 = vsel %vm2313, %v2292, %v2294
        %v2418 = vsel %vm2313, %v2294, %v2296
        %v2419 = vsel %vm2313, %v2298, %v2300
        %v2420 = vsel %vm2313, %v2300, %v2302
        %v2421 = vsel %vm2313, %v2302, %v2304
        %v2422 = vsel %vm2313, %v2304, %v2306
        %v2423 = vsel %vm2313, %v2306, %v2308
        %v2424 = vsel %vm2313, %v2308, %v2310
        %v2425 = vsel %vm2313, %v2310, %v2312
        %2538 = vrot.lane.b32.xlu0 %v743, 118
        %v2539 = vpop.permute.xlu0 %2538
        %2540 = vrot.lane.b32.xlu0 %v769, 118
        %v2541 = vpop.permute.xlu0 %2540
        %2542 = vrot.lane.b32.xlu0 %v933, 118
        %v2543 = vpop.permute.xlu0 %2542
        %2544 = vrot.lane.b32.xlu0 %v926, 118
        %v2545 = vpop.permute.xlu0 %2544
        %2546 = vrot.lane.b32.xlu0 %v927, 118
        %v2547 = vpop.permute.xlu0 %2546
        %2548 = vrot.lane.b32.xlu0 %v928, 118
        %v2549 = vpop.permute.xlu0 %2548
        %2550 = vrot.lane.b32.xlu0 %v924, 118
        %v2551 = vpop.permute.xlu0 %2550
        %vm2552 = vcmask 965632
        %v2553 = vsel %vm2552, %v2539, %v2541
        %v2554 = vsel %vm2552, %v2541, %v2543
        %v2555 = vsel %vm2552, %v2543, %v2545
        %v2556 = vsel %vm2552, %v2545, %v2547
        %v2557 = vsel %vm2552, %v2547, %v2549
        %v2558 = vsel %vm2552, %v2549, %v2551
        %v2566 = vpack.c.bf16 %v953, %v717
        %v2567 = vpack.c.bf16 %v954, %v743
        %v2568 = vpack.c.bf16 %v955, %v769
        %v2569 = vpack.c.bf16 %v956, %v933
        %v2570 = vpack.c.bf16 %v957, %v926
        %v2571 = vpack.c.bf16 %v958, %v927
        %v2572 = vpack.c.bf16 %v951, %v928
        %v2573 = vpack.c.bf16 %v1009, %v981
        %v2574 = vpack.c.bf16 %v1010, %v982
        %v2575 = vpack.c.bf16 %v1011, %v983
        %v2576 = vpack.c.bf16 %v1012, %v984
        %v2577 = vpack.c.bf16 %v1013, %v985
        %v2578 = vpack.c.bf16 %v1014, %v986
        %v2579 = vpack.c.bf16 %v1007, %v979
        %v2580 = vpack.c.bf16 %v1065, %v1037
        %v2581 = vpack.c.bf16 %v1066, %v1038
        %v2582 = vpack.c.bf16 %v1067, %v1039
        %v2583 = vpack.c.bf16 %v1068, %v1040
        %v2584 = vpack.c.bf16 %v1069, %v1041
        %v2585 = vpack.c.bf16 %v1070, %v1042
        %v2586 = vpack.c.bf16 %v1063, %v1035
        %v2587 = vpack.c.bf16 %v1120, %v1092
        %v2588 = vpack.c.bf16 %v1121, %v1093
        %v2589 = vpack.c.bf16 %v1122, %v1094
        %v2590 = vpack.c.bf16 %v1123, %v1095
        %v2591 = vpack.c.bf16 %v1124, %v1096
        %v2592 = vpack.c.bf16 %v1125, %v1097
        %v2593 = vpack.c.bf16 %v1118, %v1091
        %v2594 = vpack.c.bf16 %v1176, %v1148
        %v2595 = vpack.c.bf16 %v1177, %v1149
        %v2596 = vpack.c.bf16 %v1178, %v1150
        %v2597 = vpack.c.bf16 %v1179, %v1151
        %v2598 = vpack.c.bf16 %v1180, %v1152
        %v2599 = vpack.c.bf16 %v1181, %v1153
        %v2600 = vpack.c.bf16 %v1174, %v1146
        %v2601 = vpack.c.bf16 %v1232, %v1204
        %v2602 = vpack.c.bf16 %v1233, %v1205
        %v2603 = vpack.c.bf16 %v1234, %v1206
        %v2604 = vpack.c.bf16 %v1235, %v1207
        %v2605 = vpack.c.bf16 %v1236, %v1208
        %v2606 = vpack.c.bf16 %v1237, %v1209
        %v2607 = vpack.c.bf16 %v1230, %v1202
        %v2608 = vpack.c.bf16 %v1288, %v1260
        %v2609 = vpack.c.bf16 %v1289, %v1261
        %v2610 = vpack.c.bf16 %v1290, %v1262
        %v2611 = vpack.c.bf16 %v1291, %v1263
        %v2612 = vpack.c.bf16 %v1292, %v1264
        %v2613 = vpack.c.bf16 %v1293, %v1265
        %v2614 = vpack.c.bf16 %v1286, %v1258
        %v2615 = vpack.c.bf16 %v1349, %v1318
        %v2616 = vpack.c.bf16 %v1350, %v1319
        %v2617 = vpack.c.bf16 %v1351, %v1320
        %v2618 = vpack.c.bf16 %v1352, %v1321
        %v2619 = vpack.c.bf16 %v1353, %v1322
        %v2620 = vpack.c.bf16 %v1354, %v1323
        %v2621 = vpack.c.bf16 %v1355, %v1324
        %v2622 = vpack.c.bf16 %v1840, %v1833
        %v2623 = vpack.c.bf16 %v1841, %v1834
        %v2624 = vpack.c.bf16 %v1842, %v1835
        %v2625 = vpack.c.bf16 %v1843, %v1836
        %v2626 = vpack.c.bf16 %v1844, %v1837
        %v2627 = vpack.c.bf16 %v1845, %v1838
        %v2628 = vpack.c.bf16 %v1846, %v1839
        %v2629 = vpack.c.bf16 %v1854, %v1847
        %v2630 = vpack.c.bf16 %v1855, %v1848
        %v2631 = vpack.c.bf16 %v1856, %v1849
        %v2632 = vpack.c.bf16 %v1857, %v1850
        %v2633 = vpack.c.bf16 %v1858, %v1851
        %v2634 = vpack.c.bf16 %v1859, %v1852
        %v2635 = vpack.c.bf16 %v1860, %v1853
        %v2636 = vpack.c.bf16 %v1868, %v1861
        %v2637 = vpack.c.bf16 %v1869, %v1862
        %v2638 = vpack.c.bf16 %v1870, %v1863
        %v2639 = vpack.c.bf16 %v1871, %v1864
        %v2640 = vpack.c.bf16 %v1872, %v1865
        %v2641 = vpack.c.bf16 %v1873, %v1866
        %v2642 = vpack.c.bf16 %v1874, %v1867
        %v2643 = vpack.c.bf16 %v1882, %v1875
        %v2644 = vpack.c.bf16 %v1883, %v1876
        %v2645 = vpack.c.bf16 %v1884, %v1877
        %v2646 = vpack.c.bf16 %v1885, %v1878
        %v2647 = vpack.c.bf16 %v1886, %v1879
        %v2648 = vpack.c.bf16 %v1887, %v1880
        %v2649 = vpack.c.bf16 %v1888, %v1881
        %v2650 = vpack.c.bf16 %v1896, %v1889
        %v2651 = vpack.c.bf16 %v1897, %v1890
        %v2652 = vpack.c.bf16 %v1898, %v1891
        %v2653 = vpack.c.bf16 %v1899, %v1892
        %v2654 = vpack.c.bf16 %v1900, %v1893
        %v2655 = vpack.c.bf16 %v1901, %v1894
        %v2656 = vpack.c.bf16 %v1902, %v1895
        %v2657 = vpack.c.bf16 %v1910, %v1903
        %v2658 = vpack.c.bf16 %v1911, %v1904
        %v2659 = vpack.c.bf16 %v1912, %v1905
        %v2660 = vpack.c.bf16 %v1913, %v1906
        %v2661 = vpack.c.bf16 %v1914, %v1907
        %v2662 = vpack.c.bf16 %v1915, %v1908
        %v2663 = vpack.c.bf16 %v1916, %v1909
        %v2664 = vpack.c.bf16 %v1924, %v1917
        %v2665 = vpack.c.bf16 %v1925, %v1918
        %v2666 = vpack.c.bf16 %v1926, %v1919
        %v2667 = vpack.c.bf16 %v1927, %v1920
        %v2668 = vpack.c.bf16 %v1928, %v1921
        %v2669 = vpack.c.bf16 %v1929, %v1922
        %v2670 = vpack.c.bf16 %v1930, %v1923
        %v2671 = vpack.c.bf16 %v1938, %v1931
        %v2672 = vpack.c.bf16 %v1939, %v1932
        %v2673 = vpack.c.bf16 %v1940, %v1933
        %v2674 = vpack.c.bf16 %v1941, %v1934
        %v2675 = vpack.c.bf16 %v1942, %v1935
        %v2676 = vpack.c.bf16 %v1943, %v1936
        %v2677 = vpack.c.bf16 %v1944, %v1937
        %v2678 = vpack.c.bf16 %v2321, %v2314
        %v2679 = vpack.c.bf16 %v2322, %v2315
        %v2680 = vpack.c.bf16 %v2323, %v2316
        %v2681 = vpack.c.bf16 %v2324, %v2317
        %v2682 = vpack.c.bf16 %v2325, %v2318
        %v2683 = vpack.c.bf16 %v2326, %v2319
        %v2684 = vpack.c.bf16 %v2327, %v2320
        %v2685 = vpack.c.bf16 %v2335, %v2328
        %v2686 = vpack.c.bf16 %v2336, %v2329
        %v2687 = vpack.c.bf16 %v2337, %v2330
        %v2688 = vpack.c.bf16 %v2338, %v2331
        %v2689 = vpack.c.bf16 %v2339, %v2332
        %v2690 = vpack.c.bf16 %v2340, %v2333
        %v2691 = vpack.c.bf16 %v2341, %v2334
        %v2692 = vpack.c.bf16 %v2349, %v2342
        %v2693 = vpack.c.bf16 %v2350, %v2343
        %v2694 = vpack.c.bf16 %v2351, %v2344
        %v2695 = vpack.c.bf16 %v2352, %v2345
        %v2696 = vpack.c.bf16 %v2353, %v2346
        %v2697 = vpack.c.bf16 %v2354, %v2347
        %v2698 = vpack.c.bf16 %v2355, %v2348
        %v2699 = vpack.c.bf16 %v2363, %v2356
        %v2700 = vpack.c.bf16 %v2364, %v2357
        %v2701 = vpack.c.bf16 %v2365, %v2358
        %v2702 = vpack.c.bf16 %v2366, %v2359
        %v2703 = vpack.c.bf16 %v2367, %v2360
        %v2704 = vpack.c.bf16 %v2368, %v2361
        %v2705 = vpack.c.bf16 %v2369, %v2362
        %v2706 = vpack.c.bf16 %v2377, %v2370
        %v2707 = vpack.c.bf16 %v2378, %v2371
        %v2708 = vpack.c.bf16 %v2379, %v2372
        %v2709 = vpack.c.bf16 %v2380, %v2373
        %v2710 = vpack.c.bf16 %v2381, %v2374
        %v2711 = vpack.c.bf16 %v2382, %v2375
        %v2712 = vpack.c.bf16 %v2383, %v2376
        %v2713 = vpack.c.bf16 %v2391, %v2384
        %v2714 = vpack.c.bf16 %v2392, %v2385
        %v2715 = vpack.c.bf16 %v2393, %v2386
        %v2716 = vpack.c.bf16 %v2394, %v2387
        %v2717 = vpack.c.bf16 %v2395, %v2388
        %v2718 = vpack.c.bf16 %v2396, %v2389
        %v2719 = vpack.c.bf16 %v2397, %v2390
        %v2720 = vpack.c.bf16 %v2405, %v2398
        %v2721 = vpack.c.bf16 %v2406, %v2399
        %v2722 = vpack.c.bf16 %v2407, %v2400
        %v2723 = vpack.c.bf16 %v2408, %v2401
        %v2724 = vpack.c.bf16 %v2409, %v2402
        %v2725 = vpack.c.bf16 %v2410, %v2403
        %v2726 = vpack.c.bf16 %v2411, %v2404
        %v2727 = vpack.c.bf16 %v2419, %v2412
        %v2728 = vpack.c.bf16 %v2420, %v2413
        %v2729 = vpack.c.bf16 %v2421, %v2414
        %v2730 = vpack.c.bf16 %v2422, %v2415
        %v2731 = vpack.c.bf16 %v2423, %v2416
        %v2732 = vpack.c.bf16 %v2424, %v2417
        %v2733 = vpack.c.bf16 %v2425, %v2418
        %v2734 = vpack.c.bf16 %v2553, %v2553
        %v2735 = vpack.c.bf16 %v2554, %v2554
        %v2736 = vpack.c.bf16 %v2555, %v2555
        %v2737 = vpack.c.bf16 %v2556, %v2556
        %v2738 = vpack.c.bf16 %v2557, %v2557
        %v2739 = vpack.c.bf16 %v2558, %v2558
        %v2740 = vpack.c.bf16 %v2551, %v2551
        %v2741 = vld [vmem:[%s2] sm:$0xff]
        %v2742 = vld [vmem:[%s2 + $0x8] sm:$0xff]
        %v2743 = vld [vmem:[%s2 + $0x10] sm:$0xff]
        %v2744 = vld [vmem:[%s2 + $0x18] sm:$0xff]
        %v2749 = vunpack.c.l.b16 %v2741
        %v2750 = vunpack.c.h.b16 %v2741
        %v2751 = vunpack.c.l.b16 %v2742
        %v2752 = vunpack.c.h.b16 %v2742
        %v2753 = vunpack.c.l.b16 %v2743
        %v2754 = vunpack.c.h.b16 %v2743
        %v2755 = vunpack.c.l.b16 %v2744
        %v2756 = vunpack.c.h.b16 %v2744
        %v2757 = vpack.c.b16 %v2753, %v2749
        %v2758 = vpack.c.b16 %v2754, %v2750
        %v2759 = vpack.c.b16 %v2755, %v2751
        %v2760 = vpack.c.b16 %v2756, %v2752
        %vm2764 = vcmask 64512
        %v2766 = vsel %vm2764, %v2760, 0
        %vm2768 = vcmask 1043456
        %v2770 = vsel %vm2768, %v2734, 0
        %v2773 = vsel %vm2768, %v2735, 0
        %v2776 = vsel %vm2768, %v2736, 0
        %v2779 = vsel %vm2768, %v2737, 0
        %v2782 = vsel %vm2768, %v2738, 0
        %v2785 = vsel %vm2768, %v2739, 0
        %v2788 = vsel %vm2768, %v2740, 0
        %2790 = vmatpush.bf16.msra.mxu0 %v2615
        %2791 = vmatpush.bf16.msra.mxu0 %v2608
        %2792 = vmatpush.bf16.msra.mxu0 %v2601
        %2793 = vmatpush.bf16.msra.mxu0 %v2594
        %2794 = vmatpush.bf16.msra.mxu0 %v2587
        %2795 = vmatpush.bf16.msra.mxu0 %v2580
        %2796 = vmatpush.bf16.msra.mxu0 %v2573
        %2797 = vmatpush.bf16.msra.mxu0 %v2566
        %2798 = vmatmul.bf16.gmra.mxu0 %v2757
        %v2799 = vpop.f32.mrf.mxu0
        %v2800 = vadd.f32 0.0, %v2799
        %v2801 = vpop.f32.mrf.mxu0
        %v2802 = vadd.f32 0.0, %v2801
        %2803 = vdwg.mxu0
        %2804 = vmatpush.bf16.msra.mxu0 %v2671
        %2805 = vmatpush.bf16.msra.mxu0 %v2664
        %2806 = vmatpush.bf16.msra.mxu0 %v2657
        %2807 = vmatpush.bf16.msra.mxu0 %v2650
        %2808 = vmatpush.bf16.msra.mxu0 %v2643
        %2809 = vmatpush.bf16.msra.mxu0 %v2636
        %2810 = vmatpush.bf16.msra.mxu0 %v2629
        %2811 = vmatpush.bf16.msra.mxu0 %v2622
        %2812 = vmatmul.bf16.gmra.mxu0 %v2758
        %v2813 = vpop.f32.mrf.mxu0
        %v2814 = vadd.f32 %v2800, %v2813
        %v2815 = vpop.f32.mrf.mxu0
        %v2816 = vadd.f32 %v2802, %v2815
        %2817 = vdwg.mxu0
        %2818 = vmatpush.bf16.msra.mxu0 %v2727
        %2819 = vmatpush.bf16.msra.mxu0 %v2720
        %2820 = vmatpush.bf16.msra.mxu0 %v2713
        %2821 = vmatpush.bf16.msra.mxu0 %v2706
        %2822 = vmatpush.bf16.msra.mxu0 %v2699
        %2823 = vmatpush.bf16.msra.mxu0 %v2692
        %2824 = vmatpush.bf16.msra.mxu0 %v2685
        %2825 = vmatpush.bf16.msra.mxu0 %v2678
        %2826 = vmatmul.bf16.gmra.mxu0 %v2759
        %v2827 = vpop.f32.mrf.mxu0
        %v2828 = vadd.f32 %v2814, %v2827
        %v2829 = vpop.f32.mrf.mxu0
        %v2830 = vadd.f32 %v2816, %v2829
        %2831 = vdwg.mxu0
        %2832 = vmatpush.bf16.msra.mxu0 0
        %2833 = vmatpush.bf16.msra.mxu0 0
        %2834 = vmatpush.bf16.msra.mxu0 0
        %2835 = vmatpush.bf16.msra.mxu0 0
        %2836 = vmatpush.bf16.msra.mxu0 0
        %2837 = vmatpush.bf16.msra.mxu0 0
        %2838 = vmatpush.bf16.msra.mxu0 0
        %2839 = vmatpush.bf16.msra.mxu0 %v2770
        %2840 = vmatmul.bf16.gmra.mxu0 %v2766
        %v2841 = vpop.f32.mrf.mxu0
        %v2842 = vadd.f32 %v2828, %v2841
        %v2843 = vpop.f32.mrf.mxu0
        %v2844 = vadd.f32 %v2830, %v2843
        %2845 = vdwg.mxu0
        %2846 = vmatpush.bf16.msra.mxu0 %v2616
        %2847 = vmatpush.bf16.msra.mxu0 %v2609
        %2848 = vmatpush.bf16.msra.mxu0 %v2602
        %2849 = vmatpush.bf16.msra.mxu0 %v2595
        %2850 = vmatpush.bf16.msra.mxu0 %v2588
        %2851 = vmatpush.bf16.msra.mxu0 %v2581
        %2852 = vmatpush.bf16.msra.mxu0 %v2574
        %2853 = vmatpush.bf16.msra.mxu0 %v2567
        %2854 = vmatmul.bf16.gmra.mxu0 %v2757
        %v2855 = vpop.f32.mrf.mxu0
        %v2856 = vadd.f32 0.0, %v2855
        %v2857 = vpop.f32.mrf.mxu0
        %v2858 = vadd.f32 0.0, %v2857
        %2859 = vdwg.mxu0
        %2860 = vmatpush.bf16.msra.mxu0 %v2672
        %2861 = vmatpush.bf16.msra.mxu0 %v2665
        %2862 = vmatpush.bf16.msra.mxu0 %v2658
        %2863 = vmatpush.bf16.msra.mxu0 %v2651
        %2864 = vmatpush.bf16.msra.mxu0 %v2644
        %2865 = vmatpush.bf16.msra.mxu0 %v2637
        %2866 = vmatpush.bf16.msra.mxu0 %v2630
        %2867 = vmatpush.bf16.msra.mxu0 %v2623
        %2868 = vmatmul.bf16.gmra.mxu0 %v2758
        %v2869 = vpop.f32.mrf.mxu0
        %v2870 = vadd.f32 %v2856, %v2869
        %v2871 = vpop.f32.mrf.mxu0
        %v2872 = vadd.f32 %v2858, %v2871
        %2873 = vdwg.mxu0
        %2874 = vmatpush.bf16.msra.mxu0 %v2728
        %2875 = vmatpush.bf16.msra.mxu0 %v2721
        %2876 = vmatpush.bf16.msra.mxu0 %v2714
        %2877 = vmatpush.bf16.msra.mxu0 %v2707
        %2878 = vmatpush.bf16.msra.mxu0 %v2700
        %2879 = vmatpush.bf16.msra.mxu0 %v2693
        %2880 = vmatpush.bf16.msra.mxu0 %v2686
        %2881 = vmatpush.bf16.msra.mxu0 %v2679
        %2882 = vmatmul.bf16.gmra.mxu0 %v2759
        %v2883 = vpop.f32.mrf.mxu0
        %v2884 = vadd.f32 %v2870, %v2883
        %v2885 = vpop.f32.mrf.mxu0
        %v2886 = vadd.f32 %v2872, %v2885
        %2887 = vdwg.mxu0
        %2888 = vmatpush.bf16.msra.mxu0 0
        %2889 = vmatpush.bf16.msra.mxu0 0
        %2890 = vmatpush.bf16.msra.mxu0 0
        %2891 = vmatpush.bf16.msra.mxu0 0
        %2892 = vmatpush.bf16.msra.mxu0 0
        %2893 = vmatpush.bf16.msra.mxu0 0
        %2894 = vmatpush.bf16.msra.mxu0 0
        %2895 = vmatpush.bf16.msra.mxu0 %v2773
        %2896 = vmatmul.bf16.gmra.mxu0 %v2766
        %v2897 = vpop.f32.mrf.mxu0
        %v2898 = vadd.f32 %v2884, %v2897
        %v2899 = vpop.f32.mrf.mxu0
        %v2900 = vadd.f32 %v2886, %v2899
        %2901 = vdwg.mxu0
        %2902 = vmatpush.bf16.msra.mxu0 %v2617
        %2903 = vmatpush.bf16.msra.mxu0 %v2610
        %2904 = vmatpush.bf16.msra.mxu0 %v2603
        %2905 = vmatpush.bf16.msra.mxu0 %v2596
        %2906 = vmatpush.bf16.msra.mxu0 %v2589
        %2907 = vmatpush.bf16.msra.mxu0 %v2582
        %2908 = vmatpush.bf16.msra.mxu0 %v2575
        %2909 = vmatpush.bf16.msra.mxu0 %v2568
        %2910 = vmatmul.bf16.gmra.mxu0 %v2757
        %v2911 = vpop.f32.mrf.mxu0
        %v2912 = vadd.f32 0.0, %v2911
        %v2913 = vpop.f32.mrf.mxu0
        %v2914 = vadd.f32 0.0, %v2913
        %2915 = vdwg.mxu0
        %2916 = vmatpush.bf16.msra.mxu0 %v2673
        %2917 = vmatpush.bf16.msra.mxu0 %v2666
        %2918 = vmatpush.bf16.msra.mxu0 %v2659
        %2919 = vmatpush.bf16.msra.mxu0 %v2652
        %2920 = vmatpush.bf16.msra.mxu0 %v2645
        %2921 = vmatpush.bf16.msra.mxu0 %v2638
        %2922 = vmatpush.bf16.msra.mxu0 %v2631
        %2923 = vmatpush.bf16.msra.mxu0 %v2624
        %2924 = vmatmul.bf16.gmra.mxu0 %v2758
        %v2925 = vpop.f32.mrf.mxu0
        %v2926 = vadd.f32 %v2912, %v2925
        %v2927 = vpop.f32.mrf.mxu0
        %v2928 = vadd.f32 %v2914, %v2927
        %2929 = vdwg.mxu0
        %2930 = vmatpush.bf16.msra.mxu0 %v2729
        %2931 = vmatpush.bf16.msra.mxu0 %v2722
        %2932 = vmatpush.bf16.msra.mxu0 %v2715
        %2933 = vmatpush.bf16.msra.mxu0 %v2708
        %2934 = vmatpush.bf16.msra.mxu0 %v2701
        %2935 = vmatpush.bf16.msra.mxu0 %v2694
        %2936 = vmatpush.bf16.msra.mxu0 %v2687
        %2937 = vmatpush.bf16.msra.mxu0 %v2680
        %2938 = vmatmul.bf16.gmra.mxu0 %v2759
        %v2939 = vpop.f32.mrf.mxu0
        %v2940 = vadd.f32 %v2926, %v2939
        %v2941 = vpop.f32.mrf.mxu0
        %v2942 = vadd.f32 %v2928, %v2941
        %2943 = vdwg.mxu0
        %2944 = vmatpush.bf16.msra.mxu0 0
        %2945 = vmatpush.bf16.msra.mxu0 0
        %2946 = vmatpush.bf16.msra.mxu0 0
        %2947 = vmatpush.bf16.msra.mxu0 0
        %2948 = vmatpush.bf16.msra.mxu0 0
        %2949 = vmatpush.bf16.msra.mxu0 0
        %2950 = vmatpush.bf16.msra.mxu0 0
        %2951 = vmatpush.bf16.msra.mxu0 %v2776
        %2952 = vmatmul.bf16.gmra.mxu0 %v2766
        %v2953 = vpop.f32.mrf.mxu0
        %v2954 = vadd.f32 %v2940, %v2953
        %v2955 = vpop.f32.mrf.mxu0
        %v2956 = vadd.f32 %v2942, %v2955
        %2957 = vdwg.mxu0
        %2958 = vmatpush.bf16.msra.mxu0 %v2618
        %2959 = vmatpush.bf16.msra.mxu0 %v2611
        %2960 = vmatpush.bf16.msra.mxu0 %v2604
        %2961 = vmatpush.bf16.msra.mxu0 %v2597
        %2962 = vmatpush.bf16.msra.mxu0 %v2590
        %2963 = vmatpush.bf16.msra.mxu0 %v2583
        %2964 = vmatpush.bf16.msra.mxu0 %v2576
        %2965 = vmatpush.bf16.msra.mxu0 %v2569
        %2966 = vmatmul.bf16.gmra.mxu0 %v2757
        %v2967 = vpop.f32.mrf.mxu0
        %v2968 = vadd.f32 0.0, %v2967
        %v2969 = vpop.f32.mrf.mxu0
        %v2970 = vadd.f32 0.0, %v2969
        %2971 = vdwg.mxu0
        %2972 = vmatpush.bf16.msra.mxu0 %v2674
        %2973 = vmatpush.bf16.msra.mxu0 %v2667
        %2974 = vmatpush.bf16.msra.mxu0 %v2660
        %2975 = vmatpush.bf16.msra.mxu0 %v2653
        %2976 = vmatpush.bf16.msra.mxu0 %v2646
        %2977 = vmatpush.bf16.msra.mxu0 %v2639
        %2978 = vmatpush.bf16.msra.mxu0 %v2632
        %2979 = vmatpush.bf16.msra.mxu0 %v2625
        %2980 = vmatmul.bf16.gmra.mxu0 %v2758
        %v2981 = vpop.f32.mrf.mxu0
        %v2982 = vadd.f32 %v2968, %v2981
        %v2983 = vpop.f32.mrf.mxu0
        %v2984 = vadd.f32 %v2970, %v2983
        %2985 = vdwg.mxu0
        %2986 = vmatpush.bf16.msra.mxu0 %v2730
        %2987 = vmatpush.bf16.msra.mxu0 %v2723
        %2988 = vmatpush.bf16.msra.mxu0 %v2716
        %2989 = vmatpush.bf16.msra.mxu0 %v2709
        %2990 = vmatpush.bf16.msra.mxu0 %v2702
        %2991 = vmatpush.bf16.msra.mxu0 %v2695
        %2992 = vmatpush.bf16.msra.mxu0 %v2688
        %2993 = vmatpush.bf16.msra.mxu0 %v2681
        %2994 = vmatmul.bf16.gmra.mxu0 %v2759
        %v2995 = vpop.f32.mrf.mxu0
        %v2996 = vadd.f32 %v2982, %v2995
        %v2997 = vpop.f32.mrf.mxu0
        %v2998 = vadd.f32 %v2984, %v2997
        %2999 = vdwg.mxu0
        %3000 = vmatpush.bf16.msra.mxu0 0
        %3001 = vmatpush.bf16.msra.mxu0 0
        %3002 = vmatpush.bf16.msra.mxu0 0
        %3003 = vmatpush.bf16.msra.mxu0 0
        %3004 = vmatpush.bf16.msra.mxu0 0
        %3005 = vmatpush.bf16.msra.mxu0 0
        %3006 = vmatpush.bf16.msra.mxu0 0
        %3007 = vmatpush.bf16.msra.mxu0 %v2779
        %3008 = vmatmul.bf16.gmra.mxu0 %v2766
        %v3009 = vpop.f32.mrf.mxu0
        %v3010 = vadd.f32 %v2996, %v3009
        %v3011 = vpop.f32.mrf.mxu0
        %v3012 = vadd.f32 %v2998, %v3011
        %3013 = vdwg.mxu0
        %3014 = vmatpush.bf16.msra.mxu0 %v2619
        %3015 = vmatpush.bf16.msra.mxu0 %v2612
        %3016 = vmatpush.bf16.msra.mxu0 %v2605
        %3017 = vmatpush.bf16.msra.mxu0 %v2598
        %3018 = vmatpush.bf16.msra.mxu0 %v2591
        %3019 = vmatpush.bf16.msra.mxu0 %v2584
        %3020 = vmatpush.bf16.msra.mxu0 %v2577
        %3021 = vmatpush.bf16.msra.mxu0 %v2570
        %3022 = vmatmul.bf16.gmra.mxu0 %v2757
        %v3023 = vpop.f32.mrf.mxu0
        %v3024 = vadd.f32 0.0, %v3023
        %v3025 = vpop.f32.mrf.mxu0
        %v3026 = vadd.f32 0.0, %v3025
        %3027 = vdwg.mxu0
        %3028 = vmatpush.bf16.msra.mxu0 %v2675
        %3029 = vmatpush.bf16.msra.mxu0 %v2668
        %3030 = vmatpush.bf16.msra.mxu0 %v2661
        %3031 = vmatpush.bf16.msra.mxu0 %v2654
        %3032 = vmatpush.bf16.msra.mxu0 %v2647
        %3033 = vmatpush.bf16.msra.mxu0 %v2640
        %3034 = vmatpush.bf16.msra.mxu0 %v2633
        %3035 = vmatpush.bf16.msra.mxu0 %v2626
        %3036 = vmatmul.bf16.gmra.mxu0 %v2758
        %v3037 = vpop.f32.mrf.mxu0
        %v3038 = vadd.f32 %v3024, %v3037
        %v3039 = vpop.f32.mrf.mxu0
        %v3040 = vadd.f32 %v3026, %v3039
        %3041 = vdwg.mxu0
        %3042 = vmatpush.bf16.msra.mxu0 %v2731
        %3043 = vmatpush.bf16.msra.mxu0 %v2724
        %3044 = vmatpush.bf16.msra.mxu0 %v2717
        %3045 = vmatpush.bf16.msra.mxu0 %v2710
        %3046 = vmatpush.bf16.msra.mxu0 %v2703
        %3047 = vmatpush.bf16.msra.mxu0 %v2696
        %3048 = vmatpush.bf16.msra.mxu0 %v2689
        %3049 = vmatpush.bf16.msra.mxu0 %v2682
        %3050 = vmatmul.bf16.gmra.mxu0 %v2759
        %v3051 = vpop.f32.mrf.mxu0
        %v3052 = vadd.f32 %v3038, %v3051
        %v3053 = vpop.f32.mrf.mxu0
        %v3054 = vadd.f32 %v3040, %v3053
        %3055 = vdwg.mxu0
        %3056 = vmatpush.bf16.msra.mxu0 0
        %3057 = vmatpush.bf16.msra.mxu0 0
        %3058 = vmatpush.bf16.msra.mxu0 0
        %3059 = vmatpush.bf16.msra.mxu0 0
        %3060 = vmatpush.bf16.msra.mxu0 0
        %3061 = vmatpush.bf16.msra.mxu0 0
        %3062 = vmatpush.bf16.msra.mxu0 0
        %3063 = vmatpush.bf16.msra.mxu0 %v2782
        %3064 = vmatmul.bf16.gmra.mxu0 %v2766
        %v3065 = vpop.f32.mrf.mxu0
        %v3066 = vadd.f32 %v3052, %v3065
        %v3067 = vpop.f32.mrf.mxu0
        %v3068 = vadd.f32 %v3054, %v3067
        %3069 = vdwg.mxu0
        %3070 = vmatpush.bf16.msra.mxu0 %v2620
        %3071 = vmatpush.bf16.msra.mxu0 %v2613
        %3072 = vmatpush.bf16.msra.mxu0 %v2606
        %3073 = vmatpush.bf16.msra.mxu0 %v2599
        %3074 = vmatpush.bf16.msra.mxu0 %v2592
        %3075 = vmatpush.bf16.msra.mxu0 %v2585
        %3076 = vmatpush.bf16.msra.mxu0 %v2578
        %3077 = vmatpush.bf16.msra.mxu0 %v2571
        %3078 = vmatmul.bf16.gmra.mxu0 %v2757
        %v3079 = vpop.f32.mrf.mxu0
        %v3080 = vadd.f32 0.0, %v3079
        %v3081 = vpop.f32.mrf.mxu0
        %v3082 = vadd.f32 0.0, %v3081
        %3083 = vdwg.mxu0
        %3084 = vmatpush.bf16.msra.mxu0 %v2676
        %3085 = vmatpush.bf16.msra.mxu0 %v2669
        %3086 = vmatpush.bf16.msra.mxu0 %v2662
        %3087 = vmatpush.bf16.msra.mxu0 %v2655
        %3088 = vmatpush.bf16.msra.mxu0 %v2648
        %3089 = vmatpush.bf16.msra.mxu0 %v2641
        %3090 = vmatpush.bf16.msra.mxu0 %v2634
        %3091 = vmatpush.bf16.msra.mxu0 %v2627
        %3092 = vmatmul.bf16.gmra.mxu0 %v2758
        %v3093 = vpop.f32.mrf.mxu0
        %v3094 = vadd.f32 %v3080, %v3093
        %v3095 = vpop.f32.mrf.mxu0
        %v3096 = vadd.f32 %v3082, %v3095
        %3097 = vdwg.mxu0
        %3098 = vmatpush.bf16.msra.mxu0 %v2732
        %3099 = vmatpush.bf16.msra.mxu0 %v2725
        %3100 = vmatpush.bf16.msra.mxu0 %v2718
        %3101 = vmatpush.bf16.msra.mxu0 %v2711
        %3102 = vmatpush.bf16.msra.mxu0 %v2704
        %3103 = vmatpush.bf16.msra.mxu0 %v2697
        %3104 = vmatpush.bf16.msra.mxu0 %v2690
        %3105 = vmatpush.bf16.msra.mxu0 %v2683
        %3106 = vmatmul.bf16.gmra.mxu0 %v2759
        %v3107 = vpop.f32.mrf.mxu0
        %v3108 = vadd.f32 %v3094, %v3107
        %v3109 = vpop.f32.mrf.mxu0
        %v3110 = vadd.f32 %v3096, %v3109
        %3111 = vdwg.mxu0
        %3112 = vmatpush.bf16.msra.mxu0 0
        %3113 = vmatpush.bf16.msra.mxu0 0
        %3114 = vmatpush.bf16.msra.mxu0 0
        %3115 = vmatpush.bf16.msra.mxu0 0
        %3116 = vmatpush.bf16.msra.mxu0 0
        %3117 = vmatpush.bf16.msra.mxu0 0
        %3118 = vmatpush.bf16.msra.mxu0 0
        %3119 = vmatpush.bf16.msra.mxu0 %v2785
        %3120 = vmatmul.bf16.gmra.mxu0 %v2766
        %v3121 = vpop.f32.mrf.mxu0
        %v3122 = vadd.f32 %v3108, %v3121
        %v3123 = vpop.f32.mrf.mxu0
        %v3124 = vadd.f32 %v3110, %v3123
        %3125 = vdwg.mxu0
        %3126 = vmatpush.bf16.msra.mxu0 %v2621
        %3127 = vmatpush.bf16.msra.mxu0 %v2614
        %3128 = vmatpush.bf16.msra.mxu0 %v2607
        %3129 = vmatpush.bf16.msra.mxu0 %v2600
        %3130 = vmatpush.bf16.msra.mxu0 %v2593
        %3131 = vmatpush.bf16.msra.mxu0 %v2586
        %3132 = vmatpush.bf16.msra.mxu0 %v2579
        %3133 = vmatpush.bf16.msra.mxu0 %v2572
        %3134 = vmatmul.bf16.gmra.mxu0 %v2757
        %v3135 = vpop.f32.mrf.mxu0
        %v3136 = vadd.f32 0.0, %v3135
        %v3137 = vpop.f32.mrf.mxu0
        %v3138 = vadd.f32 0.0, %v3137
        %3139 = vdwg.mxu0
        %3140 = vmatpush.bf16.msra.mxu0 %v2677
        %3141 = vmatpush.bf16.msra.mxu0 %v2670
        %3142 = vmatpush.bf16.msra.mxu0 %v2663
        %3143 = vmatpush.bf16.msra.mxu0 %v2656
        %3144 = vmatpush.bf16.msra.mxu0 %v2649
        %3145 = vmatpush.bf16.msra.mxu0 %v2642
        %3146 = vmatpush.bf16.msra.mxu0 %v2635
        %3147 = vmatpush.bf16.msra.mxu0 %v2628
        %3148 = vmatmul.bf16.gmra.mxu0 %v2758
        %v3149 = vpop.f32.mrf.mxu0
        %v3150 = vadd.f32 %v3136, %v3149
        %v3151 = vpop.f32.mrf.mxu0
        %v3152 = vadd.f32 %v3138, %v3151
        %3153 = vdwg.mxu0
        %3154 = vmatpush.bf16.msra.mxu0 %v2733
        %3155 = vmatpush.bf16.msra.mxu0 %v2726
        %3156 = vmatpush.bf16.msra.mxu0 %v2719
        %3157 = vmatpush.bf16.msra.mxu0 %v2712
        %3158 = vmatpush.bf16.msra.mxu0 %v2705
        %3159 = vmatpush.bf16.msra.mxu0 %v2698
        %3160 = vmatpush.bf16.msra.mxu0 %v2691
        %3161 = vmatpush.bf16.msra.mxu0 %v2684
        %3162 = vmatmul.bf16.gmra.mxu0 %v2759
        %v3163 = vpop.f32.mrf.mxu0
        %v3164 = vadd.f32 %v3150, %v3163
        %v3165 = vpop.f32.mrf.mxu0
        %v3166 = vadd.f32 %v3152, %v3165
        %3167 = vdwg.mxu0
        %3168 = vmatpush.bf16.msra.mxu0 0
        %3169 = vmatpush.bf16.msra.mxu0 0
        %3170 = vmatpush.bf16.msra.mxu0 0
        %3171 = vmatpush.bf16.msra.mxu0 0
        %3172 = vmatpush.bf16.msra.mxu0 0
        %3173 = vmatpush.bf16.msra.mxu0 0
        %3174 = vmatpush.bf16.msra.mxu0 0
        %3175 = vmatpush.bf16.msra.mxu0 %v2788
        %3176 = vmatmul.bf16.gmra.mxu0 %v2766
        %v3177 = vpop.f32.mrf.mxu0
        %v3178 = vadd.f32 %v3164, %v3177
        %v3179 = vpop.f32.mrf.mxu0
        %v3180 = vadd.f32 %v3166, %v3179
        %3181 = vdwg.mxu0
        %v3182 = vld [vmem:[%s3] sm:$0xff]
        %v3183 = vld [vmem:[%s3 + $0x8] sm:$0xff]
        %3185 = vset.pattern.permute.xlu0 0
        %3186 = vperm.xlu0 %3185, %v3182
        %v3187 = vpop.permute.xlu0 %3186
        %3190 = vset.pattern.permute.xlu0 0
        %3191 = vperm.xlu0 %3190, %v3183
        %v3192 = vpop.permute.xlu0 %3191
        %v3194 = vmul.f32 %v2842, %v3187
        %v3195 = vmul.f32 %v2898, %v3187
        %v3196 = vmul.f32 %v2954, %v3187
        %v3197 = vmul.f32 %v3010, %v3187
        %v3198 = vmul.f32 %v3066, %v3187
        %v3199 = vmul.f32 %v3122, %v3187
        %v3200 = vmul.f32 %v3178, %v3187
        %v3201 = vmul.f32 %v2844, %v3192
        %v3202 = vmul.f32 %v2900, %v3192
        %v3203 = vmul.f32 %v2956, %v3192
        %v3204 = vmul.f32 %v3012, %v3192
        %v3205 = vmul.f32 %v3068, %v3192
        %v3206 = vmul.f32 %v3124, %v3192
        %v3207 = vmul.f32 %v3180, %v3192
        %v3208 = vld [vmem:[%s4] sm:$0xff]
        %v3209 = vld [vmem:[%s4 + $0x8] sm:$0xff]
        %3211 = vset.pattern.permute.xlu0 0
        %3212 = vperm.xlu0 %3211, %v3208
        %v3213 = vpop.permute.xlu0 %3212
        %3216 = vset.pattern.permute.xlu0 0
        %3217 = vperm.xlu0 %3216, %v3209
        %v3218 = vpop.permute.xlu0 %3217
        %v3220 = vadd.f32 %v3194, %v3213
        %v3221 = vadd.f32 %v3195, %v3213
        %v3222 = vadd.f32 %v3196, %v3213
        %v3223 = vadd.f32 %v3197, %v3213
        %v3224 = vadd.f32 %v3198, %v3213
        %v3225 = vadd.f32 %v3199, %v3213
        %v3226 = vadd.f32 %v3200, %v3213
        %v3227 = vadd.f32 %v3201, %v3218
        %v3228 = vadd.f32 %v3202, %v3218
        %v3229 = vadd.f32 %v3203, %v3218
        %v3230 = vadd.f32 %v3204, %v3218
        %v3231 = vadd.f32 %v3205, %v3218
        %v3232 = vadd.f32 %v3206, %v3218
        %v3233 = vadd.f32 %v3207, %v3218
        %vm3234 = vcmp.ge.f32.partialorder %v3220, 0.0
        %vm3235 = vcmp.ge.f32.partialorder %v3221, 0.0
        %vm3236 = vcmp.ge.f32.partialorder %v3222, 0.0
        %vm3237 = vcmp.ge.f32.partialorder %v3223, 0.0
        %vm3238 = vcmp.ge.f32.partialorder %v3224, 0.0
        %vm3239 = vcmp.ge.f32.partialorder %v3225, 0.0
        %vm3240 = vcmp.ge.f32.partialorder %v3226, 0.0
        %vm3241 = vcmp.ge.f32.partialorder %v3227, 0.0
        %vm3242 = vcmp.ge.f32.partialorder %v3228, 0.0
        %vm3243 = vcmp.ge.f32.partialorder %v3229, 0.0
        %vm3244 = vcmp.ge.f32.partialorder %v3230, 0.0
        %vm3245 = vcmp.ge.f32.partialorder %v3231, 0.0
        %vm3246 = vcmp.ge.f32.partialorder %v3232, 0.0
        %vm3247 = vcmp.ge.f32.partialorder %v3233, 0.0
        %v3248 = vmul.f32 %v3220, 0.01
        %v3249 = vmul.f32 %v3221, 0.01
        %v3250 = vmul.f32 %v3222, 0.01
        %v3251 = vmul.f32 %v3223, 0.01
        %v3252 = vmul.f32 %v3224, 0.01
        %v3253 = vmul.f32 %v3225, 0.01
        %v3254 = vmul.f32 %v3226, 0.01
        %v3255 = vmul.f32 %v3227, 0.01
        %v3256 = vmul.f32 %v3228, 0.01
        %v3257 = vmul.f32 %v3229, 0.01
        %v3258 = vmul.f32 %v3230, 0.01
        %v3259 = vmul.f32 %v3231, 0.01
        %v3260 = vmul.f32 %v3232, 0.01
        %v3261 = vmul.f32 %v3233, 0.01
        %v3262 = vsel %vm3234, %v3220, %v3248
        %v3263 = vsel %vm3235, %v3221, %v3249
        %v3264 = vsel %vm3236, %v3222, %v3250
        %v3265 = vsel %vm3237, %v3223, %v3251
        %v3266 = vsel %vm3238, %v3224, %v3252
        %v3267 = vsel %vm3239, %v3225, %v3253
        %v3268 = vsel %vm3240, %v3226, %v3254
        %v3269 = vsel %vm3241, %v3227, %v3255
        %v3270 = vsel %vm3242, %v3228, %v3256
        %v3271 = vsel %vm3243, %v3229, %v3257
        %v3272 = vsel %vm3244, %v3230, %v3258
        %v3273 = vsel %vm3245, %v3231, %v3259
        %v3274 = vsel %vm3246, %v3232, %v3260
        %v3275 = vsel %vm3247, %v3233, %v3261
        %3290 = vrot.lane.b32.xlu0 %v3262, 127
        %v3291 = vpop.permute.xlu0 %3290
        %3292 = vrot.lane.b32.xlu0 %v3263, 127
        %v3293 = vpop.permute.xlu0 %3292
        %3294 = vrot.lane.b32.xlu0 %v3264, 127
        %v3295 = vpop.permute.xlu0 %3294
        %3296 = vrot.lane.b32.xlu0 %v3265, 127
        %v3297 = vpop.permute.xlu0 %3296
        %3298 = vrot.lane.b32.xlu0 %v3266, 127
        %v3299 = vpop.permute.xlu0 %3298
        %3300 = vrot.lane.b32.xlu0 %v3267, 127
        %v3301 = vpop.permute.xlu0 %3300
        %3302 = vrot.lane.b32.xlu0 %v3268, 127
        %v3303 = vpop.permute.xlu0 %3302
        %3304 = vrot.lane.b32.xlu0 %v3269, 127
        %v3305 = vpop.permute.xlu0 %3304
        %3306 = vrot.lane.b32.xlu0 %v3270, 127
        %v3307 = vpop.permute.xlu0 %3306
        %3308 = vrot.lane.b32.xlu0 %v3271, 127
        %v3309 = vpop.permute.xlu0 %3308
        %3310 = vrot.lane.b32.xlu0 %v3272, 127
        %v3311 = vpop.permute.xlu0 %3310
        %3312 = vrot.lane.b32.xlu0 %v3273, 127
        %v3313 = vpop.permute.xlu0 %3312
        %3314 = vrot.lane.b32.xlu0 %v3274, 127
        %v3315 = vpop.permute.xlu0 %3314
        %3316 = vrot.lane.b32.xlu0 %v3275, 127
        %v3317 = vpop.permute.xlu0 %3316
        %v3318 = vsel %vm952, %v3291, %v3293
        %v3319 = vsel %vm952, %v3293, %v3295
        %v3320 = vsel %vm952, %v3295, %v3297
        %v3321 = vsel %vm952, %v3297, %v3299
        %v3322 = vsel %vm952, %v3299, %v3301
        %v3323 = vsel %vm952, %v3301, %v3303
        %v3324 = vsel %vm952, %v3305, %v3307
        %v3325 = vsel %vm952, %v3307, %v3309
        %v3326 = vsel %vm952, %v3309, %v3311
        %v3327 = vsel %vm952, %v3311, %v3313
        %v3328 = vsel %vm952, %v3313, %v3315
        %v3329 = vsel %vm952, %v3315, %v3317
        %v3344 = vmax.f32 %v3262, %v3318
        %v3345 = vmax.f32 %v3263, %v3319
        %v3346 = vmax.f32 %v3264, %v3320
        %v3347 = vmax.f32 %v3265, %v3321
        %v3348 = vmax.f32 %v3266, %v3322
        %v3349 = vmax.f32 %v3267, %v3323
        %v3350 = vmax.f32 %v3268, %v3303
        %v3351 = vmax.f32 %v3269, %v3324
        %v3352 = vmax.f32 %v3270, %v3325
        %v3353 = vmax.f32 %v3271, %v3326
        %v3354 = vmax.f32 %v3272, %v3327
        %v3355 = vmax.f32 %v3273, %v3328
        %v3356 = vmax.f32 %v3274, %v3329
        %v3357 = vmax.f32 %v3275, %v3317
        %3372 = vrot.lane.b32.xlu0 %v3344, 106
        %v3373 = vpop.permute.xlu0 %3372
        %3374 = vrot.lane.b32.xlu0 %v3345, 106
        %v3375 = vpop.permute.xlu0 %3374
        %3376 = vrot.lane.b32.xlu0 %v3346, 106
        %v3377 = vpop.permute.xlu0 %3376
        %3378 = vrot.lane.b32.xlu0 %v3347, 106
        %v3379 = vpop.permute.xlu0 %3378
        %3380 = vrot.lane.b32.xlu0 %v3348, 106
        %v3381 = vpop.permute.xlu0 %3380
        %3382 = vrot.lane.b32.xlu0 %v3349, 106
        %v3383 = vpop.permute.xlu0 %3382
        %3384 = vrot.lane.b32.xlu0 %v3350, 106
        %v3385 = vpop.permute.xlu0 %3384
        %3386 = vrot.lane.b32.xlu0 %v3351, 106
        %v3387 = vpop.permute.xlu0 %3386
        %3388 = vrot.lane.b32.xlu0 %v3352, 106
        %v3389 = vpop.permute.xlu0 %3388
        %3390 = vrot.lane.b32.xlu0 %v3353, 106
        %v3391 = vpop.permute.xlu0 %3390
        %3392 = vrot.lane.b32.xlu0 %v3354, 106
        %v3393 = vpop.permute.xlu0 %3392
        %3394 = vrot.lane.b32.xlu0 %v3355, 106
        %v3395 = vpop.permute.xlu0 %3394
        %3396 = vrot.lane.b32.xlu0 %v3356, 106
        %v3397 = vpop.permute.xlu0 %3396
        %3398 = vrot.lane.b32.xlu0 %v3357, 106
        %v3399 = vpop.permute.xlu0 %3398
        %v3400 = vsel %vm1119, %v3373, %v3375
        %v3401 = vsel %vm1119, %v3375, %v3377
        %v3402 = vsel %vm1119, %v3377, %v3379
        %v3403 = vsel %vm1119, %v3379, %v3381
        %v3404 = vsel %vm1119, %v3381, %v3383
        %v3405 = vsel %vm1119, %v3383, %v3385
        %v3406 = vsel %vm1119, %v3387, %v3389
        %v3407 = vsel %vm1119, %v3389, %v3391
        %v3408 = vsel %vm1119, %v3391, %v3393
        %v3409 = vsel %vm1119, %v3393, %v3395
        %v3410 = vsel %vm1119, %v3395, %v3397
        %v3411 = vsel %vm1119, %v3397, %v3399
        %v3426 = vmax.f32 %v3344, %v3400
        %v3427 = vmax.f32 %v3345, %v3401
        %v3428 = vmax.f32 %v3346, %v3402
        %v3429 = vmax.f32 %v3347, %v3403
        %v3430 = vmax.f32 %v3348, %v3404
        %v3431 = vmax.f32 %v3349, %v3405
        %v3432 = vmax.f32 %v3350, %v3385
        %v3433 = vmax.f32 %v3351, %v3406
        %v3434 = vmax.f32 %v3352, %v3407
        %v3435 = vmax.f32 %v3353, %v3408
        %v3436 = vmax.f32 %v3354, %v3409
        %v3437 = vmax.f32 %v3355, %v3410
        %v3438 = vmax.f32 %v3356, %v3411
        %v3439 = vmax.f32 %v3357, %v3399
        %v3440 = vpack.c.bf16 %v3433, %v3426
        %v3441 = vpack.c.bf16 %v3434, %v3427
        %v3442 = vpack.c.bf16 %v3435, %v3428
        %v3443 = vld [vmem:[%s5] sm:$0xff]
        %v3444 = vld [vmem:[%s5 + $0x8] sm:$0xff]
        %v3445 = vld [vmem:[%s5 + $0x10] sm:$0xff]
        %v3446 = vld [vmem:[%s5 + $0x18] sm:$0xff]
        %v3447 = vld [vmem:[%s5 + $0x20] sm:$0xff]
        %v3448 = vld [vmem:[%s5 + $0x28] sm:$0xff]
        %v3449 = vld [vmem:[%s5 + $0x30] sm:$0xff]
        %v3450 = vld [vmem:[%s5 + $0x38] sm:$0xff]
        %v3451 = vld [vmem:[%s5 + $0x40] sm:$0xff]
        %v3452 = vld [vmem:[%s5 + $0x48] sm:$0xff]
        %v3453 = vld [vmem:[%s5 + $0x50] sm:$0xff]
        %v3454 = vld [vmem:[%s5 + $0x58] sm:$0xff]
        %v3455 = vld [vmem:[%s5 + $0x60] sm:$0xff]
        %v3456 = vld [vmem:[%s5 + $0x68] sm:$0xff]
        %v3457 = vld [vmem:[%s5 + $0x70] sm:$0xff]
        %v3458 = vld [vmem:[%s5 + $0x78] sm:$0xff]
        %v3459 = vld [vmem:[%s5 + $0x80] sm:$0xff]
        %v3460 = vld [vmem:[%s5 + $0x88] sm:$0xff]
        %v3461 = vld [vmem:[%s5 + $0x90] sm:$0xff]
        %v3462 = vld [vmem:[%s5 + $0x98] sm:$0xff]
        %v3463 = vld [vmem:[%s5 + $0xa0] sm:$0xff]
        %v3464 = vld [vmem:[%s5 + $0xa8] sm:$0xff]
        %v3465 = vld [vmem:[%s5 + $0xb0] sm:$0xff]
        %v3466 = vld [vmem:[%s5 + $0xb8] sm:$0xff]
        %v3467 = vld [vmem:[%s5 + $0xc0] sm:$0xff]
        %v3468 = vld [vmem:[%s5 + $0xc8] sm:$0xff]
        %v3469 = vld [vmem:[%s5 + $0xd0] sm:$0xff]
        %v3470 = vld [vmem:[%s5 + $0xd8] sm:$0xff]
        %v3471 = vld [vmem:[%s5 + $0xe0] sm:$0xff]
        %v3472 = vld [vmem:[%s5 + $0xe8] sm:$0xff]
        %v3473 = vld [vmem:[%s5 + $0xf0] sm:$0xff]
        %v3474 = vld [vmem:[%s5 + $0xf8] sm:$0xff]
        %v3475 = vld [vmem:[%s5 + $0x100] sm:$0xff]
        %v3476 = vld [vmem:[%s5 + $0x108] sm:$0xff]
        %v3477 = vld [vmem:[%s5 + $0x110] sm:$0xff]
        %v3478 = vld [vmem:[%s5 + $0x118] sm:$0xff]
        %v3479 = vld [vmem:[%s5 + $0x120] sm:$0xff]
        %v3480 = vld [vmem:[%s5 + $0x128] sm:$0xff]
        %v3481 = vld [vmem:[%s5 + $0x130] sm:$0xff]
        %v3482 = vld [vmem:[%s5 + $0x138] sm:$0xff]
        %v3483 = vld [vmem:[%s5 + $0x140] sm:$0xff]
        %v3484 = vld [vmem:[%s5 + $0x148] sm:$0x11]
        %v3527 = vunpack.c.l.b16 %v3443
        %v3528 = vunpack.c.h.b16 %v3443
        %v3529 = vunpack.c.l.b16 %v3444
        %v3530 = vunpack.c.h.b16 %v3444
        %v3531 = vunpack.c.l.b16 %v3445
        %v3532 = vunpack.c.h.b16 %v3445
        %v3533 = vunpack.c.l.b16 %v3446
        %v3534 = vunpack.c.h.b16 %v3446
        %v3535 = vunpack.c.l.b16 %v3447
        %v3536 = vunpack.c.h.b16 %v3447
        %v3537 = vunpack.c.l.b16 %v3448
        %v3538 = vunpack.c.h.b16 %v3448
        %v3539 = vunpack.c.l.b16 %v3449
        %v3540 = vunpack.c.h.b16 %v3449
        %v3541 = vunpack.c.l.b16 %v3450
        %v3542 = vunpack.c.h.b16 %v3450
        %v3543 = vunpack.c.l.b16 %v3451
        %v3544 = vunpack.c.h.b16 %v3451
        %v3545 = vunpack.c.l.b16 %v3452
        %v3546 = vunpack.c.h.b16 %v3452
        %v3547 = vunpack.c.l.b16 %v3453
        %v3548 = vunpack.c.h.b16 %v3453
        %v3549 = vunpack.c.l.b16 %v3454
        %v3550 = vunpack.c.h.b16 %v3454
        %v3551 = vunpack.c.l.b16 %v3455
        %v3552 = vunpack.c.h.b16 %v3455
        %v3553 = vunpack.c.l.b16 %v3456
        %v3554 = vunpack.c.h.b16 %v3456
        %v3555 = vunpack.c.l.b16 %v3457
        %v3556 = vunpack.c.h.b16 %v3457
        %v3557 = vunpack.c.l.b16 %v3458
        %v3558 = vunpack.c.h.b16 %v3458
        %v3559 = vunpack.c.l.b16 %v3459
        %v3560 = vunpack.c.h.b16 %v3459
        %v3561 = vunpack.c.l.b16 %v3460
        %v3562 = vunpack.c.h.b16 %v3460
        %v3563 = vunpack.c.l.b16 %v3461
        %v3564 = vunpack.c.h.b16 %v3461
        %v3565 = vunpack.c.l.b16 %v3462
        %v3566 = vunpack.c.h.b16 %v3462
        %v3567 = vunpack.c.l.b16 %v3463
        %v3568 = vunpack.c.h.b16 %v3463
        %v3569 = vunpack.c.l.b16 %v3464
        %v3570 = vunpack.c.h.b16 %v3464
        %v3571 = vunpack.c.l.b16 %v3465
        %v3572 = vunpack.c.h.b16 %v3465
        %v3573 = vunpack.c.l.b16 %v3466
        %v3574 = vunpack.c.h.b16 %v3466
        %v3575 = vunpack.c.l.b16 %v3467
        %v3576 = vunpack.c.h.b16 %v3467
        %v3577 = vunpack.c.l.b16 %v3468
        %v3578 = vunpack.c.h.b16 %v3468
        %v3579 = vunpack.c.l.b16 %v3469
        %v3580 = vunpack.c.h.b16 %v3469
        %v3581 = vunpack.c.l.b16 %v3470
        %v3582 = vunpack.c.h.b16 %v3470
        %v3583 = vunpack.c.l.b16 %v3471
        %v3584 = vunpack.c.h.b16 %v3471
        %v3585 = vunpack.c.l.b16 %v3472
        %v3586 = vunpack.c.h.b16 %v3472
        %v3587 = vunpack.c.l.b16 %v3473
        %v3588 = vunpack.c.h.b16 %v3473
        %v3589 = vunpack.c.l.b16 %v3474
        %v3590 = vunpack.c.h.b16 %v3474
        %v3591 = vunpack.c.l.b16 %v3475
        %v3592 = vunpack.c.h.b16 %v3475
        %v3593 = vunpack.c.l.b16 %v3476
        %v3594 = vunpack.c.h.b16 %v3476
        %v3595 = vunpack.c.l.b16 %v3477
        %v3596 = vunpack.c.h.b16 %v3477
        %v3597 = vunpack.c.l.b16 %v3478
        %v3598 = vunpack.c.h.b16 %v3478
        %v3599 = vunpack.c.l.b16 %v3479
        %v3600 = vunpack.c.h.b16 %v3479
        %v3601 = vunpack.c.l.b16 %v3480
        %v3602 = vunpack.c.h.b16 %v3480
        %v3603 = vunpack.c.l.b16 %v3481
        %v3604 = vunpack.c.h.b16 %v3481
        %v3605 = vunpack.c.l.b16 %v3482
        %v3606 = vunpack.c.h.b16 %v3482
        %v3607 = vunpack.c.l.b16 %v3483
        %v3608 = vunpack.c.h.b16 %v3483
        %v3609 = vunpack.c.l.b16 %v3484
        %v3610 = vunpack.c.h.b16 %v3484
        %v3611 = vpack.c.b16 %v3529, %v3527
        %v3612 = vpack.c.b16 %v3530, %v3528
        %v3613 = vpack.c.b16 %v3533, %v3531
        %v3614 = vpack.c.b16 %v3534, %v3532
        %v3615 = vpack.c.b16 %v3537, %v3535
        %v3616 = vpack.c.b16 %v3538, %v3536
        %v3617 = vpack.c.b16 %v3541, %v3539
        %v3618 = vpack.c.b16 %v3542, %v3540
        %v3619 = vpack.c.b16 %v3545, %v3543
        %v3620 = vpack.c.b16 %v3546, %v3544
        %v3621 = vpack.c.b16 %v3549, %v3547
        %v3622 = vpack.c.b16 %v3550, %v3548
        %v3623 = vpack.c.b16 %v3553, %v3551
        %v3624 = vpack.c.b16 %v3554, %v3552
        %v3625 = vpack.c.b16 %v3557, %v3555
        %v3626 = vpack.c.b16 %v3558, %v3556
        %v3627 = vpack.c.b16 %v3561, %v3559
        %v3628 = vpack.c.b16 %v3562, %v3560
        %v3629 = vpack.c.b16 %v3565, %v3563
        %v3630 = vpack.c.b16 %v3566, %v3564
        %v3631 = vpack.c.b16 %v3569, %v3567
        %v3632 = vpack.c.b16 %v3570, %v3568
        %v3633 = vpack.c.b16 %v3573, %v3571
        %v3634 = vpack.c.b16 %v3574, %v3572
        %v3635 = vpack.c.b16 %v3577, %v3575
        %v3636 = vpack.c.b16 %v3578, %v3576
        %v3637 = vpack.c.b16 %v3581, %v3579
        %v3638 = vpack.c.b16 %v3582, %v3580
        %v3639 = vpack.c.b16 %v3585, %v3583
        %v3640 = vpack.c.b16 %v3586, %v3584
        %v3641 = vpack.c.b16 %v3589, %v3587
        %v3642 = vpack.c.b16 %v3590, %v3588
        %v3643 = vpack.c.b16 %v3593, %v3591
        %v3644 = vpack.c.b16 %v3594, %v3592
        %v3645 = vpack.c.b16 %v3597, %v3595
        %v3646 = vpack.c.b16 %v3598, %v3596
        %v3647 = vpack.c.b16 %v3601, %v3599
        %v3648 = vpack.c.b16 %v3602, %v3600
        %v3649 = vpack.c.b16 %v3605, %v3603
        %v3650 = vpack.c.b16 %v3606, %v3604
        %v3651 = vpack.c.b16 %v3609, %v3607
        %v3652 = vpack.c.b16 %v3610, %v3608
        %vm3693 = vcmask 596992
        %v3695 = vsel %vm3693, %v3442, 0
        %vm3697 = vcmask 1044480
        %v3698 = vsel %vm2768, 4294967295, 65535
        %v3699 = vsel %vm3697, %v3698, 0
        %v3701 = vand.u32 %v3651, %v3699
        %v3704 = vand.u32 %v3652, %v3699
        %3706 = vmatpush.bf16.msra.mxu0 %v3625
        %3707 = vmatpush.bf16.msra.mxu0 %v3623
        %3708 = vmatpush.bf16.msra.mxu0 %v3621
        %3709 = vmatpush.bf16.msra.mxu0 %v3619
        %3710 = vmatpush.bf16.msra.mxu0 %v3617
        %3711 = vmatpush.bf16.msra.mxu0 %v3615
        %3712 = vmatpush.bf16.msra.mxu0 %v3613
        %3713 = vmatpush.bf16.msra.mxu0 %v3611
        %3714 = vmatmul.bf16.gmra.mxu0 %v3440
        %v3715 = vpop.f32.mrf.mxu0
        %v3716 = vadd.f32 0.0, %v3715
        %v3717 = vpop.f32.mrf.mxu0
        %v3718 = vadd.f32 0.0, %v3717
        %3719 = vdwg.mxu0
        %3720 = vmatpush.bf16.msra.mxu0 %v3641
        %3721 = vmatpush.bf16.msra.mxu0 %v3639
        %3722 = vmatpush.bf16.msra.mxu0 %v3637
        %3723 = vmatpush.bf16.msra.mxu0 %v3635
        %3724 = vmatpush.bf16.msra.mxu0 %v3633
        %3725 = vmatpush.bf16.msra.mxu0 %v3631
        %3726 = vmatpush.bf16.msra.mxu0 %v3629
        %3727 = vmatpush.bf16.msra.mxu0 %v3627
        %3728 = vmatmul.bf16.gmra.mxu0 %v3441
        %v3729 = vpop.f32.mrf.mxu0
        %v3730 = vadd.f32 %v3716, %v3729
        %v3731 = vpop.f32.mrf.mxu0
        %v3732 = vadd.f32 %v3718, %v3731
        %3733 = vdwg.mxu0
        %3734 = vmatpush.bf16.msra.mxu0 0
        %3735 = vmatpush.bf16.msra.mxu0 0
        %3736 = vmatpush.bf16.msra.mxu0 0
        %3737 = vmatpush.bf16.msra.mxu0 %v3701
        %3738 = vmatpush.bf16.msra.mxu0 %v3649
        %3739 = vmatpush.bf16.msra.mxu0 %v3647
        %3740 = vmatpush.bf16.msra.mxu0 %v3645
        %3741 = vmatpush.bf16.msra.mxu0 %v3643
        %3742 = vmatmul.bf16.gmra.mxu0 %v3695
        %v3743 = vpop.f32.mrf.mxu0
        %v3744 = vadd.f32 %v3730, %v3743
        %v3745 = vpop.f32.mrf.mxu0
        %v3746 = vadd.f32 %v3732, %v3745
        %3747 = vdwg.mxu0
        %3748 = vmatpush.bf16.msra.mxu0 %v3626
        %3749 = vmatpush.bf16.msra.mxu0 %v3624
        %3750 = vmatpush.bf16.msra.mxu0 %v3622
        %3751 = vmatpush.bf16.msra.mxu0 %v3620
        %3752 = vmatpush.bf16.msra.mxu0 %v3618
        %3753 = vmatpush.bf16.msra.mxu0 %v3616
        %3754 = vmatpush.bf16.msra.mxu0 %v3614
        %3755 = vmatpush.bf16.msra.mxu0 %v3612
        %3756 = vmatmul.bf16.gmra.mxu0 %v3440
        %v3757 = vpop.f32.mrf.mxu0
        %v3758 = vadd.f32 0.0, %v3757
        %v3759 = vpop.f32.mrf.mxu0
        %v3760 = vadd.f32 0.0, %v3759
        %3761 = vdwg.mxu0
        %3762 = vmatpush.bf16.msra.mxu0 %v3642
        %3763 = vmatpush.bf16.msra.mxu0 %v3640
        %3764 = vmatpush.bf16.msra.mxu0 %v3638
        %3765 = vmatpush.bf16.msra.mxu0 %v3636
        %3766 = vmatpush.bf16.msra.mxu0 %v3634
        %3767 = vmatpush.bf16.msra.mxu0 %v3632
        %3768 = vmatpush.bf16.msra.mxu0 %v3630
        %3769 = vmatpush.bf16.msra.mxu0 %v3628
        %3770 = vmatmul.bf16.gmra.mxu0 %v3441
        %v3771 = vpop.f32.mrf.mxu0
        %v3772 = vadd.f32 %v3758, %v3771
        %v3773 = vpop.f32.mrf.mxu0
        %v3774 = vadd.f32 %v3760, %v3773
        %3775 = vdwg.mxu0
        %3776 = vmatpush.bf16.msra.mxu0 0
        %3777 = vmatpush.bf16.msra.mxu0 0
        %3778 = vmatpush.bf16.msra.mxu0 0
        %3779 = vmatpush.bf16.msra.mxu0 %v3704
        %3780 = vmatpush.bf16.msra.mxu0 %v3650
        %3781 = vmatpush.bf16.msra.mxu0 %v3648
        %3782 = vmatpush.bf16.msra.mxu0 %v3646
        %3783 = vmatpush.bf16.msra.mxu0 %v3644
        %3784 = vmatmul.bf16.gmra.mxu0 %v3695
        %v3785 = vpop.f32.mrf.mxu0
        %v3786 = vadd.f32 %v3772, %v3785
        %v3787 = vpop.f32.mrf.mxu0
        %v3788 = vadd.f32 %v3774, %v3787
        %3789 = vdwg.mxu0
        %v3790 = vpack.c.bf16 %v3436, %v3429
        %v3791 = vpack.c.bf16 %v3437, %v3430
        %v3792 = vpack.c.bf16 %v3438, %v3431
        %v3793 = vpack.c.bf16 %v3439, %v3432
        %3798 = vrot.lane.b32.xlu0 %v3790, 6
        %v3799 = vpop.permute.xlu0 %3798
        %3800 = vrot.lane.b32.xlu0 %v3791, 6
        %v3801 = vpop.permute.xlu0 %3800
        %3802 = vrot.lane.b32.xlu0 %v3792, 6
        %v3803 = vpop.permute.xlu0 %3802
        %3804 = vrot.lane.b32.xlu0 %v3793, 6
        %v3805 = vpop.permute.xlu0 %3804
        %vm3806 = vcmask 48128
        %v3807 = vsel %vm3806, %v3799, %v3801
        %v3808 = vsel %vm3806, %v3801, %v3803
        %v3809 = vsel %vm3806, %v3803, %v3805
        %v3813 = vsel %vm3693, %v3809, 0
        %3815 = vmatpush.bf16.msra.mxu0 %v3625
        %3816 = vmatpush.bf16.msra.mxu0 %v3623
        %3817 = vmatpush.bf16.msra.mxu0 %v3621
        %3818 = vmatpush.bf16.msra.mxu0 %v3619
        %3819 = vmatpush.bf16.msra.mxu0 %v3617
        %3820 = vmatpush.bf16.msra.mxu0 %v3615
        %3821 = vmatpush.bf16.msra.mxu0 %v3613
        %3822 = vmatpush.bf16.msra.mxu0 %v3611
        %3823 = vmatmul.bf16.gmra.mxu0 %v3807
        %v3824 = vpop.f32.mrf.mxu0
        %v3825 = vadd.f32 0.0, %v3824
        %v3826 = vpop.f32.mrf.mxu0
        %v3827 = vadd.f32 0.0, %v3826
        %3828 = vdwg.mxu0
        %3829 = vmatpush.bf16.msra.mxu0 %v3641
        %3830 = vmatpush.bf16.msra.mxu0 %v3639
        %3831 = vmatpush.bf16.msra.mxu0 %v3637
        %3832 = vmatpush.bf16.msra.mxu0 %v3635
        %3833 = vmatpush.bf16.msra.mxu0 %v3633
        %3834 = vmatpush.bf16.msra.mxu0 %v3631
        %3835 = vmatpush.bf16.msra.mxu0 %v3629
        %3836 = vmatpush.bf16.msra.mxu0 %v3627
        %3837 = vmatmul.bf16.gmra.mxu0 %v3808
        %v3838 = vpop.f32.mrf.mxu0
        %v3839 = vadd.f32 %v3825, %v3838
        %v3840 = vpop.f32.mrf.mxu0
        %v3841 = vadd.f32 %v3827, %v3840
        %3842 = vdwg.mxu0
        %3843 = vmatpush.bf16.msra.mxu0 0
        %3844 = vmatpush.bf16.msra.mxu0 0
        %3845 = vmatpush.bf16.msra.mxu0 0
        %3846 = vmatpush.bf16.msra.mxu0 %v3701
        %3847 = vmatpush.bf16.msra.mxu0 %v3649
        %3848 = vmatpush.bf16.msra.mxu0 %v3647
        %3849 = vmatpush.bf16.msra.mxu0 %v3645
        %3850 = vmatpush.bf16.msra.mxu0 %v3643
        %3851 = vmatmul.bf16.gmra.mxu0 %v3813
        %v3852 = vpop.f32.mrf.mxu0
        %v3853 = vadd.f32 %v3839, %v3852
        %v3854 = vpop.f32.mrf.mxu0
        %v3855 = vadd.f32 %v3841, %v3854
        %3856 = vdwg.mxu0
        %3857 = vmatpush.bf16.msra.mxu0 %v3626
        %3858 = vmatpush.bf16.msra.mxu0 %v3624
        %3859 = vmatpush.bf16.msra.mxu0 %v3622
        %3860 = vmatpush.bf16.msra.mxu0 %v3620
        %3861 = vmatpush.bf16.msra.mxu0 %v3618
        %3862 = vmatpush.bf16.msra.mxu0 %v3616
        %3863 = vmatpush.bf16.msra.mxu0 %v3614
        %3864 = vmatpush.bf16.msra.mxu0 %v3612
        %3865 = vmatmul.bf16.gmra.mxu0 %v3807
        %v3866 = vpop.f32.mrf.mxu0
        %v3867 = vadd.f32 0.0, %v3866
        %v3868 = vpop.f32.mrf.mxu0
        %v3869 = vadd.f32 0.0, %v3868
        %3870 = vdwg.mxu0
        %3871 = vmatpush.bf16.msra.mxu0 %v3642
        %3872 = vmatpush.bf16.msra.mxu0 %v3640
        %3873 = vmatpush.bf16.msra.mxu0 %v3638
        %3874 = vmatpush.bf16.msra.mxu0 %v3636
        %3875 = vmatpush.bf16.msra.mxu0 %v3634
        %3876 = vmatpush.bf16.msra.mxu0 %v3632
        %3877 = vmatpush.bf16.msra.mxu0 %v3630
        %3878 = vmatpush.bf16.msra.mxu0 %v3628
        %3879 = vmatmul.bf16.gmra.mxu0 %v3808
        %v3880 = vpop.f32.mrf.mxu0
        %v3881 = vadd.f32 %v3867, %v3880
        %v3882 = vpop.f32.mrf.mxu0
        %v3883 = vadd.f32 %v3869, %v3882
        %3884 = vdwg.mxu0
        %3885 = vmatpush.bf16.msra.mxu0 0
        %3886 = vmatpush.bf16.msra.mxu0 0
        %3887 = vmatpush.bf16.msra.mxu0 0
        %3888 = vmatpush.bf16.msra.mxu0 %v3704
        %3889 = vmatpush.bf16.msra.mxu0 %v3650
        %3890 = vmatpush.bf16.msra.mxu0 %v3648
        %3891 = vmatpush.bf16.msra.mxu0 %v3646
        %3892 = vmatpush.bf16.msra.mxu0 %v3644
        %3893 = vmatmul.bf16.gmra.mxu0 %v3813
        %v3894 = vpop.f32.mrf.mxu0
        %v3895 = vadd.f32 %v3881, %v3894
        %v3896 = vpop.f32.mrf.mxu0
        %v3897 = vadd.f32 %v3883, %v3896
        %3898 = vdwg.mxu0
        %3903 = vrot.lane.b32.xlu0 %v3853, 28
        %v3904 = vpop.permute.xlu0 %3903
        %3905 = vrot.lane.b32.xlu0 %v3895, 28
        %v3906 = vpop.permute.xlu0 %3905
        %3907 = vrot.lane.b32.xlu0 %v3855, 28
        %v3908 = vpop.permute.xlu0 %3907
        %3909 = vrot.lane.b32.xlu0 %v3897, 28
        %v3910 = vpop.permute.xlu0 %3909
        %vm3911 = vcmask 228352
        %v3912 = vsel %vm3911, %v3904, %v3906
        %v3913 = vsel %vm3911, %v3908, %v3910
        %v3918 = vsel %vm3911, %v3786, %v3904
        %v3919 = vsel %vm3911, %v3788, %v3908
        %v3920 = vpack.c.bf16 %v3918, %v3744
        %v3921 = vpack.c.bf16 %v3912, %v3912
        %v3922 = vpack.c.bf16 %v3919, %v3746
        %v3923 = vpack.c.bf16 %v3913, %v3913
        %v3926 = vunpack.c.l.b16 %v3920
        %v3927 = vunpack.c.h.b16 %v3920
        %v3928 = vunpack.c.l.b16 %v3922
        %v3929 = vunpack.c.h.b16 %v3922
        %v3930 = vpack.c.b16 %v3928, %v3926
        %v3931 = vpack.c.b16 %v3929, %v3927
        %3934 = vrot.lane.b32.xlu0 %v3930, 127
        %v3935 = vpop.permute.xlu0 %3934
        %3936 = vrot.lane.b32.xlu0 %v3931, 127
        %v3937 = vpop.permute.xlu0 %3936
        %vm3938 = vcmask 1039360
        %v3939 = vsel %vm3938, %v3935, %v3937
        %3942 = vrot.lane.b32.xlu0 %v3930, 126
        %v3943 = vpop.permute.xlu0 %3942
        %3944 = vrot.lane.b32.xlu0 %v3931, 126
        %v3945 = vpop.permute.xlu0 %3944
        %vm3946 = vcmask 1031168
        %v3947 = vsel %vm3946, %v3943, %v3945
        %3950 = vrot.lane.b32.xlu0 %v3930, 125
        %v3951 = vpop.permute.xlu0 %3950
        %3952 = vrot.lane.b32.xlu0 %v3931, 125
        %v3953 = vpop.permute.xlu0 %3952
        %vm3954 = vcmask 1022976
        %v3955 = vsel %vm3954, %v3951, %v3953
        %3958 = vrot.lane.b32.xlu0 %v3930, 124
        %v3959 = vpop.permute.xlu0 %3958
        %3960 = vrot.lane.b32.xlu0 %v3931, 124
        %v3961 = vpop.permute.xlu0 %3960
        %vm3962 = vcmask 1014784
        %v3963 = vsel %vm3962, %v3959, %v3961
        %v3968 = vunpack.c.l.b16 %v3921
        %v3969 = vunpack.c.l.b16 %v3923
        %v3970 = vpack.c.b16 %v3969, %v3968
        %3971 = vrot.lane.b32.xlu0 %v3930, 116
        %v3972 = vpop.permute.xlu0 %3971
        %3973 = vrot.lane.b32.xlu0 %v3931, 116
        %v3974 = vpop.permute.xlu0 %3973
        %3975 = vrot.lane.b32.xlu0 %v3970, 116
        %v3976 = vpop.permute.xlu0 %3975
        %vm3977 = vcmask 949248
        %v3978 = vsel %vm3977, %v3972, %v3974
        %v3979 = vsel %vm3977, %v3974, %v3976
        %3982 = vrot.lane.b32.xlu0 %v3930, 115
        %v3983 = vpop.permute.xlu0 %3982
        %3984 = vrot.lane.b32.xlu0 %v3931, 115
        %v3985 = vpop.permute.xlu0 %3984
        %3986 = vrot.lane.b32.xlu0 %v3970, 115
        %v3987 = vpop.permute.xlu0 %3986
        %vm3988 = vcmask 941056
        %v3989 = vsel %vm3988, %v3983, %v3985
        %v3990 = vsel %vm3988, %v3985, %v3987
        %3993 = vrot.lane.b32.xlu0 %v3930, 114
        %v3994 = vpop.permute.xlu0 %3993
        %3995 = vrot.lane.b32.xlu0 %v3931, 114
        %v3996 = vpop.permute.xlu0 %3995
        %3997 = vrot.lane.b32.xlu0 %v3970, 114
        %v3998 = vpop.permute.xlu0 %3997
        %vm3999 = vcmask 932864
        %v4000 = vsel %vm3999, %v3994, %v3996
        %v4001 = vsel %vm3999, %v3996, %v3998
        %4004 = vrot.lane.b32.xlu0 %v3930, 113
        %v4005 = vpop.permute.xlu0 %4004
        %4006 = vrot.lane.b32.xlu0 %v3931, 113
        %v4007 = vpop.permute.xlu0 %4006
        %4008 = vrot.lane.b32.xlu0 %v3970, 113
        %v4009 = vpop.permute.xlu0 %4008
        %vm4010 = vcmask 924672
        %v4011 = vsel %vm4010, %v4005, %v4007
        %v4012 = vsel %vm4010, %v4007, %v4009
        %4015 = vrot.lane.b32.xlu0 %v3930, 112
        %v4016 = vpop.permute.xlu0 %4015
        %4017 = vrot.lane.b32.xlu0 %v3931, 112
        %v4018 = vpop.permute.xlu0 %4017
        %4019 = vrot.lane.b32.xlu0 %v3970, 112
        %v4020 = vpop.permute.xlu0 %4019
        %vm4021 = vcmask 916480
        %v4022 = vsel %vm4021, %v4016, %v4018
        %v4023 = vsel %vm4021, %v4018, %v4020
        %4026 = vrot.lane.b32.xlu0 %v3930, 104
        %v4027 = vpop.permute.xlu0 %4026
        %4028 = vrot.lane.b32.xlu0 %v3931, 104
        %v4029 = vpop.permute.xlu0 %4028
        %4030 = vrot.lane.b32.xlu0 %v3970, 104
        %v4031 = vpop.permute.xlu0 %4030
        %vm4032 = vcmask 850944
        %v4033 = vsel %vm4032, %v4027, %v4029
        %v4034 = vsel %vm4032, %v4029, %v4031
        %4037 = vrot.lane.b32.xlu0 %v3930, 103
        %v4038 = vpop.permute.xlu0 %4037
        %4039 = vrot.lane.b32.xlu0 %v3931, 103
        %v4040 = vpop.permute.xlu0 %4039
        %4041 = vrot.lane.b32.xlu0 %v3970, 103
        %v4042 = vpop.permute.xlu0 %4041
        %vm4043 = vcmask 842752
        %v4044 = vsel %vm4043, %v4038, %v4040
        %v4045 = vsel %vm4043, %v4040, %v4042
        %4048 = vrot.lane.b32.xlu0 %v3930, 102
        %v4049 = vpop.permute.xlu0 %4048
        %4050 = vrot.lane.b32.xlu0 %v3931, 102
        %v4051 = vpop.permute.xlu0 %4050
        %4052 = vrot.lane.b32.xlu0 %v3970, 102
        %v4053 = vpop.permute.xlu0 %4052
        %vm4054 = vcmask 834560
        %v4055 = vsel %vm4054, %v4049, %v4051
        %v4056 = vsel %vm4054, %v4051, %v4053
        %4059 = vrot.lane.b32.xlu0 %v3930, 101
        %v4060 = vpop.permute.xlu0 %4059
        %4061 = vrot.lane.b32.xlu0 %v3931, 101
        %v4062 = vpop.permute.xlu0 %4061
        %4063 = vrot.lane.b32.xlu0 %v3970, 101
        %v4064 = vpop.permute.xlu0 %4063
        %vm4065 = vcmask 826368
        %v4066 = vsel %vm4065, %v4060, %v4062
        %v4067 = vsel %vm4065, %v4062, %v4064
        %4070 = vrot.lane.b32.xlu0 %v3930, 100
        %v4071 = vpop.permute.xlu0 %4070
        %4072 = vrot.lane.b32.xlu0 %v3931, 100
        %v4073 = vpop.permute.xlu0 %4072
        %4074 = vrot.lane.b32.xlu0 %v3970, 100
        %v4075 = vpop.permute.xlu0 %4074
        %vm4076 = vcmask 818176
        %v4077 = vsel %vm4076, %v4071, %v4073
        %v4078 = vsel %vm4076, %v4073, %v4075
        %4081 = vrot.lane.b32.xlu0 %v3930, 92
        %v4082 = vpop.permute.xlu0 %4081
        %4083 = vrot.lane.b32.xlu0 %v3931, 92
        %v4084 = vpop.permute.xlu0 %4083
        %4085 = vrot.lane.b32.xlu0 %v3970, 92
        %v4086 = vpop.permute.xlu0 %4085
        %vm4087 = vcmask 752640
        %v4088 = vsel %vm4087, %v4082, %v4084
        %v4089 = vsel %vm4087, %v4084, %v4086
        %4092 = vrot.lane.b32.xlu0 %v3970, 127
        %v4093 = vpop.permute.xlu0 %4092
        %v4094 = vsel %vm3938, %v3937, %v4093
        %4095 = vrot.lane.b32.xlu0 %v3970, 126
        %v4096 = vpop.permute.xlu0 %4095
        %v4097 = vsel %vm3946, %v3945, %v4096
        %4098 = vrot.lane.b32.xlu0 %v3970, 125
        %v4099 = vpop.permute.xlu0 %4098
        %v4100 = vsel %vm3954, %v3953, %v4099
        %4101 = vrot.lane.b32.xlu0 %v3930, 117
        %v4102 = vpop.permute.xlu0 %4101
        %4103 = vrot.lane.b32.xlu0 %v3931, 117
        %v4104 = vpop.permute.xlu0 %4103
        %4105 = vrot.lane.b32.xlu0 %v3970, 117
        %v4106 = vpop.permute.xlu0 %4105
        %vm4107 = vcmask 957440
        %v4108 = vsel %vm4107, %v4102, %v4104
        %v4109 = vsel %vm4107, %v4104, %v4106
        %4110 = vrot.lane.b32.xlu0 %v3930, 91
        %v4111 = vpop.permute.xlu0 %4110
        %4112 = vrot.lane.b32.xlu0 %v3931, 91
        %v4113 = vpop.permute.xlu0 %4112
        %4114 = vrot.lane.b32.xlu0 %v3970, 91
        %v4115 = vpop.permute.xlu0 %4114
        %4116 = vrot.lane.b32.xlu0 %v3939, 91
        %v4117 = vpop.permute.xlu0 %4116
        %4118 = vrot.lane.b32.xlu0 %v4094, 91
        %v4119 = vpop.permute.xlu0 %4118
        %4120 = vrot.lane.b32.xlu0 %v4093, 91
        %v4121 = vpop.permute.xlu0 %4120
        %4122 = vrot.lane.b32.xlu0 %v3947, 91
        %v4123 = vpop.permute.xlu0 %4122
        %4124 = vrot.lane.b32.xlu0 %v4097, 91
        %v4125 = vpop.permute.xlu0 %4124
        %4126 = vrot.lane.b32.xlu0 %v4096, 91
        %v4127 = vpop.permute.xlu0 %4126
        %4128 = vrot.lane.b32.xlu0 %v3955, 91
        %v4129 = vpop.permute.xlu0 %4128
        %4130 = vrot.lane.b32.xlu0 %v4100, 91
        %v4131 = vpop.permute.xlu0 %4130
        %4132 = vrot.lane.b32.xlu0 %v4099, 91
        %v4133 = vpop.permute.xlu0 %4132
        %4134 = vrot.lane.b32.xlu0 %v4108, 91
        %v4135 = vpop.permute.xlu0 %4134
        %4136 = vrot.lane.b32.xlu0 %v4109, 91
        %v4137 = vpop.permute.xlu0 %4136
        %4138 = vrot.lane.b32.xlu0 %v4106, 91
        %v4139 = vpop.permute.xlu0 %4138
        %4140 = vrot.lane.b32.xlu0 %v3978, 91
        %v4141 = vpop.permute.xlu0 %4140
        %4142 = vrot.lane.b32.xlu0 %v3979, 91
        %v4143 = vpop.permute.xlu0 %4142
        %4144 = vrot.lane.b32.xlu0 %v3976, 91
        %v4145 = vpop.permute.xlu0 %4144
        %4146 = vrot.lane.b32.xlu0 %v3989, 91
        %v4147 = vpop.permute.xlu0 %4146
        %4148 = vrot.lane.b32.xlu0 %v3990, 91
        %v4149 = vpop.permute.xlu0 %4148
        %4150 = vrot.lane.b32.xlu0 %v3987, 91
        %v4151 = vpop.permute.xlu0 %4150
        %4152 = vrot.lane.b32.xlu0 %v4000, 91
        %v4153 = vpop.permute.xlu0 %4152
        %4154 = vrot.lane.b32.xlu0 %v4001, 91
        %v4155 = vpop.permute.xlu0 %4154
        %4156 = vrot.lane.b32.xlu0 %v3998, 91
        %v4157 = vpop.permute.xlu0 %4156
        %4158 = vrot.lane.b32.xlu0 %v4011, 91
        %v4159 = vpop.permute.xlu0 %4158
        %4160 = vrot.lane.b32.xlu0 %v4012, 91
        %v4161 = vpop.permute.xlu0 %4160
        %4162 = vrot.lane.b32.xlu0 %v4009, 91
        %v4163 = vpop.permute.xlu0 %4162
        %vm4164 = vcmask 744448
        %v4165 = vsel %vm4164, %v4111, %v4113
        %v4166 = vsel %vm4164, %v4113, %v4115
        %v4167 = vsel %vm4164, %v4117, %v4119
        %v4168 = vsel %vm4164, %v4119, %v4121
        %v4169 = vsel %vm4164, %v4123, %v4125
        %v4170 = vsel %vm4164, %v4125, %v4127
        %v4171 = vsel %vm4164, %v4129, %v4131
        %v4172 = vsel %vm4164, %v4131, %v4133
        %v4173 = vsel %vm4164, %v4135, %v4137
        %v4174 = vsel %vm4164, %v4137, %v4139
        %v4175 = vsel %vm4164, %v4141, %v4143
        %v4176 = vsel %vm4164, %v4143, %v4145
        %v4177 = vsel %vm4164, %v4147, %v4149
        %v4178 = vsel %vm4164, %v4149, %v4151
        %v4179 = vsel %vm4164, %v4153, %v4155
        %v4180 = vsel %vm4164, %v4155, %v4157
        %v4181 = vsel %vm4164, %v4159, %v4161
        %v4182 = vsel %vm4164, %v4161, %v4163
        %v4201 = vld [vmem:[%s6] sm:$0xff]
        %v4202 = vld [vmem:[%s6 + $0x8] sm:$0xff]
        %v4203 = vld [vmem:[%s6 + $0x10] sm:$0xff]
        %v4204 = vld [vmem:[%s6 + $0x18] sm:$0xff]
        %v4205 = vld [vmem:[%s6 + $0x20] sm:$0xff]
        %v4206 = vld [vmem:[%s6 + $0x28] sm:$0xff]
        %v4207 = vld [vmem:[%s6 + $0x30] sm:$0xff]
        %v4208 = vld [vmem:[%s6 + $0x38] sm:$0xff]
        %v4217 = vunpack.c.l.b16 %v4201
        %v4218 = vunpack.c.h.b16 %v4201
        %v4219 = vunpack.c.l.b16 %v4202
        %v4220 = vunpack.c.h.b16 %v4202
        %v4221 = vunpack.c.l.b16 %v4203
        %v4222 = vunpack.c.h.b16 %v4203
        %v4223 = vunpack.c.l.b16 %v4204
        %v4224 = vunpack.c.h.b16 %v4204
        %v4225 = vunpack.c.l.b16 %v4205
        %v4226 = vunpack.c.h.b16 %v4205
        %v4227 = vunpack.c.l.b16 %v4206
        %v4228 = vunpack.c.h.b16 %v4206
        %v4229 = vunpack.c.l.b16 %v4207
        %v4230 = vunpack.c.h.b16 %v4207
        %v4231 = vunpack.c.l.b16 %v4208
        %v4232 = vunpack.c.h.b16 %v4208
        %v4233 = vpack.c.b16 %v4221, %v4217
        %v4234 = vpack.c.b16 %v4222, %v4218
        %v4235 = vpack.c.b16 %v4223, %v4219
        %v4236 = vpack.c.b16 %v4224, %v4220
        %v4237 = vpack.c.b16 %v4229, %v4225
        %v4238 = vpack.c.b16 %v4230, %v4226
        %v4239 = vpack.c.b16 %v4231, %v4227
        %v4240 = vpack.c.b16 %v4232, %v4228
        %v4248 = vsel %vm690, %v4236, 0
        %v4251 = vsel %vm690, %v4240, 0
        %4253 = vmatpush.bf16.msra.mxu0 %v4000
        %4254 = vmatpush.bf16.msra.mxu0 %v3989
        %4255 = vmatpush.bf16.msra.mxu0 %v3978
        %4256 = vmatpush.bf16.msra.mxu0 %v3963
        %4257 = vmatpush.bf16.msra.mxu0 %v3955
        %4258 = vmatpush.bf16.msra.mxu0 %v3947
        %4259 = vmatpush.bf16.msra.mxu0 %v3939
        %4260 = vmatpush.bf16.msra.mxu0 %v3930
        %4261 = vmatmul.bf16.gmra.mxu0 %v4233
        %v4262 = vpop.f32.mrf.mxu0
        %v4263 = vadd.f32 0.0, %v4262
        %v4264 = vpop.f32.mrf.mxu0
        %v4265 = vadd.f32 0.0, %v4264
        %4266 = vmatmul.bf16.gmra.mxu0 %v4237
        %v4267 = vpop.f32.mrf.mxu0
        %v4268 = vadd.f32 0.0, %v4267
        %v4269 = vpop.f32.mrf.mxu0
        %v4270 = vadd.f32 0.0, %v4269
        %4271 = vdwg.mxu0
        %4272 = vmatpush.bf16.msra.mxu0 %v4088
        %4273 = vmatpush.bf16.msra.mxu0 %v4077
        %4274 = vmatpush.bf16.msra.mxu0 %v4066
        %4275 = vmatpush.bf16.msra.mxu0 %v4055
        %4276 = vmatpush.bf16.msra.mxu0 %v4044
        %4277 = vmatpush.bf16.msra.mxu0 %v4033
        %4278 = vmatpush.bf16.msra.mxu0 %v4022
        %4279 = vmatpush.bf16.msra.mxu0 %v4011
        %4280 = vmatmul.bf16.gmra.mxu0 %v4234
        %v4281 = vpop.f32.mrf.mxu0
        %v4282 = vadd.f32 %v4263, %v4281
        %v4283 = vpop.f32.mrf.mxu0
        %v4284 = vadd.f32 %v4265, %v4283
        %4285 = vmatmul.bf16.gmra.mxu0 %v4238
        %v4286 = vpop.f32.mrf.mxu0
        %v4287 = vadd.f32 %v4268, %v4286
        %v4288 = vpop.f32.mrf.mxu0
        %v4289 = vadd.f32 %v4270, %v4288
        %4290 = vdwg.mxu0
        %4291 = vmatpush.bf16.msra.mxu0 %v4179
        %4292 = vmatpush.bf16.msra.mxu0 %v4177
        %4293 = vmatpush.bf16.msra.mxu0 %v4175
        %4294 = vmatpush.bf16.msra.mxu0 %v4173
        %4295 = vmatpush.bf16.msra.mxu0 %v4171
        %4296 = vmatpush.bf16.msra.mxu0 %v4169
        %4297 = vmatpush.bf16.msra.mxu0 %v4167
        %4298 = vmatpush.bf16.msra.mxu0 %v4165
        %4299 = vmatmul.bf16.gmra.mxu0 %v4235
        %v4300 = vpop.f32.mrf.mxu0
        %v4301 = vadd.f32 %v4282, %v4300
        %v4302 = vpop.f32.mrf.mxu0
        %v4303 = vadd.f32 %v4284, %v4302
        %4304 = vmatmul.bf16.gmra.mxu0 %v4239
        %v4305 = vpop.f32.mrf.mxu0
        %v4306 = vadd.f32 %v4287, %v4305
        %v4307 = vpop.f32.mrf.mxu0
        %v4308 = vadd.f32 %v4289, %v4307
        %4309 = vdwg.mxu0
        %4310 = vmatpush.bf16.msra.mxu0 0
        %4311 = vmatpush.bf16.msra.mxu0 0
        %4312 = vmatpush.bf16.msra.mxu0 0
        %4313 = vmatpush.bf16.msra.mxu0 0
        %4314 = vmatpush.bf16.msra.mxu0 0
        %4315 = vmatpush.bf16.msra.mxu0 0
        %4316 = vmatpush.bf16.msra.mxu0 0
        %4317 = vmatpush.bf16.msra.mxu0 %v4181
        %4318 = vmatmul.bf16.gmra.mxu0 %v4248
        %v4319 = vpop.f32.mrf.mxu0
        %v4320 = vadd.f32 %v4301, %v4319
        %v4321 = vpop.f32.mrf.mxu0
        %v4322 = vadd.f32 %v4303, %v4321
        %4323 = vmatmul.bf16.gmra.mxu0 %v4251
        %v4324 = vpop.f32.mrf.mxu0
        %v4325 = vadd.f32 %v4306, %v4324
        %v4326 = vpop.f32.mrf.mxu0
        %v4327 = vadd.f32 %v4308, %v4326
        %4328 = vdwg.mxu0
        %4329 = vmatpush.bf16.msra.mxu0 %v4001
        %4330 = vmatpush.bf16.msra.mxu0 %v3990
        %4331 = vmatpush.bf16.msra.mxu0 %v3979
        %4332 = vmatpush.bf16.msra.mxu0 %v3961
        %4333 = vmatpush.bf16.msra.mxu0 %v3953
        %4334 = vmatpush.bf16.msra.mxu0 %v3945
        %4335 = vmatpush.bf16.msra.mxu0 %v3937
        %4336 = vmatpush.bf16.msra.mxu0 %v3931
        %4337 = vmatmul.bf16.gmra.mxu0 %v4233
        %v4338 = vpop.f32.mrf.mxu0
        %v4339 = vadd.f32 0.0, %v4338
        %v4340 = vpop.f32.mrf.mxu0
        %v4341 = vadd.f32 0.0, %v4340
        %4342 = vmatmul.bf16.gmra.mxu0 %v4237
        %v4343 = vpop.f32.mrf.mxu0
        %v4344 = vadd.f32 0.0, %v4343
        %v4345 = vpop.f32.mrf.mxu0
        %v4346 = vadd.f32 0.0, %v4345
        %4347 = vdwg.mxu0
        %4348 = vmatpush.bf16.msra.mxu0 %v4089
        %4349 = vmatpush.bf16.msra.mxu0 %v4078
        %4350 = vmatpush.bf16.msra.mxu0 %v4067
        %4351 = vmatpush.bf16.msra.mxu0 %v4056
        %4352 = vmatpush.bf16.msra.mxu0 %v4045
        %4353 = vmatpush.bf16.msra.mxu0 %v4034
        %4354 = vmatpush.bf16.msra.mxu0 %v4023
        %4355 = vmatpush.bf16.msra.mxu0 %v4012
        %4356 = vmatmul.bf16.gmra.mxu0 %v4234
        %v4357 = vpop.f32.mrf.mxu0
        %v4358 = vadd.f32 %v4339, %v4357
        %v4359 = vpop.f32.mrf.mxu0
        %v4360 = vadd.f32 %v4341, %v4359
        %4361 = vmatmul.bf16.gmra.mxu0 %v4238
        %v4362 = vpop.f32.mrf.mxu0
        %v4363 = vadd.f32 %v4344, %v4362
        %v4364 = vpop.f32.mrf.mxu0
        %v4365 = vadd.f32 %v4346, %v4364
        %4366 = vdwg.mxu0
        %4367 = vmatpush.bf16.msra.mxu0 %v4180
        %4368 = vmatpush.bf16.msra.mxu0 %v4178
        %4369 = vmatpush.bf16.msra.mxu0 %v4176
        %4370 = vmatpush.bf16.msra.mxu0 %v4174
        %4371 = vmatpush.bf16.msra.mxu0 %v4172
        %4372 = vmatpush.bf16.msra.mxu0 %v4170
        %4373 = vmatpush.bf16.msra.mxu0 %v4168
        %4374 = vmatpush.bf16.msra.mxu0 %v4166
        %4375 = vmatmul.bf16.gmra.mxu0 %v4235
        %v4376 = vpop.f32.mrf.mxu0
        %v4377 = vadd.f32 %v4358, %v4376
        %v4378 = vpop.f32.mrf.mxu0
        %v4379 = vadd.f32 %v4360, %v4378
        %4380 = vmatmul.bf16.gmra.mxu0 %v4239
        %v4381 = vpop.f32.mrf.mxu0
        %v4382 = vadd.f32 %v4363, %v4381
        %v4383 = vpop.f32.mrf.mxu0
        %v4384 = vadd.f32 %v4365, %v4383
        %4385 = vdwg.mxu0
        %4386 = vmatpush.bf16.msra.mxu0 0
        %4387 = vmatpush.bf16.msra.mxu0 0
        %4388 = vmatpush.bf16.msra.mxu0 0
        %4389 = vmatpush.bf16.msra.mxu0 0
        %4390 = vmatpush.bf16.msra.mxu0 0
        %4391 = vmatpush.bf16.msra.mxu0 0
        %4392 = vmatpush.bf16.msra.mxu0 0
        %4393 = vmatpush.bf16.msra.mxu0 %v4182
        %4394 = vmatmul.bf16.gmra.mxu0 %v4248
        %v4395 = vpop.f32.mrf.mxu0
        %v4396 = vadd.f32 %v4377, %v4395
        %v4397 = vpop.f32.mrf.mxu0
        %v4398 = vadd.f32 %v4379, %v4397
        %4399 = vmatmul.bf16.gmra.mxu0 %v4251
        %v4400 = vpop.f32.mrf.mxu0
        %v4401 = vadd.f32 %v4382, %v4400
        %v4402 = vpop.f32.mrf.mxu0
        %v4403 = vadd.f32 %v4384, %v4402
        %4404 = vdwg.mxu0
        %v4405 = vld [vmem:[%s7] sm:$0xff]
        %v4406 = vld [vmem:[%s7 + $0x8] sm:$0xff]
        %v4407 = vld [vmem:[%s7 + $0x10] sm:$0xff]
        %v4408 = vld [vmem:[%s7 + $0x18] sm:$0xff]
        %4410 = vset.pattern.permute.xlu0 0
        %4411 = vperm.xlu0 %4410, %v4405
        %v4412 = vpop.permute.xlu0 %4411
        %4415 = vset.pattern.permute.xlu0 0
        %4416 = vperm.xlu0 %4415, %v4406
        %v4417 = vpop.permute.xlu0 %4416
        %4420 = vset.pattern.permute.xlu0 0
        %4421 = vperm.xlu0 %4420, %v4407
        %v4422 = vpop.permute.xlu0 %4421
        %4425 = vset.pattern.permute.xlu0 0
        %4426 = vperm.xlu0 %4425, %v4408
        %v4427 = vpop.permute.xlu0 %4426
        %v4429 = vmul.f32 %v4320, %v4412
        %v4430 = vmul.f32 %v4396, %v4412
        %v4431 = vmul.f32 %v4322, %v4417
        %v4432 = vmul.f32 %v4398, %v4417
        %v4433 = vmul.f32 %v4325, %v4422
        %v4434 = vmul.f32 %v4401, %v4422
        %v4435 = vmul.f32 %v4327, %v4427
        %v4436 = vmul.f32 %v4403, %v4427
        %v4437 = vld [vmem:[%s8] sm:$0xff]
        %v4438 = vld [vmem:[%s8 + $0x8] sm:$0xff]
        %v4439 = vld [vmem:[%s8 + $0x10] sm:$0xff]
        %v4440 = vld [vmem:[%s8 + $0x18] sm:$0xff]
        %4442 = vset.pattern.permute.xlu0 0
        %4443 = vperm.xlu0 %4442, %v4437
        %v4444 = vpop.permute.xlu0 %4443
        %4447 = vset.pattern.permute.xlu0 0
        %4448 = vperm.xlu0 %4447, %v4438
        %v4449 = vpop.permute.xlu0 %4448
        %4452 = vset.pattern.permute.xlu0 0
        %4453 = vperm.xlu0 %4452, %v4439
        %v4454 = vpop.permute.xlu0 %4453
        %4457 = vset.pattern.permute.xlu0 0
        %4458 = vperm.xlu0 %4457, %v4440
        %v4459 = vpop.permute.xlu0 %4458
        %v4461 = vadd.f32 %v4429, %v4444
        %v4462 = vadd.f32 %v4430, %v4444
        %v4463 = vadd.f32 %v4431, %v4449
        %v4464 = vadd.f32 %v4432, %v4449
        %v4465 = vadd.f32 %v4433, %v4454
        %v4466 = vadd.f32 %v4434, %v4454
        %v4467 = vadd.f32 %v4435, %v4459
        %v4468 = vadd.f32 %v4436, %v4459
        %vm4469 = vcmp.ge.f32.partialorder %v4461, 0.0
        %vm4470 = vcmp.ge.f32.partialorder %v4462, 0.0
        %vm4471 = vcmp.ge.f32.partialorder %v4463, 0.0
        %vm4472 = vcmp.ge.f32.partialorder %v4464, 0.0
        %vm4473 = vcmp.ge.f32.partialorder %v4465, 0.0
        %vm4474 = vcmp.ge.f32.partialorder %v4466, 0.0
        %vm4475 = vcmp.ge.f32.partialorder %v4467, 0.0
        %vm4476 = vcmp.ge.f32.partialorder %v4468, 0.0
        %v4477 = vmul.f32 %v4461, 0.01
        %v4478 = vmul.f32 %v4462, 0.01
        %v4479 = vmul.f32 %v4463, 0.01
        %v4480 = vmul.f32 %v4464, 0.01
        %v4481 = vmul.f32 %v4465, 0.01
        %v4482 = vmul.f32 %v4466, 0.01
        %v4483 = vmul.f32 %v4467, 0.01
        %v4484 = vmul.f32 %v4468, 0.01
        %v4485 = vsel %vm4469, %v4461, %v4477
        %v4486 = vsel %vm4470, %v4462, %v4478
        %v4487 = vsel %vm4471, %v4463, %v4479
        %v4488 = vsel %vm4472, %v4464, %v4480
        %v4489 = vsel %vm4473, %v4465, %v4481
        %v4490 = vsel %vm4474, %v4466, %v4482
        %v4491 = vsel %vm4475, %v4467, %v4483
        %v4492 = vsel %vm4476, %v4468, %v4484
        %4501 = vrot.lane.b32.xlu0 %v4485, 127
        %v4502 = vpop.permute.xlu0 %4501
        %4503 = vrot.lane.b32.xlu0 %v4486, 127
        %v4504 = vpop.permute.xlu0 %4503
        %4505 = vrot.lane.b32.xlu0 %v4487, 127
        %v4506 = vpop.permute.xlu0 %4505
        %4507 = vrot.lane.b32.xlu0 %v4488, 127
        %v4508 = vpop.permute.xlu0 %4507
        %4509 = vrot.lane.b32.xlu0 %v4489, 127
        %v4510 = vpop.permute.xlu0 %4509
        %4511 = vrot.lane.b32.xlu0 %v4490, 127
        %v4512 = vpop.permute.xlu0 %4511
        %4513 = vrot.lane.b32.xlu0 %v4491, 127
        %v4514 = vpop.permute.xlu0 %4513
        %4515 = vrot.lane.b32.xlu0 %v4492, 127
        %v4516 = vpop.permute.xlu0 %4515
        %v4517 = vsel %vm952, %v4502, %v4504
        %v4518 = vsel %vm952, %v4506, %v4508
        %v4519 = vsel %vm952, %v4510, %v4512
        %v4520 = vsel %vm952, %v4514, %v4516
        %v4529 = vmax.f32 %v4485, %v4517
        %v4530 = vmax.f32 %v4486, %v4504
        %v4531 = vmax.f32 %v4487, %v4518
        %v4532 = vmax.f32 %v4488, %v4508
        %v4533 = vmax.f32 %v4489, %v4519
        %v4534 = vmax.f32 %v4490, %v4512
        %v4535 = vmax.f32 %v4491, %v4520
        %v4536 = vmax.f32 %v4492, %v4516
        %4545 = vrot.lane.b32.xlu0 %v4529, 116
        %v4546 = vpop.permute.xlu0 %4545
        %4547 = vrot.lane.b32.xlu0 %v4530, 116
        %v4548 = vpop.permute.xlu0 %4547
        %4549 = vrot.lane.b32.xlu0 %v4531, 116
        %v4550 = vpop.permute.xlu0 %4549
        %4551 = vrot.lane.b32.xlu0 %v4532, 116
        %v4552 = vpop.permute.xlu0 %4551
        %4553 = vrot.lane.b32.xlu0 %v4533, 116
        %v4554 = vpop.permute.xlu0 %4553
        %4555 = vrot.lane.b32.xlu0 %v4534, 116
        %v4556 = vpop.permute.xlu0 %4555
        %4557 = vrot.lane.b32.xlu0 %v4535, 116
        %v4558 = vpop.permute.xlu0 %4557
        %4559 = vrot.lane.b32.xlu0 %v4536, 116
        %v4560 = vpop.permute.xlu0 %4559
        %vm4561 = vcmask 949248
        %v4562 = vsel %vm4561, %v4546, %v4548
        %v4563 = vsel %vm4561, %v4550, %v4552
        %v4564 = vsel %vm4561, %v4554, %v4556
        %v4565 = vsel %vm4561, %v4558, %v4560
        %v4574 = vmax.f32 %v4529, %v4562
        %v4575 = vmax.f32 %v4530, %v4548
        %v4576 = vmax.f32 %v4531, %v4563
        %v4577 = vmax.f32 %v4532, %v4552
        %v4578 = vmax.f32 %v4533, %v4564
        %v4579 = vmax.f32 %v4534, %v4556
        %v4580 = vmax.f32 %v4535, %v4565
        %v4581 = vmax.f32 %v4536, %v4560
        %v4582 = vpack.c.bf16 %v4576, %v4574
        %v4583 = vpack.c.bf16 %v4580, %v4578
        %v4584 = vld [vmem:[%s9] sm:$0xf]
        %v4585 = vld [vmem:[%s9 + $0x4] sm:$0xf]
        %v4586 = vld [vmem:[%s9 + $0x8] sm:$0xf]
        %v4587 = vld [vmem:[%s9 + $0xc] sm:$0xf]
        %v4588 = vld [vmem:[%s9 + $0x10] sm:$0xf]
        %v4589 = vld [vmem:[%s9 + $0x14] sm:$0xf]
        %v4590 = vld [vmem:[%s9 + $0x18] sm:$0xf]
        %v4591 = vld [vmem:[%s9 + $0x1c] sm:$0xf]
        %v4592 = vld [vmem:[%s9 + $0x20] sm:$0xf]
        %v4593 = vld [vmem:[%s9 + $0x24] sm:$0xf]
        %v4594 = vld [vmem:[%s9 + $0x28] sm:$0x3]
        %v4606 = vunpack.c.l.b16 %v4584
        %v4607 = vunpack.c.l.b16 %v4585
        %v4608 = vunpack.c.l.b16 %v4586
        %v4609 = vunpack.c.l.b16 %v4587
        %v4610 = vunpack.c.l.b16 %v4588
        %v4611 = vunpack.c.l.b16 %v4589
        %v4612 = vunpack.c.l.b16 %v4590
        %v4613 = vunpack.c.l.b16 %v4591
        %v4614 = vunpack.c.l.b16 %v4592
        %v4615 = vunpack.c.l.b16 %v4593
        %v4616 = vunpack.c.l.b16 %v4594
        %v4617 = vpack.c.b16 %v4607, %v4606
        %v4618 = vpack.c.b16 %v4609, %v4608
        %v4619 = vpack.c.b16 %v4611, %v4610
        %v4620 = vpack.c.b16 %v4613, %v4612
        %v4621 = vpack.c.b16 %v4615, %v4614
        %v4622 = vpack.c.b16 %v4616, %v4616
        %v4629 = vsel %vm1348, %v4582, 0
        %v4632 = vsel %vm1348, %v4583, 0
        %vm4634 = vcmask 1040384
        %vm4635 = vcmask 1041408
        %v4636 = vsel %vm4634, 4294967295, 65535
        %v4637 = vsel %vm4635, %v4636, 0
        %v4639 = vand.u32 %v4622, %v4637
        %4641 = vmatpush.bf16.msra.mxu0 0
        %4642 = vmatpush.bf16.msra.mxu0 0
        %4643 = vmatpush.bf16.msra.mxu0 %v4639
        %4644 = vmatpush.bf16.msra.mxu0 %v4621
        %4645 = vmatpush.bf16.msra.mxu0 %v4620
        %4646 = vmatpush.bf16.msra.mxu0 %v4619
        %4647 = vmatpush.bf16.msra.mxu0 %v4618
        %4648 = vmatpush.bf16.msra.mxu0 %v4617
        %4649 = vmatmul.bf16.gmra.mxu0 %v4629
        %v4650 = vpop.f32.mrf.mxu0
        %v4651 = vadd.f32 0.0, %v4650
        %v4652 = vpop.f32.mrf.mxu0
        %v4653 = vadd.f32 0.0, %v4652
        %4654 = vmatmul.bf16.gmra.mxu0 %v4632
        %v4655 = vpop.f32.mrf.mxu0
        %v4656 = vadd.f32 0.0, %v4655
        %v4657 = vpop.f32.mrf.mxu0
        %v4658 = vadd.f32 0.0, %v4657
        %4659 = vdwg.mxu0
        %v4660 = vpack.c.bf16 %v4577, %v4575
        %v4661 = vpack.c.bf16 %v4581, %v4579
        %4664 = vrot.lane.b32.xlu0 %v4660, 100
        %v4665 = vpop.permute.xlu0 %4664
        %4666 = vrot.lane.b32.xlu0 %v4661, 100
        %v4667 = vpop.permute.xlu0 %4666
        %v4669 = vsel %vm1348, %v4665, 0
        %v4672 = vsel %vm1348, %v4667, 0
        %4674 = vmatpush.bf16.msra.mxu0 0
        %4675 = vmatpush.bf16.msra.mxu0 0
        %4676 = vmatpush.bf16.msra.mxu0 %v4639
        %4677 = vmatpush.bf16.msra.mxu0 %v4621
        %4678 = vmatpush.bf16.msra.mxu0 %v4620
        %4679 = vmatpush.bf16.msra.mxu0 %v4619
        %4680 = vmatpush.bf16.msra.mxu0 %v4618
        %4681 = vmatpush.bf16.msra.mxu0 %v4617
        %4682 = vmatmul.bf16.gmra.mxu0 %v4669
        %v4683 = vpop.f32.mrf.mxu0
        %v4684 = vadd.f32 0.0, %v4683
        %v4685 = vpop.f32.mrf.mxu0
        %v4686 = vadd.f32 0.0, %v4685
        %4687 = vmatmul.bf16.gmra.mxu0 %v4672
        %v4688 = vpop.f32.mrf.mxu0
        %v4689 = vadd.f32 0.0, %v4688
        %v4690 = vpop.f32.mrf.mxu0
        %v4691 = vadd.f32 0.0, %v4690
        %4692 = vdwg.mxu0
        %4697 = vrot.lane.b32.xlu0 %v4684, 42
        %v4698 = vpop.permute.xlu0 %4697
        %4699 = vrot.lane.b32.xlu0 %v4686, 42
        %v4700 = vpop.permute.xlu0 %4699
        %4701 = vrot.lane.b32.xlu0 %v4689, 42
        %v4702 = vpop.permute.xlu0 %4701
        %4703 = vrot.lane.b32.xlu0 %v4691, 42
        %v4704 = vpop.permute.xlu0 %4703
        %vm4709 = vcmask 343040
        %v4710 = vsel %vm4709, %v4651, %v4698
        %v4711 = vsel %vm4709, %v4653, %v4700
        %v4712 = vsel %vm4709, %v4656, %v4702
        %v4713 = vsel %vm4709, %v4658, %v4704
        %v4714 = vpack.c.bf16 %v4710, %v4710
        %v4715 = vpack.c.bf16 %v4711, %v4711
        %v4716 = vpack.c.bf16 %v4712, %v4712
        %v4717 = vpack.c.bf16 %v4713, %v4713
        %v4722 = vunpack.c.l.b16 %v4714
        %v4723 = vunpack.c.l.b16 %v4715
        %v4724 = vunpack.c.l.b16 %v4716
        %v4725 = vunpack.c.l.b16 %v4717
        %v4726 = vpack.c.b16 %v4723, %v4722
        %v4727 = vpack.c.b16 %v4725, %v4724
        %4730 = vrot.lane.b32.xlu0 %v4726, 127
        %v4731 = vpop.permute.xlu0 %4730
        %4732 = vrot.lane.b32.xlu0 %v4727, 127
        %v4733 = vpop.permute.xlu0 %4732
        %4736 = vrot.lane.b32.xlu0 %v4726, 126
        %v4737 = vpop.permute.xlu0 %4736
        %4738 = vrot.lane.b32.xlu0 %v4727, 126
        %v4739 = vpop.permute.xlu0 %4738
        %4742 = vrot.lane.b32.xlu0 %v4726, 122
        %v4743 = vpop.permute.xlu0 %4742
        %4744 = vrot.lane.b32.xlu0 %v4727, 122
        %v4745 = vpop.permute.xlu0 %4744
        %4748 = vrot.lane.b32.xlu0 %v4726, 121
        %v4749 = vpop.permute.xlu0 %4748
        %4750 = vrot.lane.b32.xlu0 %v4727, 121
        %v4751 = vpop.permute.xlu0 %4750
        %4754 = vrot.lane.b32.xlu0 %v4726, 120
        %v4755 = vpop.permute.xlu0 %4754
        %4756 = vrot.lane.b32.xlu0 %v4727, 120
        %v4757 = vpop.permute.xlu0 %4756
        %4760 = vrot.lane.b32.xlu0 %v4726, 116
        %v4761 = vpop.permute.xlu0 %4760
        %4762 = vrot.lane.b32.xlu0 %v4727, 116
        %v4763 = vpop.permute.xlu0 %4762
        %4766 = vrot.lane.b32.xlu0 %v4726, 115
        %v4767 = vpop.permute.xlu0 %4766
        %4768 = vrot.lane.b32.xlu0 %v4727, 115
        %v4769 = vpop.permute.xlu0 %4768
        %4772 = vrot.lane.b32.xlu0 %v4726, 114
        %v4773 = vpop.permute.xlu0 %4772
        %4774 = vrot.lane.b32.xlu0 %v4727, 114
        %v4775 = vpop.permute.xlu0 %4774
        %v4778 = vld [vmem:[%s10] sm:$0xff]
        %v4779 = vld [vmem:[%s10 + $0x8] sm:$0xf]
        %v4780 = vld [vmem:[%s10 + $0xc] sm:$0xff]
        %v4781 = vld [vmem:[%s10 + $0x14] sm:$0xf]
        %v4782 = vld [vmem:[%s10 + $0x18] sm:$0xff]
        %v4783 = vld [vmem:[%s10 + $0x20] sm:$0xf]
        %v4784 = vld [vmem:[%s10 + $0x24] sm:$0xff]
        %v4785 = vld [vmem:[%s10 + $0x2c] sm:$0xf]
        %v4794 = vunpack.c.l.b16 %v4778
        %v4795 = vunpack.c.h.b16 %v4778
        %v4796 = vunpack.c.l.b16 %v4779
        %v4797 = vunpack.c.l.b16 %v4780
        %v4798 = vunpack.c.h.b16 %v4780
        %v4799 = vunpack.c.l.b16 %v4781
        %v4800 = vunpack.c.l.b16 %v4782
        %v4801 = vunpack.c.h.b16 %v4782
        %v4802 = vunpack.c.l.b16 %v4783
        %v4803 = vunpack.c.l.b16 %v4784
        %v4804 = vunpack.c.h.b16 %v4784
        %v4805 = vunpack.c.l.b16 %v4785
        %v4806 = vpack.c.b16 %v4797, %v4794
        %v4807 = vpack.c.b16 %v4798, %v4795
        %v4808 = vpack.c.b16 %v4799, %v4796
        %v4809 = vpack.c.b16 %v4803, %v4800
        %v4810 = vpack.c.b16 %v4804, %v4801
        %v4811 = vpack.c.b16 %v4805, %v4802
        %vm4816 = vcmask 261120
        %v4818 = vsel %vm4816, %v4808, 0
        %v4821 = vsel %vm4816, %v4811, 0
        %4823 = vmatpush.bf16.msra.mxu0 %v4745
        %4824 = vmatpush.bf16.msra.mxu0 %v4743
        %4825 = vmatpush.bf16.msra.mxu0 %v4739
        %4826 = vmatpush.bf16.msra.mxu0 %v4737
        %4827 = vmatpush.bf16.msra.mxu0 %v4733
        %4828 = vmatpush.bf16.msra.mxu0 %v4731
        %4829 = vmatpush.bf16.msra.mxu0 %v4727
        %4830 = vmatpush.bf16.msra.mxu0 %v4726
        %4831 = vmatmul.bf16.gmra.mxu0 %v4806
        %v4832 = vpop.f32.mrf.mxu0
        %v4833 = vadd.f32 0.0, %v4832
        %v4834 = vpop.f32.mrf.mxu0
        %v4835 = vadd.f32 0.0, %v4834
        %4836 = vmatmul.bf16.gmra.mxu0 %v4809
        %v4837 = vpop.f32.mrf.mxu0
        %v4838 = vadd.f32 0.0, %v4837
        %v4839 = vpop.f32.mrf.mxu0
        %v4840 = vadd.f32 0.0, %v4839
        %4841 = vdwg.mxu0
        %4842 = vmatpush.bf16.msra.mxu0 %v4769
        %4843 = vmatpush.bf16.msra.mxu0 %v4767
        %4844 = vmatpush.bf16.msra.mxu0 %v4763
        %4845 = vmatpush.bf16.msra.mxu0 %v4761
        %4846 = vmatpush.bf16.msra.mxu0 %v4757
        %4847 = vmatpush.bf16.msra.mxu0 %v4755
        %4848 = vmatpush.bf16.msra.mxu0 %v4751
        %4849 = vmatpush.bf16.msra.mxu0 %v4749
        %4850 = vmatmul.bf16.gmra.mxu0 %v4807
        %v4851 = vpop.f32.mrf.mxu0
        %v4852 = vadd.f32 %v4833, %v4851
        %v4853 = vpop.f32.mrf.mxu0
        %v4854 = vadd.f32 %v4835, %v4853
        %4855 = vmatmul.bf16.gmra.mxu0 %v4810
        %v4856 = vpop.f32.mrf.mxu0
        %v4857 = vadd.f32 %v4838, %v4856
        %v4858 = vpop.f32.mrf.mxu0
        %v4859 = vadd.f32 %v4840, %v4858
        %4860 = vdwg.mxu0
        %4861 = vmatpush.bf16.msra.mxu0 0
        %4862 = vmatpush.bf16.msra.mxu0 0
        %4863 = vmatpush.bf16.msra.mxu0 0
        %4864 = vmatpush.bf16.msra.mxu0 0
        %4865 = vmatpush.bf16.msra.mxu0 0
        %4866 = vmatpush.bf16.msra.mxu0 0
        %4867 = vmatpush.bf16.msra.mxu0 %v4775
        %4868 = vmatpush.bf16.msra.mxu0 %v4773
        %4869 = vmatmul.bf16.gmra.mxu0 %v4818
        %v4870 = vpop.f32.mrf.mxu0
        %v4871 = vadd.f32 %v4852, %v4870
        %v4872 = vpop.f32.mrf.mxu0
        %v4873 = vadd.f32 %v4854, %v4872
        %4874 = vmatmul.bf16.gmra.mxu0 %v4821
        %v4875 = vpop.f32.mrf.mxu0
        %v4876 = vadd.f32 %v4857, %v4875
        %v4877 = vpop.f32.mrf.mxu0
        %v4878 = vadd.f32 %v4859, %v4877
        %4879 = vdwg.mxu0
        %v4880 = vld [vmem:[%s11] sm:$0xff]
        %v4881 = vld [vmem:[%s11 + $0x8] sm:$0xff]
        %v4882 = vld [vmem:[%s11 + $0x10] sm:$0xff]
        %v4883 = vld [vmem:[%s11 + $0x18] sm:$0xff]
        %4885 = vset.pattern.permute.xlu0 0
        %4886 = vperm.xlu0 %4885, %v4880
        %v4887 = vpop.permute.xlu0 %4886
        %4890 = vset.pattern.permute.xlu0 0
        %4891 = vperm.xlu0 %4890, %v4881
        %v4892 = vpop.permute.xlu0 %4891
        %4895 = vset.pattern.permute.xlu0 0
        %4896 = vperm.xlu0 %4895, %v4882
        %v4897 = vpop.permute.xlu0 %4896
        %4900 = vset.pattern.permute.xlu0 0
        %4901 = vperm.xlu0 %4900, %v4883
        %v4902 = vpop.permute.xlu0 %4901
        %v4904 = vmul.f32 %v4871, %v4887
        %v4905 = vmul.f32 %v4873, %v4892
        %v4906 = vmul.f32 %v4876, %v4897
        %v4907 = vmul.f32 %v4878, %v4902
        %v4908 = vld [vmem:[%s12] sm:$0xff]
        %v4909 = vld [vmem:[%s12 + $0x8] sm:$0xff]
        %v4910 = vld [vmem:[%s12 + $0x10] sm:$0xff]
        %v4911 = vld [vmem:[%s12 + $0x18] sm:$0xff]
        %4913 = vset.pattern.permute.xlu0 0
        %4914 = vperm.xlu0 %4913, %v4908
        %v4915 = vpop.permute.xlu0 %4914
        %4918 = vset.pattern.permute.xlu0 0
        %4919 = vperm.xlu0 %4918, %v4909
        %v4920 = vpop.permute.xlu0 %4919
        %4923 = vset.pattern.permute.xlu0 0
        %4924 = vperm.xlu0 %4923, %v4910
        %v4925 = vpop.permute.xlu0 %4924
        %4928 = vset.pattern.permute.xlu0 0
        %4929 = vperm.xlu0 %4928, %v4911
        %v4930 = vpop.permute.xlu0 %4929
        %v4932 = vadd.f32 %v4904, %v4915
        %v4933 = vadd.f32 %v4905, %v4920
        %v4934 = vadd.f32 %v4906, %v4925
        %v4935 = vadd.f32 %v4907, %v4930
        %vm4936 = vcmp.ge.f32.partialorder %v4932, 0.0
        %vm4937 = vcmp.ge.f32.partialorder %v4933, 0.0
        %vm4938 = vcmp.ge.f32.partialorder %v4934, 0.0
        %vm4939 = vcmp.ge.f32.partialorder %v4935, 0.0
        %v4940 = vmul.f32 %v4932, 0.01
        %v4941 = vmul.f32 %v4933, 0.01
        %v4942 = vmul.f32 %v4934, 0.01
        %v4943 = vmul.f32 %v4935, 0.01
        %v4944 = vsel %vm4936, %v4932, %v4940
        %v4945 = vsel %vm4937, %v4933, %v4941
        %v4946 = vsel %vm4938, %v4934, %v4942
        %v4947 = vsel %vm4939, %v4935, %v4943
        %4952 = vrot.lane.b32.xlu0 %v4944, 127
        %v4953 = vpop.permute.xlu0 %4952
        %4954 = vrot.lane.b32.xlu0 %v4945, 127
        %v4955 = vpop.permute.xlu0 %4954
        %4956 = vrot.lane.b32.xlu0 %v4946, 127
        %v4957 = vpop.permute.xlu0 %4956
        %4958 = vrot.lane.b32.xlu0 %v4947, 127
        %v4959 = vpop.permute.xlu0 %4958
        %v4964 = vmax.f32 %v4944, %v4953
        %v4965 = vmax.f32 %v4945, %v4955
        %v4966 = vmax.f32 %v4946, %v4957
        %v4967 = vmax.f32 %v4947, %v4959
        %4972 = vrot.lane.b32.xlu0 %v4964, 122
        %v4973 = vpop.permute.xlu0 %4972
        %4974 = vrot.lane.b32.xlu0 %v4965, 122
        %v4975 = vpop.permute.xlu0 %4974
        %4976 = vrot.lane.b32.xlu0 %v4966, 122
        %v4977 = vpop.permute.xlu0 %4976
        %4978 = vrot.lane.b32.xlu0 %v4967, 122
        %v4979 = vpop.permute.xlu0 %4978
        %v4984 = vmax.f32 %v4964, %v4973
        %v4985 = vmax.f32 %v4965, %v4975
        %v4986 = vmax.f32 %v4966, %v4977
        %v4987 = vmax.f32 %v4967, %v4979
        %v4988 = vld [vmem:[%s13] sm:$0x3]
        %vm4989 = vcmask 482304
        %v4991 = vsel %vm4989, %v4988, 0
        %v4994 = vsel %vm4989, %v4984, 0
        %v4997 = vsel %vm4989, %v4985, 0
        %v5000 = vsel %vm4989, %v4986, 0
        %v5003 = vsel %vm4989, %v4987, 0
        %5005 = vmatpush.xpose.msra.mxu0 0.0
        %5006 = vmatpush.xpose.msra.mxu0 0.0
        %5007 = vmatpush.xpose.msra.mxu0 0.0
        %5008 = vmatpush.xpose.msra.mxu0 0.0
        %5009 = vmatpush.xpose.msra.mxu0 0.0
        %5010 = vmatpush.xpose.msra.mxu0 0.0
        %5011 = vmatpush.xpose.msra.mxu0 0.0
        %5012 = vmatpush.xpose.msra.mxu0 0.0
        %5013 = vmatpush.xpose.msra.mxu0 0.0
        %5014 = vmatpush.xpose.msra.mxu0 0.0
        %5015 = vmatpush.xpose.msra.mxu0 0.0
        %5016 = vmatpush.xpose.msra.mxu0 0.0
        %5017 = vmatpush.xpose.msra.mxu0 %v5003
        %5018 = vmatpush.xpose.msra.mxu0 %v5000
        %5019 = vmatpush.xpose.msra.mxu0 %v4997
        %5020 = vmatpush.xpose.msra.mxu0 %v4994
        %5021 = vmatmul.f32.gmra.mxu0 %v4991
        %v5022 = vpop.f32.mrf.mxu0
        %v5023 = vadd.f32 0.0, %v5022
        %5024 = vdwg.mxu0
        %vm5025 = vcmask 254976
        %5026 = vst.msk [vmem:[%s460] sm:$0x3] %vm5025, %v5023
        %s5027 = sand.u32 %s335, 1
        %s5028 = scalar_lea.sflag [#allocation3], %s5027
        %s5029 = sand.u32 %s335, 1
        %s5030 = smul.addr %s5029, 2
        %s5031 = scalar_lea.vmem [#allocation2], %s5030
        // Predicated region
        $region77: #{rp_encoder_forward.1} parent=75 // pred_check
          %p5032 = pneg %p345
        $region78: #{rp_encoder_forward.1} parent=75 // pred_check_branch
          %5034 = sbr.rel (%p5032) target = $region80
        $region79: #{rp_encoder_forward.1} parent=75 // pred_region
          %5036 = vsyncadd %s5028, 0
          %s5037 = smul.addr %s28, 2
          %s5038 = scalar_lea.hbm %s14, %s5037
          %s5040 = sshll.u32 %s5031, 4
          %s5041 = int_to_ptr.vmem [resolvable:$true] %s5040
          %s5042 = sshll.u32 %s5038, 4
          %s5043 = int_to_ptr.hbm [resolvable:$true] %s5042
          %5045 = dma.vmem_to_hbm [thread:$0]  %s5041, 32, %s5043, %s5028
        $region80: #{rp_encoder_forward.1} parent=75 // pred_fallthru
          _
      $region76: #{rp_encoder_forward.1} parent=5 // pred_fallthru
        _
      %p5046 = scmp.le.s32.totalorder 2, %s23
      // Predicated region
      $region81: #{rp_encoder_forward.1} parent=5 // pred_check
        %p5047 = pneg %p5046
      $region82: #{rp_encoder_forward.1} parent=5 // pred_check_branch
        %5049 = sbr.rel (%p5047) target = $region84
      $region83: #{rp_encoder_forward.1} parent=5 // pred_region
        %s5050 = ssub.s32 %s23, 2
        // Predicated region
        $region85: #{rp_encoder_forward.1} parent=83 // pred_check
          %p5051 = pneg %p351
        $region86: #{rp_encoder_forward.1} parent=83 // pred_check_branch
          %5053 = sbr.rel (%p5051) target = $region88
        $region87: #{rp_encoder_forward.1} parent=83 // pred_region
          %s5054 = sand.u32 %s336, 1
          %s5055 = scalar_lea.sflag [#allocation3], %s5054
          %s5056 = sand.u32 %s336, 1
          %s5057 = smul.addr %s5056, 2
          %s5058 = scalar_lea.vmem [#allocation2], %s5057
          %5060 = dma.done %s5055, 32
        $region88: #{rp_encoder_forward.1} parent=83 // pred_fallthru
          _
      $region84: #{rp_encoder_forward.1} parent=5 // pred_fallthru
        _
    $region6: #{rp_encoder_forward.1} parent=1 // loop_footer
      %s27 = sadd.s32 1, %s23
    $region7: #{rp_encoder_forward.1} parent=1 // loop_footer_branch
      %22 = sbr.rel target = $region3
    $region8: #{rp_encoder_forward.1} parent=1 // loop_exit
      _
    %5061 = vsyncpa [#allocation3], 1
    %s5062 = scalar_lea.sflag [#allocation3], 1
    %5063 = vsyncpa %s5062, 1

</llo_original>
